<compile_context>
chip_gen: v5e
topology: v5e:2x2
jax: 0.10.0
libtpu: 0.0.40
codegen_flags: <defaults>
</compile_context>

<pallas_src>
import functools

import jax
import jax.numpy as jnp
from jax.experimental import pallas as pl
from jax.experimental.pallas import tpu as pltpu


# ------------------------------ helpers --------------------------------------

def _pick_tile(dim, candidates=(256, 128)):
    for c in candidates:
        if dim >= c and dim % c == 0:
            return c
    return dim


def _round_up(x, m):
    return ((x + m - 1) // m) * m


def fold_bn(gamma, beta, mean, var, eps=1e-5, conv_bias=None):
    """BatchNorm (inference) folded to y = scale*x + shift; conv bias folded in too."""
    scale = gamma / jnp.sqrt(var + eps)
    shift = beta - mean * scale
    if conv_bias is not None:
        shift = shift + conv_bias * scale
    return (scale.reshape(1, -1).astype(jnp.float32),
            shift.reshape(1, -1).astype(jnp.float32))


def align_corners_matrix(out_size, in_size):
    """Row-stochastic interpolation matrix for bilinear, align_corners=True."""
    if out_size == 1 or in_size == 1:
        idx = jnp.zeros((out_size,), jnp.int32)
        return jax.nn.one_hot(idx, in_size, dtype=jnp.float32)
    pos = jnp.arange(out_size, dtype=jnp.float32) * (in_size - 1) / (out_size - 1)
    i0 = jnp.clip(jnp.floor(pos).astype(jnp.int32), 0, in_size - 1)
    i1 = jnp.minimum(i0 + 1, in_size - 1)
    frac = pos - i0.astype(jnp.float32)
    return ((1.0 - frac)[:, None] * jax.nn.one_hot(i0, in_size, dtype=jnp.float32)
            + frac[:, None] * jax.nn.one_hot(i1, in_size, dtype=jnp.float32))


_VMEM_LIMIT = 32 * 1024 * 1024   # safe on v5e/v6e/v7x scoped-VMEM budgets


# ----------------------------- Pallas kernels --------------------------------

def _conv3x3_bn_relu_kernel(x_ref, w_ref, s_ref, sh_ref, o_ref, acc_ref, *, H, W):
    """3x3 conv (9 accumulated matmuls over a padded NHWC tile) + folded BN + ReLU.

    Grid = (B, Cout_tiles, Cin_tiles); Cin tiles are the reduction ("arbitrary") axis.
    """
    k = pl.program_id(2)

    @pl.when(k == 0)
    def _init():
        acc_ref[...] = jnp.zeros_like(acc_ref)

    x = x_ref[...]                                    # (H+2, W+2, tk) bf16
    tk = x.shape[-1]
    acc = jnp.zeros(acc_ref.shape, jnp.float32)
    for t in range(9):
        kh, kw = t // 3, t % 3
        patch = x[kh:kh + H, kw:kw + W, :].reshape(H * W, tk)
        acc = acc + jnp.dot(patch, w_ref[t], preferred_element_type=jnp.float32)
    acc_ref[...] += acc

    @pl.when(k == pl.num_programs(2) - 1)
    def _finalize():
        y = jnp.maximum(acc_ref[...] * s_ref[...] + sh_ref[...], 0.0)
        o_ref[...] = y.reshape(H, W, -1).astype(o_ref.dtype)


def _conv3x3_bn_relu_conv1x1_kernel(x_ref, w2_ref, s_ref, sh_ref, w3_ref, b3_ref,
                                    o_ref, acc_ref, *, H, W):
    """3x3 conv + BN + ReLU with the final 1x1 conv (+bias) fused into the epilogue.

    Grid = (B, Cin_tiles); Cin tiles are the reduction ("arbitrary") axis.
    Output channel dim is pre-padded to a multiple of 128 for lane-dense stores.
    """
    k = pl.program_id(1)

    @pl.when(k == 0)
    def _init():
        acc_ref[...] = jnp.zeros_like(acc_ref)

    x = x_ref[...]                                    # (H+2, W+2, tk) bf16
    tk = x.shape[-1]
    acc = jnp.zeros(acc_ref.shape, jnp.float32)
    for t in range(9):
        kh, kw = t // 3, t % 3
        patch = x[kh:kh + H, kw:kw + W, :].reshape(H * W, tk)
        acc = acc + jnp.dot(patch, w2_ref[t], preferred_element_type=jnp.float32)
    acc_ref[...] += acc

    @pl.when(k == pl.num_programs(1) - 1)
    def _finalize():
        y = jnp.maximum(acc_ref[...] * s_ref[...] + sh_ref[...], 0.0)
        z = jnp.dot(y.astype(jnp.bfloat16), w3_ref[...],
                    preferred_element_type=jnp.float32) + b3_ref[...]
        o_ref[...] = z.reshape(H, W, -1).astype(o_ref.dtype)


def _rows_interp_kernel(x_ref, wh_ref, o_ref):
    # (Hout, H) @ (H, W*C) -> (Hout, W*C): lane-dense output (W*C on lanes).
    o_ref[...] = jnp.dot(wh_ref[...], x_ref[...], preferred_element_type=jnp.float32)


def _cols_interp_kernel(x_ref, wwt_ref, o_ref):
    # (Hout*C, W) @ (W, Wout) -> (Hout*C, Wout): lane-dense output (Wout on lanes).
    o_ref[...] = jnp.dot(x_ref[...], wwt_ref[...], preferred_element_type=jnp.float32)


# ----------------------------- kernel wrappers --------------------------------

def conv3x3_bn_relu(x_nhwc, w_hwio, scale, shift, out_dtype=jnp.bfloat16):
    """Conv2d(Cin, Cout, 3, pad=1, bias folded into BN) + BN + ReLU, NHWC."""
    B, H, W, Cin = x_nhwc.shape
    Cout = w_hwio.shape[-1]
    assert W % 8 == 0, "W must be a multiple of 8 for in-kernel reshapes"

    xp = jnp.pad(x_nhwc.astype(jnp.bfloat16), ((0, 0), (1, 1), (1, 1), (0, 0)))
    w = w_hwio.reshape(9, Cin, Cout).astype(jnp.bfloat16)

    tk = _pick_tile(Cin)
    tn = _pick_tile(Cout)
    Kt, Nt = Cin // tk, Cout // tn

    kernel = functools.partial(_conv3x3_bn_relu_kernel, H=H, W=W)
    cost = pl.CostEstimate(
        flops=int(2 * B * H * W * 9 * Cin * Cout),
        transcendentals=0,
        bytes_accessed=int(xp.size * 2 * Nt + w.size * 2 * B + B * H * W * Cout * 2))

    return pl.pallas_call(
        kernel,
        out_shape=jax.ShapeDtypeStruct((B, H, W, Cout), out_dtype),
        grid=(B, Nt, Kt),
        in_specs=[
            pl.BlockSpec((None, H + 2, W + 2, tk), lambda b, n, k: (b, 0, 0, k)),
            pl.BlockSpec((9, tk, tn), lambda b, n, k: (0, k, n)),
            pl.BlockSpec((1, tn), lambda b, n, k: (0, n)),
            pl.BlockSpec((1, tn), lambda b, n, k: (0, n)),
        ],
        out_specs=pl.BlockSpec((None, H, W, tn), lambda b, n, k: (b, 0, 0, n)),
        scratch_shapes=[pltpu.VMEM((H * W, tn), jnp.float32)],
        compiler_params=pltpu.CompilerParams(
            dimension_semantics=("parallel", "parallel", "arbitrary"),
            vmem_limit_bytes=_VMEM_LIMIT),
        cost_estimate=cost,
    )(xp, w, scale, shift)


def conv3x3_bn_relu_then_1x1(x_nhwc, w2_hwio, scale, shift, w3, b3, num_classes):
    """Conv2d(C, C, 3, pad=1) + BN + ReLU, then fused Conv2d(C, num_classes, 1)+bias."""
    B, H, W, Cmid = x_nhwc.shape
    assert W % 8 == 0, "W must be a multiple of 8 for in-kernel reshapes"
    Npad = _round_up(max(num_classes, 128), 128)

    xp = jnp.pad(x_nhwc.astype(jnp.bfloat16), ((0, 0), (1, 1), (1, 1), (0, 0)))
    w2 = w2_hwio.reshape(9, Cmid, Cmid).astype(jnp.bfloat16)
    w3p = jnp.zeros((Cmid, Npad), jnp.bfloat16).at[:, :num_classes].set(
        w3.astype(jnp.bfloat16))
    b3p = jnp.zeros((1, Npad), jnp.float32).at[:, :num_classes].set(
        b3.reshape(1, -1).astype(jnp.float32))

    tk = 128 if (Cmid % 128 == 0 and Cmid > 128) else Cmid
    Kt = Cmid // tk

    kernel = functools.partial(_conv3x3_bn_relu_conv1x1_kernel, H=H, W=W)
    cost = pl.CostEstimate(
        flops=int(2 * B * H * W * (9 * Cmid * Cmid + Cmid * Npad)),
        transcendentals=0,
        bytes_accessed=int(xp.size * 2 + w2.size * 2 * B + B * H * W * Npad * 4))

    return pl.pallas_call(
        kernel,
        out_shape=jax.ShapeDtypeStruct((B, H, W, Npad), jnp.float32),
        grid=(B, Kt),
        in_specs=[
            pl.BlockSpec((None, H + 2, W + 2, tk), lambda b, k: (b, 0, 0, k)),
            pl.BlockSpec((9, tk, Cmid), lambda b, k: (0, k, 0)),
            pl.BlockSpec((1, Cmid), lambda b, k: (0, 0)),
            pl.BlockSpec((1, Cmid), lambda b, k: (0, 0)),
            pl.BlockSpec((Cmid, Npad), lambda b, k: (0, 0)),
            pl.BlockSpec((1, Npad), lambda b, k: (0, 0)),
        ],
        out_specs=pl.BlockSpec((None, H, W, Npad), lambda b, k: (b, 0, 0, 0)),
        scratch_shapes=[pltpu.VMEM((H * W, Cmid), jnp.float32)],
        compiler_params=pltpu.CompilerParams(
            dimension_semantics=("parallel", "arbitrary"),
            vmem_limit_bytes=_VMEM_LIMIT),
        cost_estimate=cost,
    )(xp, w2, scale, shift, w3p, b3p)


def bilinear_upsample_nhwc(y_nhwc, Hout, Wout):
    """Bilinear (align_corners=True) upsample of (B, H, W, C) f32 -> (B, C, Hout, Wout)."""
    B, H, W, C = y_nhwc.shape
    Wh = align_corners_matrix(Hout, H)             # (Hout, H)
    WwT = align_corners_matrix(Wout, W).T          # (W, Wout)

    # Pass 1: contract over H; channels stay folded with W on the lane axis.
    x1 = y_nhwc.reshape(B, H, W * C)
    t1 = pl.pallas_call(
        _rows_interp_kernel,
        out_shape=jax.ShapeDtypeStruct((B, Hout, W * C), jnp.float32),
        grid=(B,),
        in_specs=[pl.BlockSpec((None, H, W * C), lambda b: (b, 0, 0)),
                  pl.BlockSpec((Hout, H), lambda b: (0, 0))],
        out_specs=pl.BlockSpec((None, Hout, W * C), lambda b: (b, 0, 0)),
        compiler_params=pltpu.CompilerParams(
            dimension_semantics=("parallel",), vmem_limit_bytes=_VMEM_LIMIT),
    )(x1, Wh)

    # Pass 2: contract over W with (Hout*C) rows so the output stays lane-dense in Wout.
    x2 = t1.reshape(B, Hout, W, C).transpose(0, 1, 3, 2).reshape(B, Hout * C, W)
    t2 = pl.pallas_call(
        _cols_interp_kernel,
        out_shape=jax.ShapeDtypeStruct((B, Hout * C, Wout), jnp.float32),
        grid=(B,),
        in_specs=[pl.BlockSpec((None, Hout * C, W), lambda b: (b, 0, 0)),
                  pl.BlockSpec((W, Wout), lambda b: (0, 0))],
        out_specs=pl.BlockSpec((None, Hout * C, Wout), lambda b: (b, 0, 0)),
        compiler_params=pltpu.CompilerParams(
            dimension_semantics=("parallel",), vmem_limit_bytes=_VMEM_LIMIT),
    )(x2, WwT)

    return t2.reshape(B, Hout, C, Wout).transpose(0, 2, 1, 3)   # NCHW


# ----------------------------- parameters & forward ---------------------------

def init_params(key, in_channels, num_classes, mid=256):
    ks = jax.random.split(key, 13)
    nrm = lambda k, shape, s=0.05: (jax.random.normal(k, shape, jnp.float32) * s)
    return dict(
        w1=nrm(ks[0], (3, 3, in_channels, mid)),          # HWIO, no bias
        bn1_gamma=1.0 + nrm(ks[1], (mid,)),
        bn1_beta=nrm(ks[2], (mid,)),
        bn1_mean=nrm(ks[3], (mid,)),
        bn1_var=jnp.abs(1.0 + nrm(ks[4], (mid,))),
        w2=nrm(ks[5], (3, 3, mid, mid)),                  # HWIO, with bias
        b2=nrm(ks[6], (mid,)),
        bn2_gamma=1.0 + nrm(ks[7], (mid,)),
        bn2_beta=nrm(ks[8], (mid,)),
        bn2_mean=nrm(ks[9], (mid,)),
        bn2_var=jnp.abs(1.0 + nrm(ks[10], (mid,))),
        w3=nrm(ks[11], (mid, num_classes)),               # 1x1 conv as matmul
        b3=nrm(ks[12], (num_classes,)),
    )


def fcn_forward(inputs, params, output_stride):
    x = inputs[1]                                          # NCHW, like the PyTorch module
    B, Cin, H, W = x.shape
    x_nhwc = jnp.transpose(x, (0, 2, 3, 1))
    num_classes = params['w3'].shape[-1]

    # Conv2d(Cin, 256, 3, pad=1, bias=False) + BN + ReLU   (Dropout(0.5) -> identity)
    s1, sh1 = fold_bn(params['bn1_gamma'], params['bn1_beta'],
                      params['bn1_mean'], params['bn1_var'])
    y1 = conv3x3_bn_relu(x_nhwc, params['w1'], s1, sh1)    # (B,H,W,mid) bf16

    # Conv2d(256, 256, 3, pad=1) + BN + ReLU  (Dropout(0.1) -> identity)
    # + fused Conv2d(256, num_classes, 1) with channel dim padded to 128 lanes.
    s2, sh2 = fold_bn(params['bn2_gamma'], params['bn2_beta'],
                      params['bn2_mean'], params['bn2_var'],
                      conv_bias=params['b2'])
    y3p = conv3x3_bn_relu_then_1x1(y1, params['w2'], s2, sh2,
                                   params['w3'], params['b3'],
                                   num_classes=num_classes)  # (B,H,W,Npad) f32
    y3 = y3p[..., :num_classes]

    # F.interpolate(scale_factor=output_stride/2, mode='bilinear', align_corners=True)
    scale = output_stride / 2
    Hout, Wout = int(H * scale), int(W * scale)
    return bilinear_upsample_nhwc(y3, Hout, Wout)            # (B, num_classes, Hout, Wout)


# ----------------------------- main -------------------------------------------

if __name__ == "__main__":
    key = jax.random.PRNGKey(0)
    k0, k1, kp = jax.random.split(key, 3)

    B, Cin, H, W = 2, 4, 16, 16
    output_stride = 8          # -> scale_factor 4.0
    num_classes = 8

    # forward uses inputs[1]; inputs[0] is an unused earlier feature map
    x0 = jax.random.normal(k0, (B, Cin, 2 * H, 2 * W), jnp.float32)
    x1 = jax.random.normal(k1, (B, Cin, H, W), jnp.float32)
    params = init_params(kp, Cin, num_classes)

    out = fcn_forward((x0, x1), params, output_stride)
    out = jax.block_until_ready(out)

    Hout = int(H * output_stride / 2)
    Wout = int(W * output_stride / 2)
    assert out.shape == (B, num_classes, Hout, Wout), out.shape
    assert bool(jnp.all(jnp.isfinite(out)))
    print("KERNEL_OK")
</pallas_src>

<mosaic_0001>
module attributes {stable_mosaic.version = 11 : i64} {
  func.func @_conv3x3_bn_relu_kernel(%arg0: i32, %arg1: i32, %arg2: i32, %arg3: memref<1x18x18x4xbf16, #tpu.memory_space<vmem>>, %arg4: memref<9x4x256xbf16, #tpu.memory_space<vmem>>, %arg5: memref<1x256xf32, #tpu.memory_space<vmem>>, %arg6: memref<1x256xf32, #tpu.memory_space<vmem>>, %arg7: memref<1x16x16x256xbf16, #tpu.memory_space<vmem>>, %arg8: memref<256x256xf32, #tpu.memory_space<vmem>>) attributes {dimension_semantics = [#tpu.dimension_semantics<parallel>, #tpu.dimension_semantics<parallel>, #tpu.dimension_semantics<arbitrary>], iteration_bounds = array<i64: 2, 1, 1>, scalar_prefetch = 0 : i64, scratch_operands = 1 : i64, tpu.core_type = #tpu.core_type<tc>, window_params = [{transform_indices = @transform_0, window_bounds = array<i64: 1, 18, 18, 4>}, {transform_indices = @transform_1, window_bounds = array<i64: 9, 4, 256>}, {transform_indices = @transform_2, window_bounds = array<i64: 1, 256>}, {transform_indices = @transform_3, window_bounds = array<i64: 1, 256>}, {transform_indices = @transform_4, window_bounds = array<i64: 1, 16, 16, 256>}]} {
    %c0_i32 = arith.constant 0 : i32
    %0 = arith.cmpi eq, %arg2, %c0_i32 : i32
    %1 = arith.extui %0 : i1 to i32
    %c0_i32_0 = arith.constant 0 : i32
    %2 = arith.cmpi ne, %1, %c0_i32_0 : i32
    scf.if %2 {
      %cst_38 = arith.constant 0.000000e+00 : f32
      %66 = vector.broadcast %cst_38 : f32 to vector<256x256xf32>
      %c0_39 = arith.constant 0 : index
      %c0_40 = arith.constant 0 : index
      %67 = vector.load %arg8[%c0_39, %c0_40] : memref<256x256xf32, #tpu.memory_space<vmem>>, vector<256x256xf32>
      tpu.vector_store %arg8[%c0_39, %c0_40], %66 {strides = array<i32>} : memref<256x256xf32, #tpu.memory_space<vmem>>, vector<256x256xf32>,
    } else {
    }
    %c0 = arith.constant 0 : index
    %c0_1 = arith.constant 0 : index
    %c0_2 = arith.constant 0 : index
    %c0_3 = arith.constant 0 : index
    %3 = vector.load %arg3[%c0, %c0_1, %c0_2, %c0_3] : memref<1x18x18x4xbf16, #tpu.memory_space<vmem>>, vector<1x18x18x4xbf16>
    %4 = vector.shape_cast %3 : vector<1x18x18x4xbf16> to vector<18x18x4xbf16>
    %cst = arith.constant 0.000000e+00 : f32
    %5 = vector.broadcast %cst : f32 to vector<256x256xf32>
    %6 = vector.extract_strided_slice %4 {offsets = [0, 0, 0], sizes = [16, 16, 4], strides = [1, 1, 1]} : vector<18x18x4xbf16> to vector<16x16x4xbf16>
    %7 = vector.shape_cast %6 : vector<16x16x4xbf16> to vector<256x4xbf16>
    %c0_4 = arith.constant 0 : index
    %c0_5 = arith.constant 0 : index
    %c0_6 = arith.constant 0 : index
    %8 = vector.load %arg4[%c0_4, %c0_5, %c0_6] : memref<9x4x256xbf16, #tpu.memory_space<vmem>>, vector<1x4x256xbf16>
    %9 = vector.shape_cast %8 : vector<1x4x256xbf16> to vector<4x256xbf16>
    %cst_7 = arith.constant dense<0.000000e+00> : vector<256x256xf32>
    %10 = tpu.matmul %7, %9, %cst_7 {dimension_numbers = #tpu.dot_dimension_numbers<[1], [0], [0], [1], [0, 0, 1, 1], [], []>} : vector<256x4xbf16>, vector<4x256xbf16>, vector<256x256xf32> -> vector<256x256xf32>
    %11 = arith.addf %5, %10 : vector<256x256xf32>
    %12 = vector.extract_strided_slice %4 {offsets = [0, 1, 0], sizes = [16, 16, 4], strides = [1, 1, 1]} : vector<18x18x4xbf16> to vector<16x16x4xbf16>
    %13 = vector.shape_cast %12 : vector<16x16x4xbf16> to vector<256x4xbf16>
    %c1 = arith.constant 1 : index
    %c0_8 = arith.constant 0 : index
    %c0_9 = arith.constant 0 : index
    %14 = vector.load %arg4[%c1, %c0_8, %c0_9] : memref<9x4x256xbf16, #tpu.memory_space<vmem>>, vector<1x4x256xbf16>
    %15 = vector.shape_cast %14 : vector<1x4x256xbf16> to vector<4x256xbf16>
    %cst_10 = arith.constant dense<0.000000e+00> : vector<256x256xf32>
    %16 = tpu.matmul %13, %15, %cst_10 {dimension_numbers = #tpu.dot_dimension_numbers<[1], [0], [0], [1], [0, 0, 1, 1], [], []>} : vector<256x4xbf16>, vector<4x256xbf16>, vector<256x256xf32> -> vector<256x256xf32>
    %17 = arith.addf %11, %16 : vector<256x256xf32>
    %18 = vector.extract_strided_slice %4 {offsets = [0, 2, 0], sizes = [16, 16, 4], strides = [1, 1, 1]} : vector<18x18x4xbf16> to vector<16x16x4xbf16>
    %19 = vector.shape_cast %18 : vector<16x16x4xbf16> to vector<256x4xbf16>
    %c2 = arith.constant 2 : index
    %c0_11 = arith.constant 0 : index
    %c0_12 = arith.constant 0 : index
    %20 = vector.load %arg4[%c2, %c0_11, %c0_12] : memref<9x4x256xbf16, #tpu.memory_space<vmem>>, vector<1x4x256xbf16>
    %21 = vector.shape_cast %20 : vector<1x4x256xbf16> to vector<4x256xbf16>
    %cst_13 = arith.constant dense<0.000000e+00> : vector<256x256xf32>
    %22 = tpu.matmul %19, %21, %cst_13 {dimension_numbers = #tpu.dot_dimension_numbers<[1], [0], [0], [1], [0, 0, 1, 1], [], []>} : vector<256x4xbf16>, vector<4x256xbf16>, vector<256x256xf32> -> vector<256x256xf32>
    %23 = arith.addf %17, %22 : vector<256x256xf32>
    %24 = vector.extract_strided_slice %4 {offsets = [1, 0, 0], sizes = [16, 16, 4], strides = [1, 1, 1]} : vector<18x18x4xbf16> to vector<16x16x4xbf16>
    %25 = vector.shape_cast %24 : vector<16x16x4xbf16> to vector<256x4xbf16>
    %c3 = arith.constant 3 : index
    %c0_14 = arith.constant 0 : index
    %c0_15 = arith.constant 0 : index
    %26 = vector.load %arg4[%c3, %c0_14, %c0_15] : memref<9x4x256xbf16, #tpu.memory_space<vmem>>, vector<1x4x256xbf16>
    %27 = vector.shape_cast %26 : vector<1x4x256xbf16> to vector<4x256xbf16>
    %cst_16 = arith.constant dense<0.000000e+00> : vector<256x256xf32>
    %28 = tpu.matmul %25, %27, %cst_16 {dimension_numbers = #tpu.dot_dimension_numbers<[1], [0], [0], [1], [0, 0, 1, 1], [], []>} : vector<256x4xbf16>, vector<4x256xbf16>, vector<256x256xf32> -> vector<256x256xf32>
    %29 = arith.addf %23, %28 : vector<256x256xf32>
    %30 = vector.extract_strided_slice %4 {offsets = [1, 1, 0], sizes = [16, 16, 4], strides = [1, 1, 1]} : vector<18x18x4xbf16> to vector<16x16x4xbf16>
    %31 = vector.shape_cast %30 : vector<16x16x4xbf16> to vector<256x4xbf16>
    %c4 = arith.constant 4 : index
    %c0_17 = arith.constant 0 : index
    %c0_18 = arith.constant 0 : index
    %32 = vector.load %arg4[%c4, %c0_17, %c0_18] : memref<9x4x256xbf16, #tpu.memory_space<vmem>>, vector<1x4x256xbf16>
    %33 = vector.shape_cast %32 : vector<1x4x256xbf16> to vector<4x256xbf16>
    %cst_19 = arith.constant dense<0.000000e+00> : vector<256x256xf32>
    %34 = tpu.matmul %31, %33, %cst_19 {dimension_numbers = #tpu.dot_dimension_numbers<[1], [0], [0], [1], [0, 0, 1, 1], [], []>} : vector<256x4xbf16>, vector<4x256xbf16>, vector<256x256xf32> -> vector<256x256xf32>
    %35 = arith.addf %29, %34 : vector<256x256xf32>
    %36 = vector.extract_strided_slice %4 {offsets = [1, 2, 0], sizes = [16, 16, 4], strides = [1, 1, 1]} : vector<18x18x4xbf16> to vector<16x16x4xbf16>
    %37 = vector.shape_cast %36 : vector<16x16x4xbf16> to vector<256x4xbf16>
    %c5 = arith.constant 5 : index
    %c0_20 = arith.constant 0 : index
    %c0_21 = arith.constant 0 : index
    %38 = vector.load %arg4[%c5, %c0_20, %c0_21] : memref<9x4x256xbf16, #tpu.memory_space<vmem>>, vector<1x4x256xbf16>
    %39 = vector.shape_cast %38 : vector<1x4x256xbf16> to vector<4x256xbf16>
    %cst_22 = arith.constant dense<0.000000e+00> : vector<256x256xf32>
    %40 = tpu.matmul %37, %39, %cst_22 {dimension_numbers = #tpu.dot_dimension_numbers<[1], [0], [0], [1], [0, 0, 1, 1], [], []>} : vector<256x4xbf16>, vector<4x256xbf16>, vector<256x256xf32> -> vector<256x256xf32>
    %41 = arith.addf %35, %40 : vector<256x256xf32>
    %42 = vector.extract_strided_slice %4 {offsets = [2, 0, 0], sizes = [16, 16, 4], strides = [1, 1, 1]} : vector<18x18x4xbf16> to vector<16x16x4xbf16>
    %43 = vector.shape_cast %42 : vector<16x16x4xbf16> to vector<256x4xbf16>
    %c6 = arith.constant 6 : index
    %c0_23 = arith.constant 0 : index
    %c0_24 = arith.constant 0 : index
    %44 = vector.load %arg4[%c6, %c0_23, %c0_24] : memref<9x4x256xbf16, #tpu.memory_space<vmem>>, vector<1x4x256xbf16>
    %45 = vector.shape_cast %44 : vector<1x4x256xbf16> to vector<4x256xbf16>
    %cst_25 = arith.constant dense<0.000000e+00> : vector<256x256xf32>
    %46 = tpu.matmul %43, %45, %cst_25 {dimension_numbers = #tpu.dot_dimension_numbers<[1], [0], [0], [1], [0, 0, 1, 1], [], []>} : vector<256x4xbf16>, vector<4x256xbf16>, vector<256x256xf32> -> vector<256x256xf32>
    %47 = arith.addf %41, %46 : vector<256x256xf32>
    %48 = vector.extract_strided_slice %4 {offsets = [2, 1, 0], sizes = [16, 16, 4], strides = [1, 1, 1]} : vector<18x18x4xbf16> to vector<16x16x4xbf16>
    %49 = vector.shape_cast %48 : vector<16x16x4xbf16> to vector<256x4xbf16>
    %c7 = arith.constant 7 : index
    %c0_26 = arith.constant 0 : index
    %c0_27 = arith.constant 0 : index
    %50 = vector.load %arg4[%c7, %c0_26, %c0_27] : memref<9x4x256xbf16, #tpu.memory_space<vmem>>, vector<1x4x256xbf16>
    %51 = vector.shape_cast %50 : vector<1x4x256xbf16> to vector<4x256xbf16>
    %cst_28 = arith.constant dense<0.000000e+00> : vector<256x256xf32>
    %52 = tpu.matmul %49, %51, %cst_28 {dimension_numbers = #tpu.dot_dimension_numbers<[1], [0], [0], [1], [0, 0, 1, 1], [], []>} : vector<256x4xbf16>, vector<4x256xbf16>, vector<256x256xf32> -> vector<256x256xf32>
    %53 = arith.addf %47, %52 : vector<256x256xf32>
    %54 = vector.extract_strided_slice %4 {offsets = [2, 2, 0], sizes = [16, 16, 4], strides = [1, 1, 1]} : vector<18x18x4xbf16> to vector<16x16x4xbf16>
    %55 = vector.shape_cast %54 : vector<16x16x4xbf16> to vector<256x4xbf16>
    %c8 = arith.constant 8 : index
    %c0_29 = arith.constant 0 : index
    %c0_30 = arith.constant 0 : index
    %56 = vector.load %arg4[%c8, %c0_29, %c0_30] : memref<9x4x256xbf16, #tpu.memory_space<vmem>>, vector<1x4x256xbf16>
    %57 = vector.shape_cast %56 : vector<1x4x256xbf16> to vector<4x256xbf16>
    %cst_31 = arith.constant dense<0.000000e+00> : vector<256x256xf32>
    %58 = tpu.matmul %55, %57, %cst_31 {dimension_numbers = #tpu.dot_dimension_numbers<[1], [0], [0], [1], [0, 0, 1, 1], [], []>} : vector<256x4xbf16>, vector<4x256xbf16>, vector<256x256xf32> -> vector<256x256xf32>
    %59 = arith.addf %53, %58 : vector<256x256xf32>
    %c0_32 = arith.constant 0 : index
    %c0_33 = arith.constant 0 : index
    %60 = vector.load %arg8[%c0_32, %c0_33] : memref<256x256xf32, #tpu.memory_space<vmem>>, vector<256x256xf32>
    %61 = arith.addf %60, %59 : vector<256x256xf32>
    %c0_34 = arith.constant 0 : index
    %c0_35 = arith.constant 0 : index
    %62 = vector.load %arg8[%c0_34, %c0_35] : memref<256x256xf32, #tpu.memory_space<vmem>>, vector<256x256xf32>
    tpu.vector_store %arg8[%c0_34, %c0_35], %61 {strides = array<i32>} : memref<256x256xf32, #tpu.memory_space<vmem>>, vector<256x256xf32>,
    %c0_i32_36 = arith.constant 0 : i32
    %63 = arith.cmpi eq, %arg2, %c0_i32_36 : i32
    %64 = arith.extui %63 : i1 to i32
    %c0_i32_37 = arith.constant 0 : i32
    %65 = arith.cmpi ne, %64, %c0_i32_37 : i32
    scf.if %65 {
      %c0_38 = arith.constant 0 : index
      %c0_39 = arith.constant 0 : index
      %66 = vector.load %arg8[%c0_38, %c0_39] : memref<256x256xf32, #tpu.memory_space<vmem>>, vector<256x256xf32>
      %c0_40 = arith.constant 0 : index
      %c0_41 = arith.constant 0 : index
      %67 = vector.load %arg5[%c0_40, %c0_41] : memref<1x256xf32, #tpu.memory_space<vmem>>, vector<1x256xf32>
      %68 = vector.broadcast %67 : vector<1x256xf32> to vector<256x256xf32>
      %69 = arith.mulf %66, %68 : vector<256x256xf32>
      %c0_42 = arith.constant 0 : index
      %c0_43 = arith.constant 0 : index
      %70 = vector.load %arg6[%c0_42, %c0_43] : memref<1x256xf32, #tpu.memory_space<vmem>>, vector<1x256xf32>
      %71 = vector.broadcast %70 : vector<1x256xf32> to vector<256x256xf32>
      %72 = arith.addf %69, %71 : vector<256x256xf32>
      %cst_44 = arith.constant 0.000000e+00 : f32
      %73 = vector.broadcast %cst_44 : f32 to vector<256x256xf32>
      %74 = arith.maximumf %72, %73 : vector<256x256xf32>
      %75 = vector.shape_cast %74 : vector<256x256xf32> to vector<16x16x256xf32>
      %76 = arith.truncf %75 : vector<16x16x256xf32> to vector<16x16x256xbf16>
      %c0_45 = arith.constant 0 : index
      %c0_46 = arith.constant 0 : index
      %c0_47 = arith.constant 0 : index
      %c0_48 = arith.constant 0 : index
      %77 = vector.load %arg7[%c0_45, %c0_46, %c0_47, %c0_48] : memref<1x16x16x256xbf16, #tpu.memory_space<vmem>>, vector<1x16x16x256xbf16>
      %78 = vector.shape_cast %77 : vector<1x16x16x256xbf16> to vector<16x16x256xbf16>
      %79 = vector.shape_cast %76 : vector<16x16x256xbf16> to vector<1x16x16x256xbf16>
      tpu.vector_store %arg7[%c0_45, %c0_46, %c0_47, %c0_48], %79 {strides = array<i32>} : memref<1x16x16x256xbf16, #tpu.memory_space<vmem>>, vector<1x16x16x256xbf16>,
    } else {
    }
    return
  }
  func.func @transform_0(%arg0: i32, %arg1: i32, %arg2: i32) -> (i32, i32, i32, i32) {
    %c0_i32 = arith.constant 0 : i32
    %c0_i32_0 = arith.constant 0 : i32
    %c0_i32_1 = arith.constant 0 : i32
    return %arg0, %c0_i32, %c0_i32_0, %arg2 : i32, i32, i32, i32
  }
  func.func @transform_1(%arg0: i32, %arg1: i32, %arg2: i32) -> (i32, i32, i32) {
    %c0_i32 = arith.constant 0 : i32
    %c0_i32_0 = arith.constant 0 : i32
    return %c0_i32, %arg2, %arg1 : i32, i32, i32
  }
  func.func @transform_2(%arg0: i32, %arg1: i32, %arg2: i32) -> (i32, i32) {
    %c0_i32 = arith.constant 0 : i32
    %c0_i32_0 = arith.constant 0 : i32
    return %c0_i32, %arg1 : i32, i32
  }
  func.func @transform_3(%arg0: i32, %arg1: i32, %arg2: i32) -> (i32, i32) {
    %c0_i32 = arith.constant 0 : i32
    %c0_i32_0 = arith.constant 0 : i32
    return %c0_i32, %arg1 : i32, i32
  }
  func.func @transform_4(%arg0: i32, %arg1: i32, %arg2: i32) -> (i32, i32, i32, i32) {
    %c0_i32 = arith.constant 0 : i32
    %c0_i32_0 = arith.constant 0 : i32
    %c0_i32_1 = arith.constant 0 : i32
    return %arg0, %c0_i32, %c0_i32_0, %arg1 : i32, i32, i32, i32
  }
}

</mosaic_0001>

<llo_original>
// kernel: tpu_custom_call.1
$region0: #{tpu_custom_call.1}
  #allocation0 [shape = 'u32[]', space=smem, size = 0x4, offset = 0x4, fixed_abs, tag = 'smem constant byte address 0x4 - core index']
  #allocation1 [shape = 'u32[72,128]{1,0:T(1,128)}', space=vmem, size = 0x9000, scoped, tag = 'internal scratch']
  #allocation2 [shape = 'f32[256,256]{1,0:T(8,128)}', space=vmem, size = 0x40000, scoped, tag = 'scratch operand']
  %s0 = inlined_call_operand.vmem [shape: bf16[2,18,18,4], index: 0, kind: input, shape index: {}]
  %s1 = inlined_call_operand.vmem [shape: bf16[9,4,256], index: 1, kind: input, shape index: {}]
  %s2 = inlined_call_operand.vmem [shape: f32[1,256], index: 2, kind: input, shape index: {}]
  %s3 = inlined_call_operand.vmem [shape: f32[1,256], index: 3, kind: input, shape index: {}]
  %s4 = inlined_call_operand.hbm [shape: bf16[2,16,16,256], index: 4, kind: output, shape index: {}]
  %s5 = sld [smem:[#allocation0]]
  $region57: #{tpu_custom_call.1} parent=0
    _
  %s7 = ssub.s32 1, %s5
  %s8 = scalar_select 0, %s7, %s5
  $region1: #{tpu_custom_call.1} parent=0
    #allocation3 [shape = 'u8[262144]{0}', space=vmem, size = 0x40000, scoped, tag = 'output window, operand 0']
    #allocation4 [shape = 's32[2]{0}', space=sflag, size = 0x8, scoped, tag = 'scoped memory for tpu_custom_call.1']
    %9 = vsyncpa [#allocation4], 0
    %s10 = scalar_lea.sflag [#allocation4], 1
    %11 = vsyncpa %s10, 0
    loop: start=0, step=1, limit=4
    $region2: #{tpu_custom_call.1} parent=1 // loop_pre_header
      _
    $region3: #{tpu_custom_call.1} parent=1 // loop_header
      %s13 = sphi 0, %s17
      %p14 = scmp.ge.s32.totalorder %s13, 4
      %s20 = sphi 0, %s39
      %s21 = sphi 0, %s35
      %s22 = sphi 0, %s31
      %s23 = sphi 0, %s20
      %s24 = sphi 0, %s21
      %s25 = sphi 0, %s22
      %s26 = sphi 0, %s23
      %s27 = sphi 0, %s24
      %s28 = sphi 0, %s25
      %s44 = sphi 0, %s46
      %s47 = sphi 0, %s44
      %s48 = sphi 0, %s47
      %s64 = sphi 0, %s48
      %s72 = sphi 0, %s74
      %s75 = sphi 0, %s72
      %s76 = sphi 0, %s75
      %s92 = sphi 0, %s76
      %s98 = sphi 0, %s100
      %s101 = sphi 0, %s98
      %s102 = sphi 0, %s101
      %s118 = sphi 0, %s102
      %s124 = sphi 0, %s126
      %s127 = sphi 0, %s124
      %s128 = sphi 0, %s127
      %s144 = sphi 0, %s128
      %s152 = sphi 0, %s154
      %s155 = sphi 0, %s152
      %s156 = sphi 0, %s155
      %s172 = sphi 0, %s156
    $region4: #{tpu_custom_call.1} parent=1 // loop_header_branch
      %16 = sbr.rel (%p14) target = $region8
    $region5: #{tpu_custom_call.1} parent=1 // loop_body
      %s18 = ssub.s32 %s13, 1
      %s19 = ssub.s32 %s13, 2
      %s29 = sadd.s32 1, %s22
      %p30 = scmp.ge.s32.totalorder %s29, 1
      %s31 = scalar_select %p30, 0, %s29
      %s32 = sadd.s32 1, %s21
      %s33 = scalar_select %p30, %s32, %s21
      %p34 = scmp.ge.s32.totalorder %s33, 1
      %s35 = scalar_select %p34, 0, %s33
      %s36 = sadd.s32 1, %s20
      %s37 = scalar_select %p34, %s36, %s20
      %p38 = scmp.ge.s32.totalorder %s37, 2
      %s39 = scalar_select %p38, 0, %s37
      %s40 = ssub.s32 %s20, %s39
      %s41 = ssub.s32 %s22, %s31
      %s42 = sor.u32 %s40, %s41
      %p43 = scmp.eq.s32.totalorder %s42, 0
      %s45 = sadd.s32 %s44, 1
      %s46 = scalar_select %p43, %s44, %s45
      %p49 = pneg %p43
      %p50 = scmp.eq.s32.totalorder %s13, 1
      %p51 = por %p49, %p50
      %p52 = scmp.ne.s32.totalorder %s44, %s47
      %p53 = scmp.eq.s32.totalorder %s13, 0
      %p54 = por %p52, %p53
      %p55 = scmp.ne.s32.totalorder %s44, %s47
      %p56 = scmp.eq.s32.totalorder %s18, 1
      %p57 = por %p55, %p56
      %p58 = scmp.ne.s32.totalorder %s47, %s48
      %p59 = scmp.eq.s32.totalorder %s18, 0
      %p60 = por %p58, %p59
      %p61 = scmp.ne.s32.totalorder %s47, %s48
      %p62 = scmp.eq.s32.totalorder %s19, 1
      %p63 = por %p61, %p62
      %p65 = scmp.ne.s32.totalorder %s48, %s64
      %p66 = scmp.eq.s32.totalorder %s19, 0
      %p67 = por %p65, %p66
      %s68 = ssub.s32 %s22, %s31
      %s69 = ssub.s32 %s21, %s35
      %s70 = sor.u32 %s68, %s69
      %p71 = scmp.eq.s32.totalorder %s70, 0
      %s73 = sadd.s32 %s72, 1
      %s74 = scalar_select %p71, %s72, %s73
      %p77 = pneg %p71
      %p78 = scmp.eq.s32.totalorder %s13, 1
      %p79 = por %p77, %p78
      %p80 = scmp.ne.s32.totalorder %s72, %s75
      %p81 = scmp.eq.s32.totalorder %s13, 0
      %p82 = por %p80, %p81
      %p83 = scmp.ne.s32.totalorder %s72, %s75
      %p84 = scmp.eq.s32.totalorder %s18, 1
      %p85 = por %p83, %p84
      %p86 = scmp.ne.s32.totalorder %s75, %s76
      %p87 = scmp.eq.s32.totalorder %s18, 0
      %p88 = por %p86, %p87
      %p89 = scmp.ne.s32.totalorder %s75, %s76
      %p90 = scmp.eq.s32.totalorder %s19, 1
      %p91 = por %p89, %p90
      %p93 = scmp.ne.s32.totalorder %s76, %s92
      %p94 = scmp.eq.s32.totalorder %s19, 0
      %p95 = por %p93, %p94
      %s96 = ssub.s32 %s21, %s35
      %p97 = scmp.eq.s32.totalorder %s96, 0
      %s99 = sadd.s32 %s98, 1
      %s100 = scalar_select %p97, %s98, %s99
      %p103 = pneg %p97
      %p104 = scmp.eq.s32.totalorder %s13, 1
      %p105 = por %p103, %p104
      %p106 = scmp.ne.s32.totalorder %s98, %s101
      %p107 = scmp.eq.s32.totalorder %s13, 0
      %p108 = por %p106, %p107
      %p109 = scmp.ne.s32.totalorder %s98, %s101
      %p110 = scmp.eq.s32.totalorder %s18, 1
      %p111 = por %p109, %p110
      %p112 = scmp.ne.s32.totalorder %s101, %s102
      %p113 = scmp.eq.s32.totalorder %s18, 0
      %p114 = por %p112, %p113
      %p115 = scmp.ne.s32.totalorder %s101, %s102
      %p116 = scmp.eq.s32.totalorder %s19, 1
      %p117 = por %p115, %p116
      %p119 = scmp.ne.s32.totalorder %s102, %s118
      %p120 = scmp.eq.s32.totalorder %s19, 0
      %p121 = por %p119, %p120
      %s122 = ssub.s32 %s21, %s35
      %p123 = scmp.eq.s32.totalorder %s122, 0
      %s125 = sadd.s32 %s124, 1
      %s126 = scalar_select %p123, %s124, %s125
      %p129 = pneg %p123
      %p130 = scmp.eq.s32.totalorder %s13, 1
      %p131 = por %p129, %p130
      %p132 = scmp.ne.s32.totalorder %s124, %s127
      %p133 = scmp.eq.s32.totalorder %s13, 0
      %p134 = por %p132, %p133
      %p135 = scmp.ne.s32.totalorder %s124, %s127
      %p136 = scmp.eq.s32.totalorder %s18, 1
      %p137 = por %p135, %p136
      %p138 = scmp.ne.s32.totalorder %s127, %s128
      %p139 = scmp.eq.s32.totalorder %s18, 0
      %p140 = por %p138, %p139
      %p141 = scmp.ne.s32.totalorder %s127, %s128
      %p142 = scmp.eq.s32.totalorder %s19, 1
      %p143 = por %p141, %p142
      %p145 = scmp.ne.s32.totalorder %s128, %s144
      %p146 = scmp.eq.s32.totalorder %s19, 0
      %p147 = por %p145, %p146
      %s148 = ssub.s32 %s20, %s39
      %s149 = ssub.s32 %s21, %s35
      %s150 = sor.u32 %s148, %s149
      %p151 = scmp.eq.s32.totalorder %s150, 0
      %s153 = sadd.s32 %s152, 1
      %s154 = scalar_select %p151, %s152, %s153
      %p157 = pneg %p151
      %p158 = scmp.eq.s32.totalorder %s13, 1
      %p159 = por %p157, %p158
      %p160 = scmp.ne.s32.totalorder %s152, %s155
      %p161 = scmp.eq.s32.totalorder %s13, 0
      %p162 = por %p160, %p161
      %p163 = scmp.ne.s32.totalorder %s152, %s155
      %p164 = scmp.eq.s32.totalorder %s18, 1
      %p165 = por %p163, %p164
      %p166 = scmp.ne.s32.totalorder %s155, %s156
      %p167 = scmp.eq.s32.totalorder %s18, 0
      %p168 = por %p166, %p167
      %p169 = scmp.ne.s32.totalorder %s155, %s156
      %p170 = scmp.eq.s32.totalorder %s19, 1
      %p171 = por %p169, %p170
      %p173 = scmp.ne.s32.totalorder %s156, %s172
      %p174 = scmp.eq.s32.totalorder %s19, 0
      %p175 = por %p173, %p174
      %p176 = scmp.le.s32.totalorder 1, %s13
      %p177 = scmp.lt.s32.totalorder %s13, 3
      %p178 = pnand %p176, %p177
      %p179 = pneg %p178
      // Predicated region
      $region9: #{tpu_custom_call.1} parent=5 // pred_check
        _
      $region10: #{tpu_custom_call.1} parent=5 // pred_check_branch
        %181 = sbr.rel (%p178) target = $region12
      $region11: #{tpu_custom_call.1} parent=5 // pred_region
        %s182 = ssub.s32 %s13, 1
        // Predicated region
        $region13: #{tpu_custom_call.1} parent=11 // pred_check
          %p183 = pneg %p88
        $region14: #{tpu_custom_call.1} parent=11 // pred_check_branch
          %185 = sbr.rel (%p183) target = $region16
        $region15: #{tpu_custom_call.1} parent=11 // pred_region
          %s186 = smul.u32 2, %s24
          %p187 = scmp.lt.s32.totalorder %s25, 0
          %s188 = scalar_select %p187, %s25, 0
          %p189 = scmp.lt.s32.totalorder %s186, 1
          %s190 = scalar_select %p189, %s186, 1
          %s191 = smul.addr %s188, 2
          %s192 = sadd.s32 %s190, %s191
          %s193 = smul.addr %s192, 2
          %s194 = scalar_lea.vmem %s1, %s193
          %s195 = smul.u32 2, %s24
        $region16: #{tpu_custom_call.1} parent=11 // pred_fallthru
          _
        // Predicated region
        $region17: #{tpu_custom_call.1} parent=11 // pred_check
          %p196 = pneg %p114
        $region18: #{tpu_custom_call.1} parent=11 // pred_check_branch
          %198 = sbr.rel (%p196) target = $region20
        $region19: #{tpu_custom_call.1} parent=11 // pred_region
          %s199 = smul.u32 2, %s24
          %p200 = scmp.lt.s32.totalorder %s199, 1
          %s201 = scalar_select %p200, %s199, 1
          %s202 = scalar_lea.vmem %s2, %s201
          %s203 = smul.u32 2, %s24
        $region20: #{tpu_custom_call.1} parent=11 // pred_fallthru
          _
        // Predicated region
        $region21: #{tpu_custom_call.1} parent=11 // pred_check
          %p204 = pneg %p140
        $region22: #{tpu_custom_call.1} parent=11 // pred_check_branch
          %206 = sbr.rel (%p204) target = $region24
        $region23: #{tpu_custom_call.1} parent=11 // pred_region
          %s207 = smul.u32 2, %s24
          %p208 = scmp.lt.s32.totalorder %s207, 1
          %s209 = scalar_select %p208, %s207, 1
          %s210 = scalar_lea.vmem %s3, %s209
          %s211 = smul.u32 2, %s24
        $region24: #{tpu_custom_call.1} parent=11 // pred_fallthru
          _
      $region12: #{tpu_custom_call.1} parent=5 // pred_fallthru
        _
      %p212 = scmp.lt.s32.totalorder %s13, 2
      // Predicated region
      $region25: #{tpu_custom_call.1} parent=5 // pred_check
        %p213 = pneg %p212
      $region26: #{tpu_custom_call.1} parent=5 // pred_check_branch
        %215 = sbr.rel (%p213) target = $region28
      $region27: #{tpu_custom_call.1} parent=5 // pred_region
        // Predicated region
        $region29: #{tpu_custom_call.1} parent=27 // pred_check
          %p216 = pneg %p54
        $region30: #{tpu_custom_call.1} parent=27 // pred_check_branch
          %218 = sbr.rel (%p216) target = $region32
        $region31: #{tpu_custom_call.1} parent=27 // pred_region
          %p219 = scmp.lt.s32.totalorder %s20, 1
          %s220 = scalar_select %p219, %s20, 1
          %p221 = scmp.lt.s32.totalorder %s22, 0
          %s222 = scalar_select %p221, %s22, 0
          %s223 = smul.addr %s220, 54
          %s224 = sadd.s32 %s222, %s223
          %s225 = smul.addr %s224, 4
          %s226 = scalar_lea.vmem %s0, %s225
        $region32: #{tpu_custom_call.1} parent=27 // pred_fallthru
          _
      $region28: #{tpu_custom_call.1} parent=5 // pred_fallthru
        _
      %p227 = scmp.le.s32.totalorder 1, %s13
      %p228 = scmp.lt.s32.totalorder %s13, 3
      %p229 = pnand %p227, %p228
      %p230 = pneg %p229
      // Predicated region
      $region33: #{tpu_custom_call.1} parent=5 // pred_check
        _
      $region34: #{tpu_custom_call.1} parent=5 // pred_check_branch
        %232 = sbr.rel (%p229) target = $region36
      $region35: #{tpu_custom_call.1} parent=5 // pred_region
        %s233 = ssub.s32 %s13, 1
        %p234 = scmp.lt.s32.totalorder %s23, 1
        %s235 = scalar_select %p234, %s23, 1
        %p236 = scmp.lt.s32.totalorder %s25, 0
        %s237 = scalar_select %p236, %s25, 0
        %s238 = smul.addr %s235, 54
        %s239 = sadd.s32 %s237, %s238
        %s240 = smul.addr %s239, 4
        %s241 = scalar_lea.vmem %s0, %s240
        %p242 = pneg %p60
        %p243 = pneg %p57
        %s244 = smul.u32 2, %s24
        %p245 = scmp.lt.s32.totalorder %s25, 0
        %s246 = scalar_select %p245, %s25, 0
        %p247 = scmp.lt.s32.totalorder %s244, 1
        %s248 = scalar_select %p247, %s244, 1
        %s249 = smul.addr %s246, 2
        %s250 = sadd.s32 %s248, %s249
        %s251 = smul.addr %s250, 2
        %s252 = scalar_lea.vmem %s1, %s251
        %p253 = pneg %p88
        %p254 = pneg %p85
        %s255 = smul.u32 2, %s24
        %p256 = scmp.lt.s32.totalorder %s255, 1
        %s257 = scalar_select %p256, %s255, 1
        %s258 = scalar_lea.vmem %s2, %s257
        %p259 = pneg %p114
        %p260 = pneg %p111
        %s261 = smul.u32 2, %s24
        %p262 = scmp.lt.s32.totalorder %s261, 1
        %s263 = scalar_select %p262, %s261, 1
        %s264 = scalar_lea.vmem %s3, %s263
        %p265 = pneg %p140
        %p266 = pneg %p137
        %p267 = pneg %p168
        %p268 = pneg %p165
        %s269 = sand.u32 %s155, 1
        %s270 = scalar_lea.sflag [#allocation4], %s269
        %s271 = sand.u32 %s155, 1
        %s272 = smul.addr %s271, 256
        %s273 = scalar_lea.vmem [#allocation3], %s272
        %p274 = scmp.lt.s32.totalorder %s23, 1
        %s275 = scalar_select %p274, %s23, 1
        %p276 = scmp.lt.s32.totalorder %s25, 0
        %s277 = scalar_select %p276, %s25, 0
        %s278 = smul.addr %s275, 54
        %s279 = sadd.s32 %s277, %s278
        %s280 = smul.addr %s279, 4
        %s281 = scalar_lea.vmem %s0, %s280
        %s282 = smul.u32 2, %s24
        %p283 = scmp.lt.s32.totalorder %s25, 0
        %s284 = scalar_select %p283, %s25, 0
        %p285 = scmp.lt.s32.totalorder %s282, 1
        %s286 = scalar_select %p285, %s282, 1
        %s287 = smul.addr %s284, 2
        %s288 = sadd.s32 %s286, %s287
        %s289 = smul.addr %s288, 2
        %s290 = scalar_lea.vmem %s1, %s289
        %s291 = smul.u32 2, %s24
        %s292 = smul.u32 2, %s24
        %p293 = scmp.lt.s32.totalorder %s292, 1
        %s294 = scalar_select %p293, %s292, 1
        %s295 = scalar_lea.vmem %s2, %s294
        %s296 = smul.u32 2, %s24
        %s297 = smul.u32 2, %s24
        %p298 = scmp.lt.s32.totalorder %s297, 1
        %s299 = scalar_select %p298, %s297, 1
        %s300 = scalar_lea.vmem %s3, %s299
        %s301 = smul.u32 2, %s24
        %s302 = smul.u32 2, %s24
        %p304 = scmp.eq.s32.totalorder %s25, 0
        // Predicated region
        $region37: #{tpu_custom_call.1} parent=35 // pred_check
          %p305 = pneg %p304
        $region38: #{tpu_custom_call.1} parent=35 // pred_check_branch
          %307 = sbr.rel (%p305) target = $region40
        $region39: #{tpu_custom_call.1} parent=35 // pred_region
          %308 = vst [vmem:[#allocation2] sm:$0xff] 0.0
          %309 = vst [vmem:[#allocation2 + $0x8] sm:$0xff] 0.0
          %310 = vst [vmem:[#allocation2 + $0x10] sm:$0xff] 0.0
          %311 = vst [vmem:[#allocation2 + $0x18] sm:$0xff] 0.0
          %312 = vst [vmem:[#allocation2 + $0x20] sm:$0xff] 0.0
          %313 = vst [vmem:[#allocation2 + $0x28] sm:$0xff] 0.0
          %314 = vst [vmem:[#allocation2 + $0x30] sm:$0xff] 0.0
          %315 = vst [vmem:[#allocation2 + $0x38] sm:$0xff] 0.0
          %316 = vst [vmem:[#allocation2 + $0x40] sm:$0xff] 0.0
          %317 = vst [vmem:[#allocation2 + $0x48] sm:$0xff] 0.0
          %318 = vst [vmem:[#allocation2 + $0x50] sm:$0xff] 0.0
          %319 = vst [vmem:[#allocation2 + $0x58] sm:$0xff] 0.0
          %320 = vst [vmem:[#allocation2 + $0x60] sm:$0xff] 0.0
          %321 = vst [vmem:[#allocation2 + $0x68] sm:$0xff] 0.0
          %322 = vst [vmem:[#allocation2 + $0x70] sm:$0xff] 0.0
          %323 = vst [vmem:[#allocation2 + $0x78] sm:$0xff] 0.0
          %324 = vst [vmem:[#allocation2 + $0x80] sm:$0xff] 0.0
          %325 = vst [vmem:[#allocation2 + $0x88] sm:$0xff] 0.0
          %326 = vst [vmem:[#allocation2 + $0x90] sm:$0xff] 0.0
          %327 = vst [vmem:[#allocation2 + $0x98] sm:$0xff] 0.0
          %328 = vst [vmem:[#allocation2 + $0xa0] sm:$0xff] 0.0
          %329 = vst [vmem:[#allocation2 + $0xa8] sm:$0xff] 0.0
          %330 = vst [vmem:[#allocation2 + $0xb0] sm:$0xff] 0.0
          %331 = vst [vmem:[#allocation2 + $0xb8] sm:$0xff] 0.0
          %332 = vst [vmem:[#allocation2 + $0xc0] sm:$0xff] 0.0
          %333 = vst [vmem:[#allocation2 + $0xc8] sm:$0xff] 0.0
          %334 = vst [vmem:[#allocation2 + $0xd0] sm:$0xff] 0.0
          %335 = vst [vmem:[#allocation2 + $0xd8] sm:$0xff] 0.0
          %336 = vst [vmem:[#allocation2 + $0xe0] sm:$0xff] 0.0
          %337 = vst [vmem:[#allocation2 + $0xe8] sm:$0xff] 0.0
          %338 = vst [vmem:[#allocation2 + $0xf0] sm:$0xff] 0.0
          %339 = vst [vmem:[#allocation2 + $0xf8] sm:$0xff] 0.0
          %340 = vst [vmem:[#allocation2 + $0x100] sm:$0xff] 0.0
          %341 = vst [vmem:[#allocation2 + $0x108] sm:$0xff] 0.0
          %342 = vst [vmem:[#allocation2 + $0x110] sm:$0xff] 0.0
          %343 = vst [vmem:[#allocation2 + $0x118] sm:$0xff] 0.0
          %344 = vst [vmem:[#allocation2 + $0x120] sm:$0xff] 0.0
          %345 = vst [vmem:[#allocation2 + $0x128] sm:$0xff] 0.0
          %346 = vst [vmem:[#allocation2 + $0x130] sm:$0xff] 0.0
          %347 = vst [vmem:[#allocation2 + $0x138] sm:$0xff] 0.0
          %348 = vst [vmem:[#allocation2 + $0x140] sm:$0xff] 0.0
          %349 = vst [vmem:[#allocation2 + $0x148] sm:$0xff] 0.0
          %350 = vst [vmem:[#allocation2 + $0x150] sm:$0xff] 0.0
          %351 = vst [vmem:[#allocation2 + $0x158] sm:$0xff] 0.0
          %352 = vst [vmem:[#allocation2 + $0x160] sm:$0xff] 0.0
          %353 = vst [vmem:[#allocation2 + $0x168] sm:$0xff] 0.0
          %354 = vst [vmem:[#allocation2 + $0x170] sm:$0xff] 0.0
          %355 = vst [vmem:[#allocation2 + $0x178] sm:$0xff] 0.0
          %356 = vst [vmem:[#allocation2 + $0x180] sm:$0xff] 0.0
          %357 = vst [vmem:[#allocation2 + $0x188] sm:$0xff] 0.0
          %358 = vst [vmem:[#allocation2 + $0x190] sm:$0xff] 0.0
          %359 = vst [vmem:[#allocation2 + $0x198] sm:$0xff] 0.0
          %360 = vst [vmem:[#allocation2 + $0x1a0] sm:$0xff] 0.0
          %361 = vst [vmem:[#allocation2 + $0x1a8] sm:$0xff] 0.0
          %362 = vst [vmem:[#allocation2 + $0x1b0] sm:$0xff] 0.0
          %363 = vst [vmem:[#allocation2 + $0x1b8] sm:$0xff] 0.0
          %364 = vst [vmem:[#allocation2 + $0x1c0] sm:$0xff] 0.0
          %365 = vst [vmem:[#allocation2 + $0x1c8] sm:$0xff] 0.0
          %366 = vst [vmem:[#allocation2 + $0x1d0] sm:$0xff] 0.0
          %367 = vst [vmem:[#allocation2 + $0x1d8] sm:$0xff] 0.0
          %368 = vst [vmem:[#allocation2 + $0x1e0] sm:$0xff] 0.0
          %369 = vst [vmem:[#allocation2 + $0x1e8] sm:$0xff] 0.0
          %370 = vst [vmem:[#allocation2 + $0x1f0] sm:$0xff] 0.0
          %371 = vst [vmem:[#allocation2 + $0x1f8] sm:$0xff] 0.0
        $region40: #{tpu_custom_call.1} parent=35 // pred_fallthru
          _
        %v372 = vld [vmem:[%s281] sm:$0xf]
        %v373 = vld [vmem:[%s281 + $0x4] sm:$0xf]
        %v374 = vld [vmem:[%s281 + $0x8] sm:$0x1]
        %v375 = vld [vmem:[%s281 + $0xc] sm:$0xf]
        %v376 = vld [vmem:[%s281 + $0x10] sm:$0xf]
        %v377 = vld [vmem:[%s281 + $0x14] sm:$0x1]
        %v378 = vld [vmem:[%s281 + $0x18] sm:$0xf]
        %v379 = vld [vmem:[%s281 + $0x1c] sm:$0xf]
        %v380 = vld [vmem:[%s281 + $0x20] sm:$0x1]
        %v381 = vld [vmem:[%s281 + $0x24] sm:$0xf]
        %v382 = vld [vmem:[%s281 + $0x28] sm:$0xf]
        %v383 = vld [vmem:[%s281 + $0x2c] sm:$0x1]
        %v384 = vld [vmem:[%s281 + $0x30] sm:$0xf]
        %v385 = vld [vmem:[%s281 + $0x34] sm:$0xf]
        %v386 = vld [vmem:[%s281 + $0x38] sm:$0x1]
        %v387 = vld [vmem:[%s281 + $0x3c] sm:$0xf]
        %v388 = vld [vmem:[%s281 + $0x40] sm:$0xf]
        %v389 = vld [vmem:[%s281 + $0x44] sm:$0x1]
        %v390 = vld [vmem:[%s281 + $0x48] sm:$0xf]
        %v391 = vld [vmem:[%s281 + $0x4c] sm:$0xf]
        %v392 = vld [vmem:[%s281 + $0x50] sm:$0x1]
        %v393 = vld [vmem:[%s281 + $0x54] sm:$0xf]
        %v394 = vld [vmem:[%s281 + $0x58] sm:$0xf]
        %v395 = vld [vmem:[%s281 + $0x5c] sm:$0x1]
        %v396 = vld [vmem:[%s281 + $0x60] sm:$0xf]
        %v397 = vld [vmem:[%s281 + $0x64] sm:$0xf]
        %v398 = vld [vmem:[%s281 + $0x68] sm:$0x1]
        %v399 = vld [vmem:[%s281 + $0x6c] sm:$0xf]
        %v400 = vld [vmem:[%s281 + $0x70] sm:$0xf]
        %v401 = vld [vmem:[%s281 + $0x74] sm:$0x1]
        %v402 = vld [vmem:[%s281 + $0x78] sm:$0xf]
        %v403 = vld [vmem:[%s281 + $0x7c] sm:$0xf]
        %v404 = vld [vmem:[%s281 + $0x80] sm:$0x1]
        %v405 = vld [vmem:[%s281 + $0x84] sm:$0xf]
        %v406 = vld [vmem:[%s281 + $0x88] sm:$0xf]
        %v407 = vld [vmem:[%s281 + $0x8c] sm:$0x1]
        %v408 = vld [vmem:[%s281 + $0x90] sm:$0xf]
        %v409 = vld [vmem:[%s281 + $0x94] sm:$0xf]
        %v410 = vld [vmem:[%s281 + $0x98] sm:$0x1]
        %v411 = vld [vmem:[%s281 + $0x9c] sm:$0xf]
        %v412 = vld [vmem:[%s281 + $0xa0] sm:$0xf]
        %v413 = vld [vmem:[%s281 + $0xa4] sm:$0x1]
        %v414 = vld [vmem:[%s281 + $0xa8] sm:$0xf]
        %v415 = vld [vmem:[%s281 + $0xac] sm:$0xf]
        %v416 = vld [vmem:[%s281 + $0xb0] sm:$0x1]
        %v417 = vld [vmem:[%s281 + $0xb4] sm:$0xf]
        %v418 = vld [vmem:[%s281 + $0xb8] sm:$0xf]
        %v419 = vld [vmem:[%s281 + $0xbc] sm:$0x1]
        %v420 = vld [vmem:[%s281 + $0xc0] sm:$0xf]
        %v421 = vld [vmem:[%s281 + $0xc4] sm:$0xf]
        %v422 = vld [vmem:[%s281 + $0xc8] sm:$0x1]
        %v423 = vld [vmem:[%s281 + $0xcc] sm:$0xf]
        %v424 = vld [vmem:[%s281 + $0xd0] sm:$0xf]
        %v425 = vld [vmem:[%s281 + $0xd4] sm:$0x1]
        %v426 = vld [vmem:[%s290] sm:$0xf]
        %vm427 = vsmask.f32 3328
        %vm428 = vsmask.f32 7440
        %vm429 = vmor %vm427, %vm428
        %v431 = vshrl.u32 %v372, 16
        %v433 = vrot.slane %v431, 4
        %v434 = vshll.u32 %v372, 16
        %v436 = vrot.slane %v434, 5
        %v437 = vor.u32 %v433, %v436
        %v438 = vrot.slane %v437, 4
        %v440 = vshll.u32 %v373, 16
        %v442 = vrot.slane %v440, 5
        %v443 = vsel %vm429, %v438, %v442
        %v444 = vshrl.u32 %v373, 16
        %v446 = vrot.slane %v444, 4
        %v447 = vor.u32 %v446, %v442
        %v448 = vrot.slane %v447, 4
        %v450 = vshll.u32 %v374, 16
        %v452 = vrot.slane %v450, 5
        %v453 = vsel %vm429, %v448, %v452
        %v455 = vshrl.u32 %v375, 16
        %v457 = vrot.slane %v455, 4
        %v458 = vshll.u32 %v375, 16
        %v460 = vrot.slane %v458, 5
        %v461 = vor.u32 %v457, %v460
        %v462 = vrot.slane %v461, 4
        %v464 = vshll.u32 %v376, 16
        %v466 = vrot.slane %v464, 5
        %v467 = vsel %vm429, %v462, %v466
        %v468 = vshrl.u32 %v376, 16
        %v470 = vrot.slane %v468, 4
        %v471 = vor.u32 %v470, %v466
        %v472 = vrot.slane %v471, 4
        %v474 = vshll.u32 %v377, 16
        %v476 = vrot.slane %v474, 5
        %v477 = vsel %vm429, %v472, %v476
        %v479 = vshrl.u32 %v378, 16
        %v481 = vrot.slane %v479, 4
        %v482 = vshll.u32 %v378, 16
        %v484 = vrot.slane %v482, 5
        %v485 = vor.u32 %v481, %v484
        %v486 = vrot.slane %v485, 4
        %v488 = vshll.u32 %v379, 16
        %v490 = vrot.slane %v488, 5
        %v491 = vsel %vm429, %v486, %v490
        %v492 = vshrl.u32 %v379, 16
        %v494 = vrot.slane %v492, 4
        %v495 = vor.u32 %v494, %v490
        %v496 = vrot.slane %v495, 4
        %v498 = vshll.u32 %v380, 16
        %v500 = vrot.slane %v498, 5
        %v501 = vsel %vm429, %v496, %v500
        %v503 = vshrl.u32 %v381, 16
        %v505 = vrot.slane %v503, 4
        %v506 = vshll.u32 %v381, 16
        %v508 = vrot.slane %v506, 5
        %v509 = vor.u32 %v505, %v508
        %v510 = vrot.slane %v509, 4
        %v512 = vshll.u32 %v382, 16
        %v514 = vrot.slane %v512, 5
        %v515 = vsel %vm429, %v510, %v514
        %v516 = vshrl.u32 %v382, 16
        %v518 = vrot.slane %v516, 4
        %v519 = vor.u32 %v518, %v514
        %v520 = vrot.slane %v519, 4
        %v522 = vshll.u32 %v383, 16
        %v524 = vrot.slane %v522, 5
        %v525 = vsel %vm429, %v520, %v524
        %v527 = vshrl.u32 %v384, 16
        %v529 = vrot.slane %v527, 4
        %v530 = vshll.u32 %v384, 16
        %v532 = vrot.slane %v530, 5
        %v533 = vor.u32 %v529, %v532
        %v534 = vrot.slane %v533, 4
        %v536 = vshll.u32 %v385, 16
        %v538 = vrot.slane %v536, 5
        %v539 = vsel %vm429, %v534, %v538
        %v540 = vshrl.u32 %v385, 16
        %v542 = vrot.slane %v540, 4
        %v543 = vor.u32 %v542, %v538
        %v544 = vrot.slane %v543, 4
        %v546 = vshll.u32 %v386, 16
        %v548 = vrot.slane %v546, 5
        %v549 = vsel %vm429, %v544, %v548
        %v551 = vshrl.u32 %v387, 16
        %v553 = vrot.slane %v551, 4
        %v554 = vshll.u32 %v387, 16
        %v556 = vrot.slane %v554, 5
        %v557 = vor.u32 %v553, %v556
        %v558 = vrot.slane %v557, 4
        %v560 = vshll.u32 %v388, 16
        %v562 = vrot.slane %v560, 5
        %v563 = vsel %vm429, %v558, %v562
        %v564 = vshrl.u32 %v388, 16
        %v566 = vrot.slane %v564, 4
        %v567 = vor.u32 %v566, %v562
        %v568 = vrot.slane %v567, 4
        %v570 = vshll.u32 %v389, 16
        %v572 = vrot.slane %v570, 5
        %v573 = vsel %vm429, %v568, %v572
        %v575 = vshrl.u32 %v390, 16
        %v577 = vrot.slane %v575, 4
        %v578 = vshll.u32 %v390, 16
        %v580 = vrot.slane %v578, 5
        %v581 = vor.u32 %v577, %v580
        %v582 = vrot.slane %v581, 4
        %v584 = vshll.u32 %v391, 16
        %v586 = vrot.slane %v584, 5
        %v587 = vsel %vm429, %v582, %v586
        %v588 = vshrl.u32 %v391, 16
        %v590 = vrot.slane %v588, 4
        %v591 = vor.u32 %v590, %v586
        %v592 = vrot.slane %v591, 4
        %v594 = vshll.u32 %v392, 16
        %v596 = vrot.slane %v594, 5
        %v597 = vsel %vm429, %v592, %v596
        %v599 = vshrl.u32 %v393, 16
        %v601 = vrot.slane %v599, 4
        %v602 = vshll.u32 %v393, 16
        %v604 = vrot.slane %v602, 5
        %v605 = vor.u32 %v601, %v604
        %v606 = vrot.slane %v605, 4
        %v608 = vshll.u32 %v394, 16
        %v610 = vrot.slane %v608, 5
        %v611 = vsel %vm429, %v606, %v610
        %v612 = vshrl.u32 %v394, 16
        %v614 = vrot.slane %v612, 4
        %v615 = vor.u32 %v614, %v610
        %v616 = vrot.slane %v615, 4
        %v618 = vshll.u32 %v395, 16
        %v620 = vrot.slane %v618, 5
        %v621 = vsel %vm429, %v616, %v620
        %v623 = vshrl.u32 %v396, 16
        %v625 = vrot.slane %v623, 4
        %v626 = vshll.u32 %v396, 16
        %v628 = vrot.slane %v626, 5
        %v629 = vor.u32 %v625, %v628
        %v630 = vrot.slane %v629, 4
        %v632 = vshll.u32 %v397, 16
        %v634 = vrot.slane %v632, 5
        %v635 = vsel %vm429, %v630, %v634
        %v636 = vshrl.u32 %v397, 16
        %v638 = vrot.slane %v636, 4
        %v639 = vor.u32 %v638, %v634
        %v640 = vrot.slane %v639, 4
        %v642 = vshll.u32 %v398, 16
        %v644 = vrot.slane %v642, 5
        %v645 = vsel %vm429, %v640, %v644
        %v647 = vshrl.u32 %v399, 16
        %v649 = vrot.slane %v647, 4
        %v650 = vshll.u32 %v399, 16
        %v652 = vrot.slane %v650, 5
        %v653 = vor.u32 %v649, %v652
        %v654 = vrot.slane %v653, 4
        %v656 = vshll.u32 %v400, 16
        %v658 = vrot.slane %v656, 5
        %v659 = vsel %vm429, %v654, %v658
        %v660 = vshrl.u32 %v400, 16
        %v662 = vrot.slane %v660, 4
        %v663 = vor.u32 %v662, %v658
        %v664 = vrot.slane %v663, 4
        %v666 = vshll.u32 %v401, 16
        %v668 = vrot.slane %v666, 5
        %v669 = vsel %vm429, %v664, %v668
        %v671 = vshrl.u32 %v402, 16
        %v673 = vrot.slane %v671, 4
        %v674 = vshll.u32 %v402, 16
        %v676 = vrot.slane %v674, 5
        %v677 = vor.u32 %v673, %v676
        %v678 = vrot.slane %v677, 4
        %v680 = vshll.u32 %v403, 16
        %v682 = vrot.slane %v680, 5
        %v683 = vsel %vm429, %v678, %v682
        %v684 = vshrl.u32 %v403, 16
        %v686 = vrot.slane %v684, 4
        %v687 = vor.u32 %v686, %v682
        %v688 = vrot.slane %v687, 4
        %v690 = vshll.u32 %v404, 16
        %v692 = vrot.slane %v690, 5
        %v693 = vsel %vm429, %v688, %v692
        %v695 = vshrl.u32 %v405, 16
        %v697 = vrot.slane %v695, 4
        %v698 = vshll.u32 %v405, 16
        %v700 = vrot.slane %v698, 5
        %v701 = vor.u32 %v697, %v700
        %v702 = vrot.slane %v701, 4
        %v704 = vshll.u32 %v406, 16
        %v706 = vrot.slane %v704, 5
        %v707 = vsel %vm429, %v702, %v706
        %v708 = vshrl.u32 %v406, 16
        %v710 = vrot.slane %v708, 4
        %v711 = vor.u32 %v710, %v706
        %v712 = vrot.slane %v711, 4
        %v714 = vshll.u32 %v407, 16
        %v716 = vrot.slane %v714, 5
        %v717 = vsel %vm429, %v712, %v716
        %v719 = vshrl.u32 %v408, 16
        %v721 = vrot.slane %v719, 4
        %v722 = vshll.u32 %v408, 16
        %v724 = vrot.slane %v722, 5
        %v725 = vor.u32 %v721, %v724
        %v726 = vrot.slane %v725, 4
        %v728 = vshll.u32 %v409, 16
        %v730 = vrot.slane %v728, 5
        %v731 = vsel %vm429, %v726, %v730
        %v732 = vshrl.u32 %v409, 16
        %v734 = vrot.slane %v732, 4
        %v735 = vor.u32 %v734, %v730
        %v736 = vrot.slane %v735, 4
        %v738 = vshll.u32 %v410, 16
        %v740 = vrot.slane %v738, 5
        %v741 = vsel %vm429, %v736, %v740
        %v743 = vshrl.u32 %v411, 16
        %v745 = vrot.slane %v743, 4
        %v746 = vshll.u32 %v411, 16
        %v748 = vrot.slane %v746, 5
        %v749 = vor.u32 %v745, %v748
        %v750 = vrot.slane %v749, 4
        %v752 = vshll.u32 %v412, 16
        %v754 = vrot.slane %v752, 5
        %v755 = vsel %vm429, %v750, %v754
        %v756 = vshrl.u32 %v412, 16
        %v758 = vrot.slane %v756, 4
        %v759 = vor.u32 %v758, %v754
        %v760 = vrot.slane %v759, 4
        %v762 = vshll.u32 %v413, 16
        %v764 = vrot.slane %v762, 5
        %v765 = vsel %vm429, %v760, %v764
        %v767 = vshrl.u32 %v414, 16
        %v769 = vrot.slane %v767, 4
        %v770 = vshll.u32 %v414, 16
        %v772 = vrot.slane %v770, 5
        %v773 = vor.u32 %v769, %v772
        %v774 = vrot.slane %v773, 4
        %v776 = vshll.u32 %v415, 16
        %v778 = vrot.slane %v776, 5
        %v779 = vsel %vm429, %v774, %v778
        %v780 = vshrl.u32 %v415, 16
        %v782 = vrot.slane %v780, 4
        %v783 = vor.u32 %v782, %v778
        %v784 = vrot.slane %v783, 4
        %v786 = vshll.u32 %v416, 16
        %v788 = vrot.slane %v786, 5
        %v789 = vsel %vm429, %v784, %v788
        %v791 = vshrl.u32 %v417, 16
        %v793 = vrot.slane %v791, 4
        %v794 = vshll.u32 %v417, 16
        %v796 = vrot.slane %v794, 5
        %v797 = vor.u32 %v793, %v796
        %v798 = vrot.slane %v797, 4
        %v800 = vshll.u32 %v418, 16
        %v802 = vrot.slane %v800, 5
        %v803 = vsel %vm429, %v798, %v802
        %v804 = vshrl.u32 %v418, 16
        %v806 = vrot.slane %v804, 4
        %v807 = vor.u32 %v806, %v802
        %v808 = vrot.slane %v807, 4
        %v810 = vshll.u32 %v419, 16
        %v812 = vrot.slane %v810, 5
        %v813 = vsel %vm429, %v808, %v812
        %s814 = scalar_lea.vmem %s290, 4
        %v815 = vld [vmem:[%s814] sm:$0xf]
        %v816 = vunpack.c.l.b16 %v443
        %v817 = vunpack.c.l.b16 %v453
        %v818 = vunpack.c.l.b16 %v467
        %v819 = vunpack.c.l.b16 %v477
        %v820 = vunpack.c.l.b16 %v491
        %v821 = vunpack.c.l.b16 %v501
        %v822 = vunpack.c.l.b16 %v515
        %v823 = vunpack.c.l.b16 %v525
        %v824 = vunpack.c.l.b16 %v539
        %v825 = vunpack.c.l.b16 %v549
        %v826 = vunpack.c.l.b16 %v563
        %v827 = vunpack.c.l.b16 %v573
        %v828 = vunpack.c.l.b16 %v587
        %v829 = vunpack.c.l.b16 %v597
        %v830 = vunpack.c.l.b16 %v611
        %v831 = vunpack.c.l.b16 %v621
        %v832 = vunpack.c.l.b16 %v635
        %v833 = vunpack.c.l.b16 %v645
        %v834 = vunpack.c.l.b16 %v659
        %v835 = vunpack.c.l.b16 %v669
        %v836 = vunpack.c.l.b16 %v683
        %v837 = vunpack.c.l.b16 %v693
        %v838 = vunpack.c.l.b16 %v707
        %v839 = vunpack.c.l.b16 %v717
        %v840 = vunpack.c.l.b16 %v731
        %v841 = vunpack.c.l.b16 %v741
        %v842 = vunpack.c.l.b16 %v755
        %v843 = vunpack.c.l.b16 %v765
        %v844 = vunpack.c.l.b16 %v779
        %v845 = vunpack.c.l.b16 %v789
        %v846 = vunpack.c.l.b16 %v803
        %v847 = vunpack.c.l.b16 %v813
        %v848 = vpack.c.b16 %v817, %v816
        %v849 = vpack.c.b16 %v819, %v818
        %v850 = vpack.c.b16 %v821, %v820
        %v851 = vpack.c.b16 %v823, %v822
        %v852 = vpack.c.b16 %v825, %v824
        %v853 = vpack.c.b16 %v827, %v826
        %v854 = vpack.c.b16 %v829, %v828
        %v855 = vpack.c.b16 %v831, %v830
        %v856 = vpack.c.b16 %v833, %v832
        %v857 = vpack.c.b16 %v835, %v834
        %v858 = vpack.c.b16 %v837, %v836
        %v859 = vpack.c.b16 %v839, %v838
        %v860 = vpack.c.b16 %v841, %v840
        %v861 = vpack.c.b16 %v843, %v842
        %v862 = vpack.c.b16 %v845, %v844
        %v863 = vpack.c.b16 %v847, %v846
        %865 = vst [vmem:[#allocation1] ss:$4 sm:$0xff] %v815
        %v866 = vld.sshfl [vmem:[#allocation1] sm:$0xff pattern:$0x73625140]
        %v867 = vld.sshfl [vmem:[#allocation1 + $0x8] sm:$0xff pattern:$0x73625140]
        %vm868 = vcmask 31744
        %v870 = vsel %vm868, %v848, 0
        %v873 = vsel %vm868, %v849, 0
        %v876 = vsel %vm868, %v850, 0
        %v879 = vsel %vm868, %v851, 0
        %v882 = vsel %vm868, %v852, 0
        %v885 = vsel %vm868, %v853, 0
        %v888 = vsel %vm868, %v854, 0
        %v891 = vsel %vm868, %v855, 0
        %v894 = vsel %vm868, %v856, 0
        %v897 = vsel %vm868, %v857, 0
        %v900 = vsel %vm868, %v858, 0
        %v903 = vsel %vm868, %v859, 0
        %v906 = vsel %vm868, %v860, 0
        %v909 = vsel %vm868, %v861, 0
        %v912 = vsel %vm868, %v862, 0
        %v915 = vsel %vm868, %v863, 0
        %vm917 = vcmask 1041408
        %v918 = vsel %vm917, %v866, 0
        %v920 = vsel %vm917, %v867, 0
        %922 = vmatpush.bf16.msra.mxu0 0
        %923 = vmatpush.bf16.msra.mxu0 0
        %924 = vmatpush.bf16.msra.mxu0 0
        %925 = vmatpush.bf16.msra.mxu0 0
        %926 = vmatpush.bf16.msra.mxu0 0
        %927 = vmatpush.bf16.msra.mxu0 0
        %928 = vmatpush.bf16.msra.mxu0 0
        %929 = vmatpush.bf16.msra.mxu0 %v918
        %930 = vmatmul.bf16.gmra.mxu0 %v870
        %v931 = vpop.f32.mrf.mxu0
        %v932 = vadd.f32 0.0, %v931
        %v933 = vpop.f32.mrf.mxu0
        %v934 = vadd.f32 0.0, %v933
        %935 = vmatmul.bf16.gmra.mxu0 %v873
        %v936 = vpop.f32.mrf.mxu0
        %v937 = vadd.f32 0.0, %v936
        %v938 = vpop.f32.mrf.mxu0
        %v939 = vadd.f32 0.0, %v938
        %940 = vmatmul.bf16.gmra.mxu0 %v876
        %v941 = vpop.f32.mrf.mxu0
        %v942 = vadd.f32 0.0, %v941
        %v943 = vpop.f32.mrf.mxu0
        %v944 = vadd.f32 0.0, %v943
        %945 = vmatmul.bf16.gmra.mxu0 %v879
        %v946 = vpop.f32.mrf.mxu0
        %v947 = vadd.f32 0.0, %v946
        %v948 = vpop.f32.mrf.mxu0
        %v949 = vadd.f32 0.0, %v948
        %950 = vmatmul.bf16.gmra.mxu0 %v882
        %v951 = vpop.f32.mrf.mxu0
        %v952 = vadd.f32 0.0, %v951
        %v953 = vpop.f32.mrf.mxu0
        %v954 = vadd.f32 0.0, %v953
        %955 = vmatmul.bf16.gmra.mxu0 %v885
        %v956 = vpop.f32.mrf.mxu0
        %v957 = vadd.f32 0.0, %v956
        %v958 = vpop.f32.mrf.mxu0
        %v959 = vadd.f32 0.0, %v958
        %960 = vmatmul.bf16.gmra.mxu0 %v888
        %v961 = vpop.f32.mrf.mxu0
        %v962 = vadd.f32 0.0, %v961
        %v963 = vpop.f32.mrf.mxu0
        %v964 = vadd.f32 0.0, %v963
        %965 = vmatmul.bf16.gmra.mxu0 %v891
        %v966 = vpop.f32.mrf.mxu0
        %v967 = vadd.f32 0.0, %v966
        %v968 = vpop.f32.mrf.mxu0
        %v969 = vadd.f32 0.0, %v968
        %970 = vmatmul.bf16.gmra.mxu0 %v894
        %v971 = vpop.f32.mrf.mxu0
        %v972 = vadd.f32 0.0, %v971
        %v973 = vpop.f32.mrf.mxu0
        %v974 = vadd.f32 0.0, %v973
        %975 = vmatmul.bf16.gmra.mxu0 %v897
        %v976 = vpop.f32.mrf.mxu0
        %v977 = vadd.f32 0.0, %v976
        %v978 = vpop.f32.mrf.mxu0
        %v979 = vadd.f32 0.0, %v978
        %980 = vmatmul.bf16.gmra.mxu0 %v900
        %v981 = vpop.f32.mrf.mxu0
        %v982 = vadd.f32 0.0, %v981
        %v983 = vpop.f32.mrf.mxu0
        %v984 = vadd.f32 0.0, %v983
        %985 = vmatmul.bf16.gmra.mxu0 %v903
        %v986 = vpop.f32.mrf.mxu0
        %v987 = vadd.f32 0.0, %v986
        %v988 = vpop.f32.mrf.mxu0
        %v989 = vadd.f32 0.0, %v988
        %990 = vmatmul.bf16.gmra.mxu0 %v906
        %v991 = vpop.f32.mrf.mxu0
        %v992 = vadd.f32 0.0, %v991
        %v993 = vpop.f32.mrf.mxu0
        %v994 = vadd.f32 0.0, %v993
        %995 = vmatmul.bf16.gmra.mxu0 %v909
        %v996 = vpop.f32.mrf.mxu0
        %v997 = vadd.f32 0.0, %v996
        %v998 = vpop.f32.mrf.mxu0
        %v999 = vadd.f32 0.0, %v998
        %1000 = vmatmul.bf16.gmra.mxu0 %v912
        %v1001 = vpop.f32.mrf.mxu0
        %v1002 = vadd.f32 0.0, %v1001
        %v1003 = vpop.f32.mrf.mxu0
        %v1004 = vadd.f32 0.0, %v1003
        %1005 = vmatmul.bf16.gmra.mxu0 %v915
        %v1006 = vpop.f32.mrf.mxu0
        %v1007 = vadd.f32 0.0, %v1006
        %v1008 = vpop.f32.mrf.mxu0
        %v1009 = vadd.f32 0.0, %v1008
        %1010 = vdwg.mxu0
        %1011 = vmatpush.bf16.msra.mxu0 0
        %1012 = vmatpush.bf16.msra.mxu0 0
        %1013 = vmatpush.bf16.msra.mxu0 0
        %1014 = vmatpush.bf16.msra.mxu0 0
        %1015 = vmatpush.bf16.msra.mxu0 0
        %1016 = vmatpush.bf16.msra.mxu0 0
        %1017 = vmatpush.bf16.msra.mxu0 0
        %1018 = vmatpush.bf16.msra.mxu0 %v920
        %1019 = vmatmul.bf16.gmra.mxu0 %v870
        %v1020 = vpop.f32.mrf.mxu0
        %v1021 = vadd.f32 0.0, %v1020
        %v1022 = vpop.f32.mrf.mxu0
        %v1023 = vadd.f32 0.0, %v1022
        %1024 = vmatmul.bf16.gmra.mxu0 %v873
        %v1025 = vpop.f32.mrf.mxu0
        %v1026 = vadd.f32 0.0, %v1025
        %v1027 = vpop.f32.mrf.mxu0
        %v1028 = vadd.f32 0.0, %v1027
        %1029 = vmatmul.bf16.gmra.mxu0 %v876
        %v1030 = vpop.f32.mrf.mxu0
        %v1031 = vadd.f32 0.0, %v1030
        %v1032 = vpop.f32.mrf.mxu0
        %v1033 = vadd.f32 0.0, %v1032
        %1034 = vmatmul.bf16.gmra.mxu0 %v879
        %v1035 = vpop.f32.mrf.mxu0
        %v1036 = vadd.f32 0.0, %v1035
        %v1037 = vpop.f32.mrf.mxu0
        %v1038 = vadd.f32 0.0, %v1037
        %1039 = vmatmul.bf16.gmra.mxu0 %v882
        %v1040 = vpop.f32.mrf.mxu0
        %v1041 = vadd.f32 0.0, %v1040
        %v1042 = vpop.f32.mrf.mxu0
        %v1043 = vadd.f32 0.0, %v1042
        %1044 = vmatmul.bf16.gmra.mxu0 %v885
        %v1045 = vpop.f32.mrf.mxu0
        %v1046 = vadd.f32 0.0, %v1045
        %v1047 = vpop.f32.mrf.mxu0
        %v1048 = vadd.f32 0.0, %v1047
        %1049 = vmatmul.bf16.gmra.mxu0 %v888
        %v1050 = vpop.f32.mrf.mxu0
        %v1051 = vadd.f32 0.0, %v1050
        %v1052 = vpop.f32.mrf.mxu0
        %v1053 = vadd.f32 0.0, %v1052
        %1054 = vmatmul.bf16.gmra.mxu0 %v891
        %v1055 = vpop.f32.mrf.mxu0
        %v1056 = vadd.f32 0.0, %v1055
        %v1057 = vpop.f32.mrf.mxu0
        %v1058 = vadd.f32 0.0, %v1057
        %1059 = vmatmul.bf16.gmra.mxu0 %v894
        %v1060 = vpop.f32.mrf.mxu0
        %v1061 = vadd.f32 0.0, %v1060
        %v1062 = vpop.f32.mrf.mxu0
        %v1063 = vadd.f32 0.0, %v1062
        %1064 = vmatmul.bf16.gmra.mxu0 %v897
        %v1065 = vpop.f32.mrf.mxu0
        %v1066 = vadd.f32 0.0, %v1065
        %v1067 = vpop.f32.mrf.mxu0
        %v1068 = vadd.f32 0.0, %v1067
        %1069 = vmatmul.bf16.gmra.mxu0 %v900
        %v1070 = vpop.f32.mrf.mxu0
        %v1071 = vadd.f32 0.0, %v1070
        %v1072 = vpop.f32.mrf.mxu0
        %v1073 = vadd.f32 0.0, %v1072
        %1074 = vmatmul.bf16.gmra.mxu0 %v903
        %v1075 = vpop.f32.mrf.mxu0
        %v1076 = vadd.f32 0.0, %v1075
        %v1077 = vpop.f32.mrf.mxu0
        %v1078 = vadd.f32 0.0, %v1077
        %1079 = vmatmul.bf16.gmra.mxu0 %v906
        %v1080 = vpop.f32.mrf.mxu0
        %v1081 = vadd.f32 0.0, %v1080
        %v1082 = vpop.f32.mrf.mxu0
        %v1083 = vadd.f32 0.0, %v1082
        %1084 = vmatmul.bf16.gmra.mxu0 %v909
        %v1085 = vpop.f32.mrf.mxu0
        %v1086 = vadd.f32 0.0, %v1085
        %v1087 = vpop.f32.mrf.mxu0
        %v1088 = vadd.f32 0.0, %v1087
        %1089 = vmatmul.bf16.gmra.mxu0 %v912
        %v1090 = vpop.f32.mrf.mxu0
        %v1091 = vadd.f32 0.0, %v1090
        %v1092 = vpop.f32.mrf.mxu0
        %v1093 = vadd.f32 0.0, %v1092
        %1094 = vmatmul.bf16.gmra.mxu0 %v915
        %v1095 = vpop.f32.mrf.mxu0
        %v1096 = vadd.f32 0.0, %v1095
        %v1097 = vpop.f32.mrf.mxu0
        %v1098 = vadd.f32 0.0, %v1097
        %1099 = vdwg.mxu0
        %v1132 = vunpack.c.l.b16 %v372
        %v1133 = vunpack.c.l.b16 %v373
        %v1134 = vunpack.c.l.b16 %v375
        %v1135 = vunpack.c.l.b16 %v376
        %v1136 = vunpack.c.l.b16 %v378
        %v1137 = vunpack.c.l.b16 %v379
        %v1138 = vunpack.c.l.b16 %v381
        %v1139 = vunpack.c.l.b16 %v382
        %v1140 = vunpack.c.l.b16 %v384
        %v1141 = vunpack.c.l.b16 %v385
        %v1142 = vunpack.c.l.b16 %v387
        %v1143 = vunpack.c.l.b16 %v388
        %v1144 = vunpack.c.l.b16 %v390
        %v1145 = vunpack.c.l.b16 %v391
        %v1146 = vunpack.c.l.b16 %v393
        %v1147 = vunpack.c.l.b16 %v394
        %v1148 = vunpack.c.l.b16 %v396
        %v1149 = vunpack.c.l.b16 %v397
        %v1150 = vunpack.c.l.b16 %v399
        %v1151 = vunpack.c.l.b16 %v400
        %v1152 = vunpack.c.l.b16 %v402
        %v1153 = vunpack.c.l.b16 %v403
        %v1154 = vunpack.c.l.b16 %v405
        %v1155 = vunpack.c.l.b16 %v406
        %v1156 = vunpack.c.l.b16 %v408
        %v1157 = vunpack.c.l.b16 %v409
        %v1158 = vunpack.c.l.b16 %v411
        %v1159 = vunpack.c.l.b16 %v412
        %v1160 = vunpack.c.l.b16 %v414
        %v1161 = vunpack.c.l.b16 %v415
        %v1162 = vunpack.c.l.b16 %v417
        %v1163 = vunpack.c.l.b16 %v418
        %v1164 = vpack.c.b16 %v1133, %v1132
        %v1165 = vpack.c.b16 %v1135, %v1134
        %v1166 = vpack.c.b16 %v1137, %v1136
        %v1167 = vpack.c.b16 %v1139, %v1138
        %v1168 = vpack.c.b16 %v1141, %v1140
        %v1169 = vpack.c.b16 %v1143, %v1142
        %v1170 = vpack.c.b16 %v1145, %v1144
        %v1171 = vpack.c.b16 %v1147, %v1146
        %v1172 = vpack.c.b16 %v1149, %v1148
        %v1173 = vpack.c.b16 %v1151, %v1150
        %v1174 = vpack.c.b16 %v1153, %v1152
        %v1175 = vpack.c.b16 %v1155, %v1154
        %v1176 = vpack.c.b16 %v1157, %v1156
        %v1177 = vpack.c.b16 %v1159, %v1158
        %v1178 = vpack.c.b16 %v1161, %v1160
        %v1179 = vpack.c.b16 %v1163, %v1162
        %1181 = vst [vmem:[#allocation1] ss:$4 sm:$0xff] %v426
        %v1182 = vld.sshfl [vmem:[#allocation1] sm:$0xff pattern:$0x73625140]
        %v1183 = vld.sshfl [vmem:[#allocation1 + $0x8] sm:$0xff pattern:$0x73625140]
        %v1185 = vsel %vm868, %v1164, 0
        %v1188 = vsel %vm868, %v1165, 0
        %v1191 = vsel %vm868, %v1166, 0
        %v1194 = vsel %vm868, %v1167, 0
        %v1197 = vsel %vm868, %v1168, 0
        %v1200 = vsel %vm868, %v1169, 0
        %v1203 = vsel %vm868, %v1170, 0
        %v1206 = vsel %vm868, %v1171, 0
        %v1209 = vsel %vm868, %v1172, 0
        %v1212 = vsel %vm868, %v1173, 0
        %v1215 = vsel %vm868, %v1174, 0
        %v1218 = vsel %vm868, %v1175, 0
        %v1221 = vsel %vm868, %v1176, 0
        %v1224 = vsel %vm868, %v1177, 0
        %v1227 = vsel %vm868, %v1178, 0
        %v1230 = vsel %vm868, %v1179, 0
        %v1232 = vsel %vm917, %v1182, 0
        %v1234 = vsel %vm917, %v1183, 0
        %1236 = vmatpush.bf16.msra.mxu0 0
        %1237 = vmatpush.bf16.msra.mxu0 0
        %1238 = vmatpush.bf16.msra.mxu0 0
        %1239 = vmatpush.bf16.msra.mxu0 0
        %1240 = vmatpush.bf16.msra.mxu0 0
        %1241 = vmatpush.bf16.msra.mxu0 0
        %1242 = vmatpush.bf16.msra.mxu0 0
        %1243 = vmatpush.bf16.msra.mxu0 %v1232
        %1244 = vmatmul.bf16.gmra.mxu0 %v1185
        %v1245 = vpop.f32.mrf.mxu0
        %v1246 = vadd.f32 %v932, %v1245
        %v1247 = vpop.f32.mrf.mxu0
        %v1248 = vadd.f32 %v934, %v1247
        %1249 = vmatmul.bf16.gmra.mxu0 %v1188
        %v1250 = vpop.f32.mrf.mxu0
        %v1251 = vadd.f32 %v937, %v1250
        %v1252 = vpop.f32.mrf.mxu0
        %v1253 = vadd.f32 %v939, %v1252
        %1254 = vmatmul.bf16.gmra.mxu0 %v1191
        %v1255 = vpop.f32.mrf.mxu0
        %v1256 = vadd.f32 %v942, %v1255
        %v1257 = vpop.f32.mrf.mxu0
        %v1258 = vadd.f32 %v944, %v1257
        %1259 = vmatmul.bf16.gmra.mxu0 %v1194
        %v1260 = vpop.f32.mrf.mxu0
        %v1261 = vadd.f32 %v947, %v1260
        %v1262 = vpop.f32.mrf.mxu0
        %v1263 = vadd.f32 %v949, %v1262
        %1264 = vmatmul.bf16.gmra.mxu0 %v1197
        %v1265 = vpop.f32.mrf.mxu0
        %v1266 = vadd.f32 %v952, %v1265
        %v1267 = vpop.f32.mrf.mxu0
        %v1268 = vadd.f32 %v954, %v1267
        %1269 = vmatmul.bf16.gmra.mxu0 %v1200
        %v1270 = vpop.f32.mrf.mxu0
        %v1271 = vadd.f32 %v957, %v1270
        %v1272 = vpop.f32.mrf.mxu0
        %v1273 = vadd.f32 %v959, %v1272
        %1274 = vmatmul.bf16.gmra.mxu0 %v1203
        %v1275 = vpop.f32.mrf.mxu0
        %v1276 = vadd.f32 %v962, %v1275
        %v1277 = vpop.f32.mrf.mxu0
        %v1278 = vadd.f32 %v964, %v1277
        %1279 = vmatmul.bf16.gmra.mxu0 %v1206
        %v1280 = vpop.f32.mrf.mxu0
        %v1281 = vadd.f32 %v967, %v1280
        %v1282 = vpop.f32.mrf.mxu0
        %v1283 = vadd.f32 %v969, %v1282
        %1284 = vmatmul.bf16.gmra.mxu0 %v1209
        %v1285 = vpop.f32.mrf.mxu0
        %v1286 = vadd.f32 %v972, %v1285
        %v1287 = vpop.f32.mrf.mxu0
        %v1288 = vadd.f32 %v974, %v1287
        %1289 = vmatmul.bf16.gmra.mxu0 %v1212
        %v1290 = vpop.f32.mrf.mxu0
        %v1291 = vadd.f32 %v977, %v1290
        %v1292 = vpop.f32.mrf.mxu0
        %v1293 = vadd.f32 %v979, %v1292
        %1294 = vmatmul.bf16.gmra.mxu0 %v1215
        %v1295 = vpop.f32.mrf.mxu0
        %v1296 = vadd.f32 %v982, %v1295
        %v1297 = vpop.f32.mrf.mxu0
        %v1298 = vadd.f32 %v984, %v1297
        %1299 = vmatmul.bf16.gmra.mxu0 %v1218
        %v1300 = vpop.f32.mrf.mxu0
        %v1301 = vadd.f32 %v987, %v1300
        %v1302 = vpop.f32.mrf.mxu0
        %v1303 = vadd.f32 %v989, %v1302
        %1304 = vmatmul.bf16.gmra.mxu0 %v1221
        %v1305 = vpop.f32.mrf.mxu0
        %v1306 = vadd.f32 %v992, %v1305
        %v1307 = vpop.f32.mrf.mxu0
        %v1308 = vadd.f32 %v994, %v1307
        %1309 = vmatmul.bf16.gmra.mxu0 %v1224
        %v1310 = vpop.f32.mrf.mxu0
        %v1311 = vadd.f32 %v997, %v1310
        %v1312 = vpop.f32.mrf.mxu0
        %v1313 = vadd.f32 %v999, %v1312
        %1314 = vmatmul.bf16.gmra.mxu0 %v1227
        %v1315 = vpop.f32.mrf.mxu0
        %v1316 = vadd.f32 %v1002, %v1315
        %v1317 = vpop.f32.mrf.mxu0
        %v1318 = vadd.f32 %v1004, %v1317
        %1319 = vmatmul.bf16.gmra.mxu0 %v1230
        %v1320 = vpop.f32.mrf.mxu0
        %v1321 = vadd.f32 %v1007, %v1320
        %v1322 = vpop.f32.mrf.mxu0
        %v1323 = vadd.f32 %v1009, %v1322
        %1324 = vdwg.mxu0
        %1325 = vmatpush.bf16.msra.mxu0 0
        %1326 = vmatpush.bf16.msra.mxu0 0
        %1327 = vmatpush.bf16.msra.mxu0 0
        %1328 = vmatpush.bf16.msra.mxu0 0
        %1329 = vmatpush.bf16.msra.mxu0 0
        %1330 = vmatpush.bf16.msra.mxu0 0
        %1331 = vmatpush.bf16.msra.mxu0 0
        %1332 = vmatpush.bf16.msra.mxu0 %v1234
        %1333 = vmatmul.bf16.gmra.mxu0 %v1185
        %v1334 = vpop.f32.mrf.mxu0
        %v1335 = vadd.f32 %v1021, %v1334
        %v1336 = vpop.f32.mrf.mxu0
        %v1337 = vadd.f32 %v1023, %v1336
        %1338 = vmatmul.bf16.gmra.mxu0 %v1188
        %v1339 = vpop.f32.mrf.mxu0
        %v1340 = vadd.f32 %v1026, %v1339
        %v1341 = vpop.f32.mrf.mxu0
        %v1342 = vadd.f32 %v1028, %v1341
        %1343 = vmatmul.bf16.gmra.mxu0 %v1191
        %v1344 = vpop.f32.mrf.mxu0
        %v1345 = vadd.f32 %v1031, %v1344
        %v1346 = vpop.f32.mrf.mxu0
        %v1347 = vadd.f32 %v1033, %v1346
        %1348 = vmatmul.bf16.gmra.mxu0 %v1194
        %v1349 = vpop.f32.mrf.mxu0
        %v1350 = vadd.f32 %v1036, %v1349
        %v1351 = vpop.f32.mrf.mxu0
        %v1352 = vadd.f32 %v1038, %v1351
        %1353 = vmatmul.bf16.gmra.mxu0 %v1197
        %v1354 = vpop.f32.mrf.mxu0
        %v1355 = vadd.f32 %v1041, %v1354
        %v1356 = vpop.f32.mrf.mxu0
        %v1357 = vadd.f32 %v1043, %v1356
        %1358 = vmatmul.bf16.gmra.mxu0 %v1200
        %v1359 = vpop.f32.mrf.mxu0
        %v1360 = vadd.f32 %v1046, %v1359
        %v1361 = vpop.f32.mrf.mxu0
        %v1362 = vadd.f32 %v1048, %v1361
        %1363 = vmatmul.bf16.gmra.mxu0 %v1203
        %v1364 = vpop.f32.mrf.mxu0
        %v1365 = vadd.f32 %v1051, %v1364
        %v1366 = vpop.f32.mrf.mxu0
        %v1367 = vadd.f32 %v1053, %v1366
        %1368 = vmatmul.bf16.gmra.mxu0 %v1206
        %v1369 = vpop.f32.mrf.mxu0
        %v1370 = vadd.f32 %v1056, %v1369
        %v1371 = vpop.f32.mrf.mxu0
        %v1372 = vadd.f32 %v1058, %v1371
        %1373 = vmatmul.bf16.gmra.mxu0 %v1209
        %v1374 = vpop.f32.mrf.mxu0
        %v1375 = vadd.f32 %v1061, %v1374
        %v1376 = vpop.f32.mrf.mxu0
        %v1377 = vadd.f32 %v1063, %v1376
        %1378 = vmatmul.bf16.gmra.mxu0 %v1212
        %v1379 = vpop.f32.mrf.mxu0
        %v1380 = vadd.f32 %v1066, %v1379
        %v1381 = vpop.f32.mrf.mxu0
        %v1382 = vadd.f32 %v1068, %v1381
        %1383 = vmatmul.bf16.gmra.mxu0 %v1215
        %v1384 = vpop.f32.mrf.mxu0
        %v1385 = vadd.f32 %v1071, %v1384
        %v1386 = vpop.f32.mrf.mxu0
        %v1387 = vadd.f32 %v1073, %v1386
        %1388 = vmatmul.bf16.gmra.mxu0 %v1218
        %v1389 = vpop.f32.mrf.mxu0
        %v1390 = vadd.f32 %v1076, %v1389
        %v1391 = vpop.f32.mrf.mxu0
        %v1392 = vadd.f32 %v1078, %v1391
        %1393 = vmatmul.bf16.gmra.mxu0 %v1221
        %v1394 = vpop.f32.mrf.mxu0
        %v1395 = vadd.f32 %v1081, %v1394
        %v1396 = vpop.f32.mrf.mxu0
        %v1397 = vadd.f32 %v1083, %v1396
        %1398 = vmatmul.bf16.gmra.mxu0 %v1224
        %v1399 = vpop.f32.mrf.mxu0
        %v1400 = vadd.f32 %v1086, %v1399
        %v1401 = vpop.f32.mrf.mxu0
        %v1402 = vadd.f32 %v1088, %v1401
        %1403 = vmatmul.bf16.gmra.mxu0 %v1227
        %v1404 = vpop.f32.mrf.mxu0
        %v1405 = vadd.f32 %v1091, %v1404
        %v1406 = vpop.f32.mrf.mxu0
        %v1407 = vadd.f32 %v1093, %v1406
        %1408 = vmatmul.bf16.gmra.mxu0 %v1230
        %v1409 = vpop.f32.mrf.mxu0
        %v1410 = vadd.f32 %v1096, %v1409
        %v1411 = vpop.f32.mrf.mxu0
        %v1412 = vadd.f32 %v1098, %v1411
        %1413 = vdwg.mxu0
        %vm1430 = vcmask 1042432
        %vm1431 = vcmask 1046532
        %vm1432 = vmor %vm1430, %vm1431
        %v1433 = vrot.slane %v372, 5
        %v1434 = vrot.slane %v1433, 4
        %v1435 = vrot.slane %v373, 5
        %v1436 = vsel %vm1432, %v1434, %v1435
        %v1437 = vrot.slane %v1435, 4
        %v1438 = vrot.slane %v374, 5
        %v1439 = vsel %vm1432, %v1437, %v1438
        %v1440 = vrot.slane %v375, 5
        %v1441 = vrot.slane %v1440, 4
        %v1442 = vrot.slane %v376, 5
        %v1443 = vsel %vm1432, %v1441, %v1442
        %v1444 = vrot.slane %v1442, 4
        %v1445 = vrot.slane %v377, 5
        %v1446 = vsel %vm1432, %v1444, %v1445
        %v1447 = vrot.slane %v378, 5
        %v1448 = vrot.slane %v1447, 4
        %v1449 = vrot.slane %v379, 5
        %v1450 = vsel %vm1432, %v1448, %v1449
        %v1451 = vrot.slane %v1449, 4
        %v1452 = vrot.slane %v380, 5
        %v1453 = vsel %vm1432, %v1451, %v1452
        %v1454 = vrot.slane %v381, 5
        %v1455 = vrot.slane %v1454, 4
        %v1456 = vrot.slane %v382, 5
        %v1457 = vsel %vm1432, %v1455, %v1456
        %v1458 = vrot.slane %v1456, 4
        %v1459 = vrot.slane %v383, 5
        %v1460 = vsel %vm1432, %v1458, %v1459
        %v1461 = vrot.slane %v384, 5
        %v1462 = vrot.slane %v1461, 4
        %v1463 = vrot.slane %v385, 5
        %v1464 = vsel %vm1432, %v1462, %v1463
        %v1465 = vrot.slane %v1463, 4
        %v1466 = vrot.slane %v386, 5
        %v1467 = vsel %vm1432, %v1465, %v1466
        %v1468 = vrot.slane %v387, 5
        %v1469 = vrot.slane %v1468, 4
        %v1470 = vrot.slane %v388, 5
        %v1471 = vsel %vm1432, %v1469, %v1470
        %v1472 = vrot.slane %v1470, 4
        %v1473 = vrot.slane %v389, 5
        %v1474 = vsel %vm1432, %v1472, %v1473
        %v1475 = vrot.slane %v390, 5
        %v1476 = vrot.slane %v1475, 4
        %v1477 = vrot.slane %v391, 5
        %v1478 = vsel %vm1432, %v1476, %v1477
        %v1479 = vrot.slane %v1477, 4
        %v1480 = vrot.slane %v392, 5
        %v1481 = vsel %vm1432, %v1479, %v1480
        %v1482 = vrot.slane %v393, 5
        %v1483 = vrot.slane %v1482, 4
        %v1484 = vrot.slane %v394, 5
        %v1485 = vsel %vm1432, %v1483, %v1484
        %v1486 = vrot.slane %v1484, 4
        %v1487 = vrot.slane %v395, 5
        %v1488 = vsel %vm1432, %v1486, %v1487
        %v1489 = vrot.slane %v396, 5
        %v1490 = vrot.slane %v1489, 4
        %v1491 = vrot.slane %v397, 5
        %v1492 = vsel %vm1432, %v1490, %v1491
        %v1493 = vrot.slane %v1491, 4
        %v1494 = vrot.slane %v398, 5
        %v1495 = vsel %vm1432, %v1493, %v1494
        %v1496 = vrot.slane %v399, 5
        %v1497 = vrot.slane %v1496, 4
        %v1498 = vrot.slane %v400, 5
        %v1499 = vsel %vm1432, %v1497, %v1498
        %v1500 = vrot.slane %v1498, 4
        %v1501 = vrot.slane %v401, 5
        %v1502 = vsel %vm1432, %v1500, %v1501
        %v1503 = vrot.slane %v402, 5
        %v1504 = vrot.slane %v1503, 4
        %v1505 = vrot.slane %v403, 5
        %v1506 = vsel %vm1432, %v1504, %v1505
        %v1507 = vrot.slane %v1505, 4
        %v1508 = vrot.slane %v404, 5
        %v1509 = vsel %vm1432, %v1507, %v1508
        %v1510 = vrot.slane %v405, 5
        %v1511 = vrot.slane %v1510, 4
        %v1512 = vrot.slane %v406, 5
        %v1513 = vsel %vm1432, %v1511, %v1512
        %v1514 = vrot.slane %v1512, 4
        %v1515 = vrot.slane %v407, 5
        %v1516 = vsel %vm1432, %v1514, %v1515
        %v1517 = vrot.slane %v408, 5
        %v1518 = vrot.slane %v1517, 4
        %v1519 = vrot.slane %v409, 5
        %v1520 = vsel %vm1432, %v1518, %v1519
        %v1521 = vrot.slane %v1519, 4
        %v1522 = vrot.slane %v410, 5
        %v1523 = vsel %vm1432, %v1521, %v1522
        %v1524 = vrot.slane %v411, 5
        %v1525 = vrot.slane %v1524, 4
        %v1526 = vrot.slane %v412, 5
        %v1527 = vsel %vm1432, %v1525, %v1526
        %v1528 = vrot.slane %v1526, 4
        %v1529 = vrot.slane %v413, 5
        %v1530 = vsel %vm1432, %v1528, %v1529
        %v1531 = vrot.slane %v414, 5
        %v1532 = vrot.slane %v1531, 4
        %v1533 = vrot.slane %v415, 5
        %v1534 = vsel %vm1432, %v1532, %v1533
        %v1535 = vrot.slane %v1533, 4
        %v1536 = vrot.slane %v416, 5
        %v1537 = vsel %vm1432, %v1535, %v1536
        %v1538 = vrot.slane %v417, 5
        %v1539 = vrot.slane %v1538, 4
        %v1540 = vrot.slane %v418, 5
        %v1541 = vsel %vm1432, %v1539, %v1540
        %v1542 = vrot.slane %v1540, 4
        %v1543 = vrot.slane %v419, 5
        %v1544 = vsel %vm1432, %v1542, %v1543
        %s1545 = scalar_lea.vmem %s290, 8
        %v1546 = vld [vmem:[%s1545] sm:$0xf]
        %v1547 = vunpack.c.l.b16 %v1436
        %v1548 = vunpack.c.l.b16 %v1439
        %v1549 = vunpack.c.l.b16 %v1443
        %v1550 = vunpack.c.l.b16 %v1446
        %v1551 = vunpack.c.l.b16 %v1450
        %v1552 = vunpack.c.l.b16 %v1453
        %v1553 = vunpack.c.l.b16 %v1457
        %v1554 = vunpack.c.l.b16 %v1460
        %v1555 = vunpack.c.l.b16 %v1464
        %v1556 = vunpack.c.l.b16 %v1467
        %v1557 = vunpack.c.l.b16 %v1471
        %v1558 = vunpack.c.l.b16 %v1474
        %v1559 = vunpack.c.l.b16 %v1478
        %v1560 = vunpack.c.l.b16 %v1481
        %v1561 = vunpack.c.l.b16 %v1485
        %v1562 = vunpack.c.l.b16 %v1488
        %v1563 = vunpack.c.l.b16 %v1492
        %v1564 = vunpack.c.l.b16 %v1495
        %v1565 = vunpack.c.l.b16 %v1499
        %v1566 = vunpack.c.l.b16 %v1502
        %v1567 = vunpack.c.l.b16 %v1506
        %v1568 = vunpack.c.l.b16 %v1509
        %v1569 = vunpack.c.l.b16 %v1513
        %v1570 = vunpack.c.l.b16 %v1516
        %v1571 = vunpack.c.l.b16 %v1520
        %v1572 = vunpack.c.l.b16 %v1523
        %v1573 = vunpack.c.l.b16 %v1527
        %v1574 = vunpack.c.l.b16 %v1530
        %v1575 = vunpack.c.l.b16 %v1534
        %v1576 = vunpack.c.l.b16 %v1537
        %v1577 = vunpack.c.l.b16 %v1541
        %v1578 = vunpack.c.l.b16 %v1544
        %v1579 = vpack.c.b16 %v1548, %v1547
        %v1580 = vpack.c.b16 %v1550, %v1549
        %v1581 = vpack.c.b16 %v1552, %v1551
        %v1582 = vpack.c.b16 %v1554, %v1553
        %v1583 = vpack.c.b16 %v1556, %v1555
        %v1584 = vpack.c.b16 %v1558, %v1557
        %v1585 = vpack.c.b16 %v1560, %v1559
        %v1586 = vpack.c.b16 %v1562, %v1561
        %v1587 = vpack.c.b16 %v1564, %v1563
        %v1588 = vpack.c.b16 %v1566, %v1565
        %v1589 = vpack.c.b16 %v1568, %v1567
        %v1590 = vpack.c.b16 %v1570, %v1569
        %v1591 = vpack.c.b16 %v1572, %v1571
        %v1592 = vpack.c.b16 %v1574, %v1573
        %v1593 = vpack.c.b16 %v1576, %v1575
        %v1594 = vpack.c.b16 %v1578, %v1577
        %1596 = vst [vmem:[#allocation1] ss:$4 sm:$0xff] %v1546
        %v1597 = vld.sshfl [vmem:[#allocation1] sm:$0xff pattern:$0x73625140]
        %v1598 = vld.sshfl [vmem:[#allocation1 + $0x8] sm:$0xff pattern:$0x73625140]
        %v1600 = vsel %vm868, %v1579, 0
        %v1603 = vsel %vm868, %v1580, 0
        %v1606 = vsel %vm868, %v1581, 0
        %v1609 = vsel %vm868, %v1582, 0
        %v1612 = vsel %vm868, %v1583, 0
        %v1615 = vsel %vm868, %v1584, 0
        %v1618 = vsel %vm868, %v1585, 0
        %v1621 = vsel %vm868, %v1586, 0
        %v1624 = vsel %vm868, %v1587, 0
        %v1627 = vsel %vm868, %v1588, 0
        %v1630 = vsel %vm868, %v1589, 0
        %v1633 = vsel %vm868, %v1590, 0
        %v1636 = vsel %vm868, %v1591, 0
        %v1639 = vsel %vm868, %v1592, 0
        %v1642 = vsel %vm868, %v1593, 0
        %v1645 = vsel %vm868, %v1594, 0
        %v1647 = vsel %vm917, %v1597, 0
        %v1649 = vsel %vm917, %v1598, 0
        %1651 = vmatpush.bf16.msra.mxu0 0
        %1652 = vmatpush.bf16.msra.mxu0 0
        %1653 = vmatpush.bf16.msra.mxu0 0
        %1654 = vmatpush.bf16.msra.mxu0 0
        %1655 = vmatpush.bf16.msra.mxu0 0
        %1656 = vmatpush.bf16.msra.mxu0 0
        %1657 = vmatpush.bf16.msra.mxu0 0
        %1658 = vmatpush.bf16.msra.mxu0 %v1647
        %1659 = vmatmul.bf16.gmra.mxu0 %v1600
        %v1660 = vpop.f32.mrf.mxu0
        %v1661 = vadd.f32 0.0, %v1660
        %v1662 = vpop.f32.mrf.mxu0
        %v1663 = vadd.f32 0.0, %v1662
        %1664 = vmatmul.bf16.gmra.mxu0 %v1603
        %v1665 = vpop.f32.mrf.mxu0
        %v1666 = vadd.f32 0.0, %v1665
        %v1667 = vpop.f32.mrf.mxu0
        %v1668 = vadd.f32 0.0, %v1667
        %1669 = vmatmul.bf16.gmra.mxu0 %v1606
        %v1670 = vpop.f32.mrf.mxu0
        %v1671 = vadd.f32 0.0, %v1670
        %v1672 = vpop.f32.mrf.mxu0
        %v1673 = vadd.f32 0.0, %v1672
        %1674 = vmatmul.bf16.gmra.mxu0 %v1609
        %v1675 = vpop.f32.mrf.mxu0
        %v1676 = vadd.f32 0.0, %v1675
        %v1677 = vpop.f32.mrf.mxu0
        %v1678 = vadd.f32 0.0, %v1677
        %1679 = vmatmul.bf16.gmra.mxu0 %v1612
        %v1680 = vpop.f32.mrf.mxu0
        %v1681 = vadd.f32 0.0, %v1680
        %v1682 = vpop.f32.mrf.mxu0
        %v1683 = vadd.f32 0.0, %v1682
        %1684 = vmatmul.bf16.gmra.mxu0 %v1615
        %v1685 = vpop.f32.mrf.mxu0
        %v1686 = vadd.f32 0.0, %v1685
        %v1687 = vpop.f32.mrf.mxu0
        %v1688 = vadd.f32 0.0, %v1687
        %1689 = vmatmul.bf16.gmra.mxu0 %v1618
        %v1690 = vpop.f32.mrf.mxu0
        %v1691 = vadd.f32 0.0, %v1690
        %v1692 = vpop.f32.mrf.mxu0
        %v1693 = vadd.f32 0.0, %v1692
        %1694 = vmatmul.bf16.gmra.mxu0 %v1621
        %v1695 = vpop.f32.mrf.mxu0
        %v1696 = vadd.f32 0.0, %v1695
        %v1697 = vpop.f32.mrf.mxu0
        %v1698 = vadd.f32 0.0, %v1697
        %1699 = vmatmul.bf16.gmra.mxu0 %v1624
        %v1700 = vpop.f32.mrf.mxu0
        %v1701 = vadd.f32 0.0, %v1700
        %v1702 = vpop.f32.mrf.mxu0
        %v1703 = vadd.f32 0.0, %v1702
        %1704 = vmatmul.bf16.gmra.mxu0 %v1627
        %v1705 = vpop.f32.mrf.mxu0
        %v1706 = vadd.f32 0.0, %v1705
        %v1707 = vpop.f32.mrf.mxu0
        %v1708 = vadd.f32 0.0, %v1707
        %1709 = vmatmul.bf16.gmra.mxu0 %v1630
        %v1710 = vpop.f32.mrf.mxu0
        %v1711 = vadd.f32 0.0, %v1710
        %v1712 = vpop.f32.mrf.mxu0
        %v1713 = vadd.f32 0.0, %v1712
        %1714 = vmatmul.bf16.gmra.mxu0 %v1633
        %v1715 = vpop.f32.mrf.mxu0
        %v1716 = vadd.f32 0.0, %v1715
        %v1717 = vpop.f32.mrf.mxu0
        %v1718 = vadd.f32 0.0, %v1717
        %1719 = vmatmul.bf16.gmra.mxu0 %v1636
        %v1720 = vpop.f32.mrf.mxu0
        %v1721 = vadd.f32 0.0, %v1720
        %v1722 = vpop.f32.mrf.mxu0
        %v1723 = vadd.f32 0.0, %v1722
        %1724 = vmatmul.bf16.gmra.mxu0 %v1639
        %v1725 = vpop.f32.mrf.mxu0
        %v1726 = vadd.f32 0.0, %v1725
        %v1727 = vpop.f32.mrf.mxu0
        %v1728 = vadd.f32 0.0, %v1727
        %1729 = vmatmul.bf16.gmra.mxu0 %v1642
        %v1730 = vpop.f32.mrf.mxu0
        %v1731 = vadd.f32 0.0, %v1730
        %v1732 = vpop.f32.mrf.mxu0
        %v1733 = vadd.f32 0.0, %v1732
        %1734 = vmatmul.bf16.gmra.mxu0 %v1645
        %v1735 = vpop.f32.mrf.mxu0
        %v1736 = vadd.f32 0.0, %v1735
        %v1737 = vpop.f32.mrf.mxu0
        %v1738 = vadd.f32 0.0, %v1737
        %1739 = vdwg.mxu0
        %1740 = vmatpush.bf16.msra.mxu0 0
        %1741 = vmatpush.bf16.msra.mxu0 0
        %1742 = vmatpush.bf16.msra.mxu0 0
        %1743 = vmatpush.bf16.msra.mxu0 0
        %1744 = vmatpush.bf16.msra.mxu0 0
        %1745 = vmatpush.bf16.msra.mxu0 0
        %1746 = vmatpush.bf16.msra.mxu0 0
        %1747 = vmatpush.bf16.msra.mxu0 %v1649
        %1748 = vmatmul.bf16.gmra.mxu0 %v1600
        %v1749 = vpop.f32.mrf.mxu0
        %v1750 = vadd.f32 0.0, %v1749
        %v1751 = vpop.f32.mrf.mxu0
        %v1752 = vadd.f32 0.0, %v1751
        %1753 = vmatmul.bf16.gmra.mxu0 %v1603
        %v1754 = vpop.f32.mrf.mxu0
        %v1755 = vadd.f32 0.0, %v1754
        %v1756 = vpop.f32.mrf.mxu0
        %v1757 = vadd.f32 0.0, %v1756
        %1758 = vmatmul.bf16.gmra.mxu0 %v1606
        %v1759 = vpop.f32.mrf.mxu0
        %v1760 = vadd.f32 0.0, %v1759
        %v1761 = vpop.f32.mrf.mxu0
        %v1762 = vadd.f32 0.0, %v1761
        %1763 = vmatmul.bf16.gmra.mxu0 %v1609
        %v1764 = vpop.f32.mrf.mxu0
        %v1765 = vadd.f32 0.0, %v1764
        %v1766 = vpop.f32.mrf.mxu0
        %v1767 = vadd.f32 0.0, %v1766
        %1768 = vmatmul.bf16.gmra.mxu0 %v1612
        %v1769 = vpop.f32.mrf.mxu0
        %v1770 = vadd.f32 0.0, %v1769
        %v1771 = vpop.f32.mrf.mxu0
        %v1772 = vadd.f32 0.0, %v1771
        %1773 = vmatmul.bf16.gmra.mxu0 %v1615
        %v1774 = vpop.f32.mrf.mxu0
        %v1775 = vadd.f32 0.0, %v1774
        %v1776 = vpop.f32.mrf.mxu0
        %v1777 = vadd.f32 0.0, %v1776
        %1778 = vmatmul.bf16.gmra.mxu0 %v1618
        %v1779 = vpop.f32.mrf.mxu0
        %v1780 = vadd.f32 0.0, %v1779
        %v1781 = vpop.f32.mrf.mxu0
        %v1782 = vadd.f32 0.0, %v1781
        %1783 = vmatmul.bf16.gmra.mxu0 %v1621
        %v1784 = vpop.f32.mrf.mxu0
        %v1785 = vadd.f32 0.0, %v1784
        %v1786 = vpop.f32.mrf.mxu0
        %v1787 = vadd.f32 0.0, %v1786
        %1788 = vmatmul.bf16.gmra.mxu0 %v1624
        %v1789 = vpop.f32.mrf.mxu0
        %v1790 = vadd.f32 0.0, %v1789
        %v1791 = vpop.f32.mrf.mxu0
        %v1792 = vadd.f32 0.0, %v1791
        %1793 = vmatmul.bf16.gmra.mxu0 %v1627
        %v1794 = vpop.f32.mrf.mxu0
        %v1795 = vadd.f32 0.0, %v1794
        %v1796 = vpop.f32.mrf.mxu0
        %v1797 = vadd.f32 0.0, %v1796
        %1798 = vmatmul.bf16.gmra.mxu0 %v1630
        %v1799 = vpop.f32.mrf.mxu0
        %v1800 = vadd.f32 0.0, %v1799
        %v1801 = vpop.f32.mrf.mxu0
        %v1802 = vadd.f32 0.0, %v1801
        %1803 = vmatmul.bf16.gmra.mxu0 %v1633
        %v1804 = vpop.f32.mrf.mxu0
        %v1805 = vadd.f32 0.0, %v1804
        %v1806 = vpop.f32.mrf.mxu0
        %v1807 = vadd.f32 0.0, %v1806
        %1808 = vmatmul.bf16.gmra.mxu0 %v1636
        %v1809 = vpop.f32.mrf.mxu0
        %v1810 = vadd.f32 0.0, %v1809
        %v1811 = vpop.f32.mrf.mxu0
        %v1812 = vadd.f32 0.0, %v1811
        %1813 = vmatmul.bf16.gmra.mxu0 %v1639
        %v1814 = vpop.f32.mrf.mxu0
        %v1815 = vadd.f32 0.0, %v1814
        %v1816 = vpop.f32.mrf.mxu0
        %v1817 = vadd.f32 0.0, %v1816
        %1818 = vmatmul.bf16.gmra.mxu0 %v1642
        %v1819 = vpop.f32.mrf.mxu0
        %v1820 = vadd.f32 0.0, %v1819
        %v1821 = vpop.f32.mrf.mxu0
        %v1822 = vadd.f32 0.0, %v1821
        %1823 = vmatmul.bf16.gmra.mxu0 %v1645
        %v1824 = vpop.f32.mrf.mxu0
        %v1825 = vadd.f32 0.0, %v1824
        %v1826 = vpop.f32.mrf.mxu0
        %v1827 = vadd.f32 0.0, %v1826
        %1828 = vdwg.mxu0
        %v1829 = vadd.f32 %v1246, %v1661
        %v1830 = vadd.f32 %v1335, %v1750
        %v1831 = vadd.f32 %v1248, %v1663
        %v1832 = vadd.f32 %v1337, %v1752
        %v1833 = vadd.f32 %v1251, %v1666
        %v1834 = vadd.f32 %v1340, %v1755
        %v1835 = vadd.f32 %v1253, %v1668
        %v1836 = vadd.f32 %v1342, %v1757
        %v1837 = vadd.f32 %v1256, %v1671
        %v1838 = vadd.f32 %v1345, %v1760
        %v1839 = vadd.f32 %v1258, %v1673
        %v1840 = vadd.f32 %v1347, %v1762
        %v1841 = vadd.f32 %v1261, %v1676
        %v1842 = vadd.f32 %v1350, %v1765
        %v1843 = vadd.f32 %v1263, %v1678
        %v1844 = vadd.f32 %v1352, %v1767
        %v1845 = vadd.f32 %v1266, %v1681
        %v1846 = vadd.f32 %v1355, %v1770
        %v1847 = vadd.f32 %v1268, %v1683
        %v1848 = vadd.f32 %v1357, %v1772
        %v1849 = vadd.f32 %v1271, %v1686
        %v1850 = vadd.f32 %v1360, %v1775
        %v1851 = vadd.f32 %v1273, %v1688
        %v1852 = vadd.f32 %v1362, %v1777
        %v1853 = vadd.f32 %v1276, %v1691
        %v1854 = vadd.f32 %v1365, %v1780
        %v1855 = vadd.f32 %v1278, %v1693
        %v1856 = vadd.f32 %v1367, %v1782
        %v1857 = vadd.f32 %v1281, %v1696
        %v1858 = vadd.f32 %v1370, %v1785
        %v1859 = vadd.f32 %v1283, %v1698
        %v1860 = vadd.f32 %v1372, %v1787
        %v1861 = vadd.f32 %v1286, %v1701
        %v1862 = vadd.f32 %v1375, %v1790
        %v1863 = vadd.f32 %v1288, %v1703
        %v1864 = vadd.f32 %v1377, %v1792
        %v1865 = vadd.f32 %v1291, %v1706
        %v1866 = vadd.f32 %v1380, %v1795
        %v1867 = vadd.f32 %v1293, %v1708
        %v1868 = vadd.f32 %v1382, %v1797
        %v1869 = vadd.f32 %v1296, %v1711
        %v1870 = vadd.f32 %v1385, %v1800
        %v1871 = vadd.f32 %v1298, %v1713
        %v1872 = vadd.f32 %v1387, %v1802
        %v1873 = vadd.f32 %v1301, %v1716
        %v1874 = vadd.f32 %v1390, %v1805
        %v1875 = vadd.f32 %v1303, %v1718
        %v1876 = vadd.f32 %v1392, %v1807
        %v1877 = vadd.f32 %v1306, %v1721
        %v1878 = vadd.f32 %v1395, %v1810
        %v1879 = vadd.f32 %v1308, %v1723
        %v1880 = vadd.f32 %v1397, %v1812
        %v1881 = vadd.f32 %v1311, %v1726
        %v1882 = vadd.f32 %v1400, %v1815
        %v1883 = vadd.f32 %v1313, %v1728
        %v1884 = vadd.f32 %v1402, %v1817
        %v1885 = vadd.f32 %v1316, %v1731
        %v1886 = vadd.f32 %v1405, %v1820
        %v1887 = vadd.f32 %v1318, %v1733
        %v1888 = vadd.f32 %v1407, %v1822
        %v1889 = vadd.f32 %v1321, %v1736
        %v1890 = vadd.f32 %v1410, %v1825
        %v1891 = vadd.f32 %v1323, %v1738
        %v1892 = vadd.f32 %v1412, %v1827
        %s1893 = scalar_lea.vmem %s290, 12
        %v1894 = vld [vmem:[%s1893] sm:$0xf]
        %v1897 = vunpack.c.l.b16 %v420
        %v1898 = vunpack.c.l.b16 %v421
        %v1899 = vpack.c.b16 %v1898, %v1897
        %1901 = vst [vmem:[#allocation1] ss:$4 sm:$0xff] %v1894
        %v1902 = vld.sshfl [vmem:[#allocation1] sm:$0xff pattern:$0x73625140]
        %v1903 = vld.sshfl [vmem:[#allocation1 + $0x8] sm:$0xff pattern:$0x73625140]
        %v1905 = vsel %vm868, %v1899, 0
        %v1907 = vsel %vm917, %v1902, 0
        %v1909 = vsel %vm917, %v1903, 0
        %1911 = vmatpush.bf16.msra.mxu0 0
        %1912 = vmatpush.bf16.msra.mxu0 0
        %1913 = vmatpush.bf16.msra.mxu0 0
        %1914 = vmatpush.bf16.msra.mxu0 0
        %1915 = vmatpush.bf16.msra.mxu0 0
        %1916 = vmatpush.bf16.msra.mxu0 0
        %1917 = vmatpush.bf16.msra.mxu0 0
        %1918 = vmatpush.bf16.msra.mxu0 %v1907
        %1919 = vmatmul.bf16.gmra.mxu0 %v1188
        %v1920 = vpop.f32.mrf.mxu0
        %v1921 = vadd.f32 0.0, %v1920
        %v1922 = vpop.f32.mrf.mxu0
        %v1923 = vadd.f32 0.0, %v1922
        %1924 = vmatmul.bf16.gmra.mxu0 %v1191
        %v1925 = vpop.f32.mrf.mxu0
        %v1926 = vadd.f32 0.0, %v1925
        %v1927 = vpop.f32.mrf.mxu0
        %v1928 = vadd.f32 0.0, %v1927
        %1929 = vmatmul.bf16.gmra.mxu0 %v1194
        %v1930 = vpop.f32.mrf.mxu0
        %v1931 = vadd.f32 0.0, %v1930
        %v1932 = vpop.f32.mrf.mxu0
        %v1933 = vadd.f32 0.0, %v1932
        %1934 = vmatmul.bf16.gmra.mxu0 %v1197
        %v1935 = vpop.f32.mrf.mxu0
        %v1936 = vadd.f32 0.0, %v1935
        %v1937 = vpop.f32.mrf.mxu0
        %v1938 = vadd.f32 0.0, %v1937
        %1939 = vmatmul.bf16.gmra.mxu0 %v1200
        %v1940 = vpop.f32.mrf.mxu0
        %v1941 = vadd.f32 0.0, %v1940
        %v1942 = vpop.f32.mrf.mxu0
        %v1943 = vadd.f32 0.0, %v1942
        %1944 = vmatmul.bf16.gmra.mxu0 %v1203
        %v1945 = vpop.f32.mrf.mxu0
        %v1946 = vadd.f32 0.0, %v1945
        %v1947 = vpop.f32.mrf.mxu0
        %v1948 = vadd.f32 0.0, %v1947
        %1949 = vmatmul.bf16.gmra.mxu0 %v1206
        %v1950 = vpop.f32.mrf.mxu0
        %v1951 = vadd.f32 0.0, %v1950
        %v1952 = vpop.f32.mrf.mxu0
        %v1953 = vadd.f32 0.0, %v1952
        %1954 = vmatmul.bf16.gmra.mxu0 %v1209
        %v1955 = vpop.f32.mrf.mxu0
        %v1956 = vadd.f32 0.0, %v1955
        %v1957 = vpop.f32.mrf.mxu0
        %v1958 = vadd.f32 0.0, %v1957
        %1959 = vmatmul.bf16.gmra.mxu0 %v1212
        %v1960 = vpop.f32.mrf.mxu0
        %v1961 = vadd.f32 0.0, %v1960
        %v1962 = vpop.f32.mrf.mxu0
        %v1963 = vadd.f32 0.0, %v1962
        %1964 = vmatmul.bf16.gmra.mxu0 %v1215
        %v1965 = vpop.f32.mrf.mxu0
        %v1966 = vadd.f32 0.0, %v1965
        %v1967 = vpop.f32.mrf.mxu0
        %v1968 = vadd.f32 0.0, %v1967
        %1969 = vmatmul.bf16.gmra.mxu0 %v1218
        %v1970 = vpop.f32.mrf.mxu0
        %v1971 = vadd.f32 0.0, %v1970
        %v1972 = vpop.f32.mrf.mxu0
        %v1973 = vadd.f32 0.0, %v1972
        %1974 = vmatmul.bf16.gmra.mxu0 %v1221
        %v1975 = vpop.f32.mrf.mxu0
        %v1976 = vadd.f32 0.0, %v1975
        %v1977 = vpop.f32.mrf.mxu0
        %v1978 = vadd.f32 0.0, %v1977
        %1979 = vmatmul.bf16.gmra.mxu0 %v1224
        %v1980 = vpop.f32.mrf.mxu0
        %v1981 = vadd.f32 0.0, %v1980
        %v1982 = vpop.f32.mrf.mxu0
        %v1983 = vadd.f32 0.0, %v1982
        %1984 = vmatmul.bf16.gmra.mxu0 %v1227
        %v1985 = vpop.f32.mrf.mxu0
        %v1986 = vadd.f32 0.0, %v1985
        %v1987 = vpop.f32.mrf.mxu0
        %v1988 = vadd.f32 0.0, %v1987
        %1989 = vmatmul.bf16.gmra.mxu0 %v1230
        %v1990 = vpop.f32.mrf.mxu0
        %v1991 = vadd.f32 0.0, %v1990
        %v1992 = vpop.f32.mrf.mxu0
        %v1993 = vadd.f32 0.0, %v1992
        %1994 = vmatmul.bf16.gmra.mxu0 %v1905
        %v1995 = vpop.f32.mrf.mxu0
        %v1996 = vadd.f32 0.0, %v1995
        %v1997 = vpop.f32.mrf.mxu0
        %v1998 = vadd.f32 0.0, %v1997
        %1999 = vdwg.mxu0
        %2000 = vmatpush.bf16.msra.mxu0 0
        %2001 = vmatpush.bf16.msra.mxu0 0
        %2002 = vmatpush.bf16.msra.mxu0 0
        %2003 = vmatpush.bf16.msra.mxu0 0
        %2004 = vmatpush.bf16.msra.mxu0 0
        %2005 = vmatpush.bf16.msra.mxu0 0
        %2006 = vmatpush.bf16.msra.mxu0 0
        %2007 = vmatpush.bf16.msra.mxu0 %v1909
        %2008 = vmatmul.bf16.gmra.mxu0 %v1188
        %v2009 = vpop.f32.mrf.mxu0
        %v2010 = vadd.f32 0.0, %v2009
        %v2011 = vpop.f32.mrf.mxu0
        %v2012 = vadd.f32 0.0, %v2011
        %2013 = vmatmul.bf16.gmra.mxu0 %v1191
        %v2014 = vpop.f32.mrf.mxu0
        %v2015 = vadd.f32 0.0, %v2014
        %v2016 = vpop.f32.mrf.mxu0
        %v2017 = vadd.f32 0.0, %v2016
        %2018 = vmatmul.bf16.gmra.mxu0 %v1194
        %v2019 = vpop.f32.mrf.mxu0
        %v2020 = vadd.f32 0.0, %v2019
        %v2021 = vpop.f32.mrf.mxu0
        %v2022 = vadd.f32 0.0, %v2021
        %2023 = vmatmul.bf16.gmra.mxu0 %v1197
        %v2024 = vpop.f32.mrf.mxu0
        %v2025 = vadd.f32 0.0, %v2024
        %v2026 = vpop.f32.mrf.mxu0
        %v2027 = vadd.f32 0.0, %v2026
        %2028 = vmatmul.bf16.gmra.mxu0 %v1200
        %v2029 = vpop.f32.mrf.mxu0
        %v2030 = vadd.f32 0.0, %v2029
        %v2031 = vpop.f32.mrf.mxu0
        %v2032 = vadd.f32 0.0, %v2031
        %2033 = vmatmul.bf16.gmra.mxu0 %v1203
        %v2034 = vpop.f32.mrf.mxu0
        %v2035 = vadd.f32 0.0, %v2034
        %v2036 = vpop.f32.mrf.mxu0
        %v2037 = vadd.f32 0.0, %v2036
        %2038 = vmatmul.bf16.gmra.mxu0 %v1206
        %v2039 = vpop.f32.mrf.mxu0
        %v2040 = vadd.f32 0.0, %v2039
        %v2041 = vpop.f32.mrf.mxu0
        %v2042 = vadd.f32 0.0, %v2041
        %2043 = vmatmul.bf16.gmra.mxu0 %v1209
        %v2044 = vpop.f32.mrf.mxu0
        %v2045 = vadd.f32 0.0, %v2044
        %v2046 = vpop.f32.mrf.mxu0
        %v2047 = vadd.f32 0.0, %v2046
        %2048 = vmatmul.bf16.gmra.mxu0 %v1212
        %v2049 = vpop.f32.mrf.mxu0
        %v2050 = vadd.f32 0.0, %v2049
        %v2051 = vpop.f32.mrf.mxu0
        %v2052 = vadd.f32 0.0, %v2051
        %2053 = vmatmul.bf16.gmra.mxu0 %v1215
        %v2054 = vpop.f32.mrf.mxu0
        %v2055 = vadd.f32 0.0, %v2054
        %v2056 = vpop.f32.mrf.mxu0
        %v2057 = vadd.f32 0.0, %v2056
        %2058 = vmatmul.bf16.gmra.mxu0 %v1218
        %v2059 = vpop.f32.mrf.mxu0
        %v2060 = vadd.f32 0.0, %v2059
        %v2061 = vpop.f32.mrf.mxu0
        %v2062 = vadd.f32 0.0, %v2061
        %2063 = vmatmul.bf16.gmra.mxu0 %v1221
        %v2064 = vpop.f32.mrf.mxu0
        %v2065 = vadd.f32 0.0, %v2064
        %v2066 = vpop.f32.mrf.mxu0
        %v2067 = vadd.f32 0.0, %v2066
        %2068 = vmatmul.bf16.gmra.mxu0 %v1224
        %v2069 = vpop.f32.mrf.mxu0
        %v2070 = vadd.f32 0.0, %v2069
        %v2071 = vpop.f32.mrf.mxu0
        %v2072 = vadd.f32 0.0, %v2071
        %2073 = vmatmul.bf16.gmra.mxu0 %v1227
        %v2074 = vpop.f32.mrf.mxu0
        %v2075 = vadd.f32 0.0, %v2074
        %v2076 = vpop.f32.mrf.mxu0
        %v2077 = vadd.f32 0.0, %v2076
        %2078 = vmatmul.bf16.gmra.mxu0 %v1230
        %v2079 = vpop.f32.mrf.mxu0
        %v2080 = vadd.f32 0.0, %v2079
        %v2081 = vpop.f32.mrf.mxu0
        %v2082 = vadd.f32 0.0, %v2081
        %2083 = vmatmul.bf16.gmra.mxu0 %v1905
        %v2084 = vpop.f32.mrf.mxu0
        %v2085 = vadd.f32 0.0, %v2084
        %v2086 = vpop.f32.mrf.mxu0
        %v2087 = vadd.f32 0.0, %v2086
        %2088 = vdwg.mxu0
        %v2089 = vadd.f32 %v1829, %v1921
        %v2090 = vadd.f32 %v1830, %v2010
        %v2091 = vadd.f32 %v1831, %v1923
        %v2092 = vadd.f32 %v1832, %v2012
        %v2093 = vadd.f32 %v1833, %v1926
        %v2094 = vadd.f32 %v1834, %v2015
        %v2095 = vadd.f32 %v1835, %v1928
        %v2096 = vadd.f32 %v1836, %v2017
        %v2097 = vadd.f32 %v1837, %v1931
        %v2098 = vadd.f32 %v1838, %v2020
        %v2099 = vadd.f32 %v1839, %v1933
        %v2100 = vadd.f32 %v1840, %v2022
        %v2101 = vadd.f32 %v1841, %v1936
        %v2102 = vadd.f32 %v1842, %v2025
        %v2103 = vadd.f32 %v1843, %v1938
        %v2104 = vadd.f32 %v1844, %v2027
        %v2105 = vadd.f32 %v1845, %v1941
        %v2106 = vadd.f32 %v1846, %v2030
        %v2107 = vadd.f32 %v1847, %v1943
        %v2108 = vadd.f32 %v1848, %v2032
        %v2109 = vadd.f32 %v1849, %v1946
        %v2110 = vadd.f32 %v1850, %v2035
        %v2111 = vadd.f32 %v1851, %v1948
        %v2112 = vadd.f32 %v1852, %v2037
        %v2113 = vadd.f32 %v1853, %v1951
        %v2114 = vadd.f32 %v1854, %v2040
        %v2115 = vadd.f32 %v1855, %v1953
        %v2116 = vadd.f32 %v1856, %v2042
        %v2117 = vadd.f32 %v1857, %v1956
        %v2118 = vadd.f32 %v1858, %v2045
        %v2119 = vadd.f32 %v1859, %v1958
        %v2120 = vadd.f32 %v1860, %v2047
        %v2121 = vadd.f32 %v1861, %v1961
        %v2122 = vadd.f32 %v1862, %v2050
        %v2123 = vadd.f32 %v1863, %v1963
        %v2124 = vadd.f32 %v1864, %v2052
        %v2125 = vadd.f32 %v1865, %v1966
        %v2126 = vadd.f32 %v1866, %v2055
        %v2127 = vadd.f32 %v1867, %v1968
        %v2128 = vadd.f32 %v1868, %v2057
        %v2129 = vadd.f32 %v1869, %v1971
        %v2130 = vadd.f32 %v1870, %v2060
        %v2131 = vadd.f32 %v1871, %v1973
        %v2132 = vadd.f32 %v1872, %v2062
        %v2133 = vadd.f32 %v1873, %v1976
        %v2134 = vadd.f32 %v1874, %v2065
        %v2135 = vadd.f32 %v1875, %v1978
        %v2136 = vadd.f32 %v1876, %v2067
        %v2137 = vadd.f32 %v1877, %v1981
        %v2138 = vadd.f32 %v1878, %v2070
        %v2139 = vadd.f32 %v1879, %v1983
        %v2140 = vadd.f32 %v1880, %v2072
        %v2141 = vadd.f32 %v1881, %v1986
        %v2142 = vadd.f32 %v1882, %v2075
        %v2143 = vadd.f32 %v1883, %v1988
        %v2144 = vadd.f32 %v1884, %v2077
        %v2145 = vadd.f32 %v1885, %v1991
        %v2146 = vadd.f32 %v1886, %v2080
        %v2147 = vadd.f32 %v1887, %v1993
        %v2148 = vadd.f32 %v1888, %v2082
        %v2149 = vadd.f32 %v1889, %v1996
        %v2150 = vadd.f32 %v1890, %v2085
        %v2151 = vadd.f32 %v1891, %v1998
        %v2152 = vadd.f32 %v1892, %v2087
        %v2154 = vshrl.u32 %v420, 16
        %v2156 = vrot.slane %v2154, 4
        %v2157 = vshll.u32 %v420, 16
        %v2159 = vrot.slane %v2157, 5
        %v2160 = vor.u32 %v2156, %v2159
        %v2161 = vrot.slane %v2160, 4
        %v2163 = vshll.u32 %v421, 16
        %v2165 = vrot.slane %v2163, 5
        %v2166 = vsel %vm429, %v2161, %v2165
        %v2167 = vshrl.u32 %v421, 16
        %v2169 = vrot.slane %v2167, 4
        %v2170 = vor.u32 %v2169, %v2165
        %v2171 = vrot.slane %v2170, 4
        %v2173 = vshll.u32 %v422, 16
        %v2175 = vrot.slane %v2173, 5
        %v2176 = vsel %vm429, %v2171, %v2175
        %s2177 = scalar_lea.vmem %s290, 16
        %v2178 = vld [vmem:[%s2177] sm:$0xf]
        %v2179 = vunpack.c.l.b16 %v2166
        %v2180 = vunpack.c.l.b16 %v2176
        %v2181 = vpack.c.b16 %v2180, %v2179
        %2183 = vst [vmem:[#allocation1] ss:$4 sm:$0xff] %v2178
        %v2184 = vld.sshfl [vmem:[#allocation1] sm:$0xff pattern:$0x73625140]
        %v2185 = vld.sshfl [vmem:[#allocation1 + $0x8] sm:$0xff pattern:$0x73625140]
        %v2187 = vsel %vm868, %v2181, 0
        %v2189 = vsel %vm917, %v2184, 0
        %v2191 = vsel %vm917, %v2185, 0
        %2193 = vmatpush.bf16.msra.mxu0 0
        %2194 = vmatpush.bf16.msra.mxu0 0
        %2195 = vmatpush.bf16.msra.mxu0 0
        %2196 = vmatpush.bf16.msra.mxu0 0
        %2197 = vmatpush.bf16.msra.mxu0 0
        %2198 = vmatpush.bf16.msra.mxu0 0
        %2199 = vmatpush.bf16.msra.mxu0 0
        %2200 = vmatpush.bf16.msra.mxu0 %v2189
        %2201 = vmatmul.bf16.gmra.mxu0 %v873
        %v2202 = vpop.f32.mrf.mxu0
        %v2203 = vadd.f32 0.0, %v2202
        %v2204 = vpop.f32.mrf.mxu0
        %v2205 = vadd.f32 0.0, %v2204
        %2206 = vmatmul.bf16.gmra.mxu0 %v876
        %v2207 = vpop.f32.mrf.mxu0
        %v2208 = vadd.f32 0.0, %v2207
        %v2209 = vpop.f32.mrf.mxu0
        %v2210 = vadd.f32 0.0, %v2209
        %2211 = vmatmul.bf16.gmra.mxu0 %v879
        %v2212 = vpop.f32.mrf.mxu0
        %v2213 = vadd.f32 0.0, %v2212
        %v2214 = vpop.f32.mrf.mxu0
        %v2215 = vadd.f32 0.0, %v2214
        %2216 = vmatmul.bf16.gmra.mxu0 %v882
        %v2217 = vpop.f32.mrf.mxu0
        %v2218 = vadd.f32 0.0, %v2217
        %v2219 = vpop.f32.mrf.mxu0
        %v2220 = vadd.f32 0.0, %v2219
        %2221 = vmatmul.bf16.gmra.mxu0 %v885
        %v2222 = vpop.f32.mrf.mxu0
        %v2223 = vadd.f32 0.0, %v2222
        %v2224 = vpop.f32.mrf.mxu0
        %v2225 = vadd.f32 0.0, %v2224
        %2226 = vmatmul.bf16.gmra.mxu0 %v888
        %v2227 = vpop.f32.mrf.mxu0
        %v2228 = vadd.f32 0.0, %v2227
        %v2229 = vpop.f32.mrf.mxu0
        %v2230 = vadd.f32 0.0, %v2229
        %2231 = vmatmul.bf16.gmra.mxu0 %v891
        %v2232 = vpop.f32.mrf.mxu0
        %v2233 = vadd.f32 0.0, %v2232
        %v2234 = vpop.f32.mrf.mxu0
        %v2235 = vadd.f32 0.0, %v2234
        %2236 = vmatmul.bf16.gmra.mxu0 %v894
        %v2237 = vpop.f32.mrf.mxu0
        %v2238 = vadd.f32 0.0, %v2237
        %v2239 = vpop.f32.mrf.mxu0
        %v2240 = vadd.f32 0.0, %v2239
        %2241 = vmatmul.bf16.gmra.mxu0 %v897
        %v2242 = vpop.f32.mrf.mxu0
        %v2243 = vadd.f32 0.0, %v2242
        %v2244 = vpop.f32.mrf.mxu0
        %v2245 = vadd.f32 0.0, %v2244
        %2246 = vmatmul.bf16.gmra.mxu0 %v900
        %v2247 = vpop.f32.mrf.mxu0
        %v2248 = vadd.f32 0.0, %v2247
        %v2249 = vpop.f32.mrf.mxu0
        %v2250 = vadd.f32 0.0, %v2249
        %2251 = vmatmul.bf16.gmra.mxu0 %v903
        %v2252 = vpop.f32.mrf.mxu0
        %v2253 = vadd.f32 0.0, %v2252
        %v2254 = vpop.f32.mrf.mxu0
        %v2255 = vadd.f32 0.0, %v2254
        %2256 = vmatmul.bf16.gmra.mxu0 %v906
        %v2257 = vpop.f32.mrf.mxu0
        %v2258 = vadd.f32 0.0, %v2257
        %v2259 = vpop.f32.mrf.mxu0
        %v2260 = vadd.f32 0.0, %v2259
        %2261 = vmatmul.bf16.gmra.mxu0 %v909
        %v2262 = vpop.f32.mrf.mxu0
        %v2263 = vadd.f32 0.0, %v2262
        %v2264 = vpop.f32.mrf.mxu0
        %v2265 = vadd.f32 0.0, %v2264
        %2266 = vmatmul.bf16.gmra.mxu0 %v912
        %v2267 = vpop.f32.mrf.mxu0
        %v2268 = vadd.f32 0.0, %v2267
        %v2269 = vpop.f32.mrf.mxu0
        %v2270 = vadd.f32 0.0, %v2269
        %2271 = vmatmul.bf16.gmra.mxu0 %v915
        %v2272 = vpop.f32.mrf.mxu0
        %v2273 = vadd.f32 0.0, %v2272
        %v2274 = vpop.f32.mrf.mxu0
        %v2275 = vadd.f32 0.0, %v2274
        %2276 = vmatmul.bf16.gmra.mxu0 %v2187
        %v2277 = vpop.f32.mrf.mxu0
        %v2278 = vadd.f32 0.0, %v2277
        %v2279 = vpop.f32.mrf.mxu0
        %v2280 = vadd.f32 0.0, %v2279
        %2281 = vdwg.mxu0
        %2282 = vmatpush.bf16.msra.mxu0 0
        %2283 = vmatpush.bf16.msra.mxu0 0
        %2284 = vmatpush.bf16.msra.mxu0 0
        %2285 = vmatpush.bf16.msra.mxu0 0
        %2286 = vmatpush.bf16.msra.mxu0 0
        %2287 = vmatpush.bf16.msra.mxu0 0
        %2288 = vmatpush.bf16.msra.mxu0 0
        %2289 = vmatpush.bf16.msra.mxu0 %v2191
        %2290 = vmatmul.bf16.gmra.mxu0 %v873
        %v2291 = vpop.f32.mrf.mxu0
        %v2292 = vadd.f32 0.0, %v2291
        %v2293 = vpop.f32.mrf.mxu0
        %v2294 = vadd.f32 0.0, %v2293
        %2295 = vmatmul.bf16.gmra.mxu0 %v876
        %v2296 = vpop.f32.mrf.mxu0
        %v2297 = vadd.f32 0.0, %v2296
        %v2298 = vpop.f32.mrf.mxu0
        %v2299 = vadd.f32 0.0, %v2298
        %2300 = vmatmul.bf16.gmra.mxu0 %v879
        %v2301 = vpop.f32.mrf.mxu0
        %v2302 = vadd.f32 0.0, %v2301
        %v2303 = vpop.f32.mrf.mxu0
        %v2304 = vadd.f32 0.0, %v2303
        %2305 = vmatmul.bf16.gmra.mxu0 %v882
        %v2306 = vpop.f32.mrf.mxu0
        %v2307 = vadd.f32 0.0, %v2306
        %v2308 = vpop.f32.mrf.mxu0
        %v2309 = vadd.f32 0.0, %v2308
        %2310 = vmatmul.bf16.gmra.mxu0 %v885
        %v2311 = vpop.f32.mrf.mxu0
        %v2312 = vadd.f32 0.0, %v2311
        %v2313 = vpop.f32.mrf.mxu0
        %v2314 = vadd.f32 0.0, %v2313
        %2315 = vmatmul.bf16.gmra.mxu0 %v888
        %v2316 = vpop.f32.mrf.mxu0
        %v2317 = vadd.f32 0.0, %v2316
        %v2318 = vpop.f32.mrf.mxu0
        %v2319 = vadd.f32 0.0, %v2318
        %2320 = vmatmul.bf16.gmra.mxu0 %v891
        %v2321 = vpop.f32.mrf.mxu0
        %v2322 = vadd.f32 0.0, %v2321
        %v2323 = vpop.f32.mrf.mxu0
        %v2324 = vadd.f32 0.0, %v2323
        %2325 = vmatmul.bf16.gmra.mxu0 %v894
        %v2326 = vpop.f32.mrf.mxu0
        %v2327 = vadd.f32 0.0, %v2326
        %v2328 = vpop.f32.mrf.mxu0
        %v2329 = vadd.f32 0.0, %v2328
        %2330 = vmatmul.bf16.gmra.mxu0 %v897
        %v2331 = vpop.f32.mrf.mxu0
        %v2332 = vadd.f32 0.0, %v2331
        %v2333 = vpop.f32.mrf.mxu0
        %v2334 = vadd.f32 0.0, %v2333
        %2335 = vmatmul.bf16.gmra.mxu0 %v900
        %v2336 = vpop.f32.mrf.mxu0
        %v2337 = vadd.f32 0.0, %v2336
        %v2338 = vpop.f32.mrf.mxu0
        %v2339 = vadd.f32 0.0, %v2338
        %2340 = vmatmul.bf16.gmra.mxu0 %v903
        %v2341 = vpop.f32.mrf.mxu0
        %v2342 = vadd.f32 0.0, %v2341
        %v2343 = vpop.f32.mrf.mxu0
        %v2344 = vadd.f32 0.0, %v2343
        %2345 = vmatmul.bf16.gmra.mxu0 %v906
        %v2346 = vpop.f32.mrf.mxu0
        %v2347 = vadd.f32 0.0, %v2346
        %v2348 = vpop.f32.mrf.mxu0
        %v2349 = vadd.f32 0.0, %v2348
        %2350 = vmatmul.bf16.gmra.mxu0 %v909
        %v2351 = vpop.f32.mrf.mxu0
        %v2352 = vadd.f32 0.0, %v2351
        %v2353 = vpop.f32.mrf.mxu0
        %v2354 = vadd.f32 0.0, %v2353
        %2355 = vmatmul.bf16.gmra.mxu0 %v912
        %v2356 = vpop.f32.mrf.mxu0
        %v2357 = vadd.f32 0.0, %v2356
        %v2358 = vpop.f32.mrf.mxu0
        %v2359 = vadd.f32 0.0, %v2358
        %2360 = vmatmul.bf16.gmra.mxu0 %v915
        %v2361 = vpop.f32.mrf.mxu0
        %v2362 = vadd.f32 0.0, %v2361
        %v2363 = vpop.f32.mrf.mxu0
        %v2364 = vadd.f32 0.0, %v2363
        %2365 = vmatmul.bf16.gmra.mxu0 %v2187
        %v2366 = vpop.f32.mrf.mxu0
        %v2367 = vadd.f32 0.0, %v2366
        %v2368 = vpop.f32.mrf.mxu0
        %v2369 = vadd.f32 0.0, %v2368
        %2370 = vdwg.mxu0
        %v2371 = vadd.f32 %v2089, %v2203
        %v2372 = vadd.f32 %v2090, %v2292
        %v2373 = vadd.f32 %v2091, %v2205
        %v2374 = vadd.f32 %v2092, %v2294
        %v2375 = vadd.f32 %v2093, %v2208
        %v2376 = vadd.f32 %v2094, %v2297
        %v2377 = vadd.f32 %v2095, %v2210
        %v2378 = vadd.f32 %v2096, %v2299
        %v2379 = vadd.f32 %v2097, %v2213
        %v2380 = vadd.f32 %v2098, %v2302
        %v2381 = vadd.f32 %v2099, %v2215
        %v2382 = vadd.f32 %v2100, %v2304
        %v2383 = vadd.f32 %v2101, %v2218
        %v2384 = vadd.f32 %v2102, %v2307
        %v2385 = vadd.f32 %v2103, %v2220
        %v2386 = vadd.f32 %v2104, %v2309
        %v2387 = vadd.f32 %v2105, %v2223
        %v2388 = vadd.f32 %v2106, %v2312
        %v2389 = vadd.f32 %v2107, %v2225
        %v2390 = vadd.f32 %v2108, %v2314
        %v2391 = vadd.f32 %v2109, %v2228
        %v2392 = vadd.f32 %v2110, %v2317
        %v2393 = vadd.f32 %v2111, %v2230
        %v2394 = vadd.f32 %v2112, %v2319
        %v2395 = vadd.f32 %v2113, %v2233
        %v2396 = vadd.f32 %v2114, %v2322
        %v2397 = vadd.f32 %v2115, %v2235
        %v2398 = vadd.f32 %v2116, %v2324
        %v2399 = vadd.f32 %v2117, %v2238
        %v2400 = vadd.f32 %v2118, %v2327
        %v2401 = vadd.f32 %v2119, %v2240
        %v2402 = vadd.f32 %v2120, %v2329
        %v2403 = vadd.f32 %v2121, %v2243
        %v2404 = vadd.f32 %v2122, %v2332
        %v2405 = vadd.f32 %v2123, %v2245
        %v2406 = vadd.f32 %v2124, %v2334
        %v2407 = vadd.f32 %v2125, %v2248
        %v2408 = vadd.f32 %v2126, %v2337
        %v2409 = vadd.f32 %v2127, %v2250
        %v2410 = vadd.f32 %v2128, %v2339
        %v2411 = vadd.f32 %v2129, %v2253
        %v2412 = vadd.f32 %v2130, %v2342
        %v2413 = vadd.f32 %v2131, %v2255
        %v2414 = vadd.f32 %v2132, %v2344
        %v2415 = vadd.f32 %v2133, %v2258
        %v2416 = vadd.f32 %v2134, %v2347
        %v2417 = vadd.f32 %v2135, %v2260
        %v2418 = vadd.f32 %v2136, %v2349
        %v2419 = vadd.f32 %v2137, %v2263
        %v2420 = vadd.f32 %v2138, %v2352
        %v2421 = vadd.f32 %v2139, %v2265
        %v2422 = vadd.f32 %v2140, %v2354
        %v2423 = vadd.f32 %v2141, %v2268
        %v2424 = vadd.f32 %v2142, %v2357
        %v2425 = vadd.f32 %v2143, %v2270
        %v2426 = vadd.f32 %v2144, %v2359
        %v2427 = vadd.f32 %v2145, %v2273
        %v2428 = vadd.f32 %v2146, %v2362
        %v2429 = vadd.f32 %v2147, %v2275
        %v2430 = vadd.f32 %v2148, %v2364
        %v2431 = vadd.f32 %v2149, %v2278
        %v2432 = vadd.f32 %v2150, %v2367
        %v2433 = vadd.f32 %v2151, %v2280
        %v2434 = vadd.f32 %v2152, %v2369
        %v2436 = vrot.slane %v420, 5
        %v2437 = vrot.slane %v2436, 4
        %v2438 = vrot.slane %v421, 5
        %v2439 = vsel %vm1432, %v2437, %v2438
        %v2440 = vrot.slane %v2438, 4
        %v2441 = vrot.slane %v422, 5
        %v2442 = vsel %vm1432, %v2440, %v2441
        %s2443 = scalar_lea.vmem %s290, 20
        %v2444 = vld [vmem:[%s2443] sm:$0xf]
        %v2445 = vunpack.c.l.b16 %v2439
        %v2446 = vunpack.c.l.b16 %v2442
        %v2447 = vpack.c.b16 %v2446, %v2445
        %2449 = vst [vmem:[#allocation1] ss:$4 sm:$0xff] %v2444
        %v2450 = vld.sshfl [vmem:[#allocation1] sm:$0xff pattern:$0x73625140]
        %v2451 = vld.sshfl [vmem:[#allocation1 + $0x8] sm:$0xff pattern:$0x73625140]
        %v2453 = vsel %vm868, %v2447, 0
        %v2455 = vsel %vm917, %v2450, 0
        %v2457 = vsel %vm917, %v2451, 0
        %2459 = vmatpush.bf16.msra.mxu0 0
        %2460 = vmatpush.bf16.msra.mxu0 0
        %2461 = vmatpush.bf16.msra.mxu0 0
        %2462 = vmatpush.bf16.msra.mxu0 0
        %2463 = vmatpush.bf16.msra.mxu0 0
        %2464 = vmatpush.bf16.msra.mxu0 0
        %2465 = vmatpush.bf16.msra.mxu0 0
        %2466 = vmatpush.bf16.msra.mxu0 %v2455
        %2467 = vmatmul.bf16.gmra.mxu0 %v1603
        %v2468 = vpop.f32.mrf.mxu0
        %v2469 = vadd.f32 0.0, %v2468
        %v2470 = vpop.f32.mrf.mxu0
        %v2471 = vadd.f32 0.0, %v2470
        %2472 = vmatmul.bf16.gmra.mxu0 %v1606
        %v2473 = vpop.f32.mrf.mxu0
        %v2474 = vadd.f32 0.0, %v2473
        %v2475 = vpop.f32.mrf.mxu0
        %v2476 = vadd.f32 0.0, %v2475
        %2477 = vmatmul.bf16.gmra.mxu0 %v1609
        %v2478 = vpop.f32.mrf.mxu0
        %v2479 = vadd.f32 0.0, %v2478
        %v2480 = vpop.f32.mrf.mxu0
        %v2481 = vadd.f32 0.0, %v2480
        %2482 = vmatmul.bf16.gmra.mxu0 %v1612
        %v2483 = vpop.f32.mrf.mxu0
        %v2484 = vadd.f32 0.0, %v2483
        %v2485 = vpop.f32.mrf.mxu0
        %v2486 = vadd.f32 0.0, %v2485
        %2487 = vmatmul.bf16.gmra.mxu0 %v1615
        %v2488 = vpop.f32.mrf.mxu0
        %v2489 = vadd.f32 0.0, %v2488
        %v2490 = vpop.f32.mrf.mxu0
        %v2491 = vadd.f32 0.0, %v2490
        %2492 = vmatmul.bf16.gmra.mxu0 %v1618
        %v2493 = vpop.f32.mrf.mxu0
        %v2494 = vadd.f32 0.0, %v2493
        %v2495 = vpop.f32.mrf.mxu0
        %v2496 = vadd.f32 0.0, %v2495
        %2497 = vmatmul.bf16.gmra.mxu0 %v1621
        %v2498 = vpop.f32.mrf.mxu0
        %v2499 = vadd.f32 0.0, %v2498
        %v2500 = vpop.f32.mrf.mxu0
        %v2501 = vadd.f32 0.0, %v2500
        %2502 = vmatmul.bf16.gmra.mxu0 %v1624
        %v2503 = vpop.f32.mrf.mxu0
        %v2504 = vadd.f32 0.0, %v2503
        %v2505 = vpop.f32.mrf.mxu0
        %v2506 = vadd.f32 0.0, %v2505
        %2507 = vmatmul.bf16.gmra.mxu0 %v1627
        %v2508 = vpop.f32.mrf.mxu0
        %v2509 = vadd.f32 0.0, %v2508
        %v2510 = vpop.f32.mrf.mxu0
        %v2511 = vadd.f32 0.0, %v2510
        %2512 = vmatmul.bf16.gmra.mxu0 %v1630
        %v2513 = vpop.f32.mrf.mxu0
        %v2514 = vadd.f32 0.0, %v2513
        %v2515 = vpop.f32.mrf.mxu0
        %v2516 = vadd.f32 0.0, %v2515
        %2517 = vmatmul.bf16.gmra.mxu0 %v1633
        %v2518 = vpop.f32.mrf.mxu0
        %v2519 = vadd.f32 0.0, %v2518
        %v2520 = vpop.f32.mrf.mxu0
        %v2521 = vadd.f32 0.0, %v2520
        %2522 = vmatmul.bf16.gmra.mxu0 %v1636
        %v2523 = vpop.f32.mrf.mxu0
        %v2524 = vadd.f32 0.0, %v2523
        %v2525 = vpop.f32.mrf.mxu0
        %v2526 = vadd.f32 0.0, %v2525
        %2527 = vmatmul.bf16.gmra.mxu0 %v1639
        %v2528 = vpop.f32.mrf.mxu0
        %v2529 = vadd.f32 0.0, %v2528
        %v2530 = vpop.f32.mrf.mxu0
        %v2531 = vadd.f32 0.0, %v2530
        %2532 = vmatmul.bf16.gmra.mxu0 %v1642
        %v2533 = vpop.f32.mrf.mxu0
        %v2534 = vadd.f32 0.0, %v2533
        %v2535 = vpop.f32.mrf.mxu0
        %v2536 = vadd.f32 0.0, %v2535
        %2537 = vmatmul.bf16.gmra.mxu0 %v1645
        %v2538 = vpop.f32.mrf.mxu0
        %v2539 = vadd.f32 0.0, %v2538
        %v2540 = vpop.f32.mrf.mxu0
        %v2541 = vadd.f32 0.0, %v2540
        %2542 = vmatmul.bf16.gmra.mxu0 %v2453
        %v2543 = vpop.f32.mrf.mxu0
        %v2544 = vadd.f32 0.0, %v2543
        %v2545 = vpop.f32.mrf.mxu0
        %v2546 = vadd.f32 0.0, %v2545
        %2547 = vdwg.mxu0
        %2548 = vmatpush.bf16.msra.mxu0 0
        %2549 = vmatpush.bf16.msra.mxu0 0
        %2550 = vmatpush.bf16.msra.mxu0 0
        %2551 = vmatpush.bf16.msra.mxu0 0
        %2552 = vmatpush.bf16.msra.mxu0 0
        %2553 = vmatpush.bf16.msra.mxu0 0
        %2554 = vmatpush.bf16.msra.mxu0 0
        %2555 = vmatpush.bf16.msra.mxu0 %v2457
        %2556 = vmatmul.bf16.gmra.mxu0 %v1603
        %v2557 = vpop.f32.mrf.mxu0
        %v2558 = vadd.f32 0.0, %v2557
        %v2559 = vpop.f32.mrf.mxu0
        %v2560 = vadd.f32 0.0, %v2559
        %2561 = vmatmul.bf16.gmra.mxu0 %v1606
        %v2562 = vpop.f32.mrf.mxu0
        %v2563 = vadd.f32 0.0, %v2562
        %v2564 = vpop.f32.mrf.mxu0
        %v2565 = vadd.f32 0.0, %v2564
        %2566 = vmatmul.bf16.gmra.mxu0 %v1609
        %v2567 = vpop.f32.mrf.mxu0
        %v2568 = vadd.f32 0.0, %v2567
        %v2569 = vpop.f32.mrf.mxu0
        %v2570 = vadd.f32 0.0, %v2569
        %2571 = vmatmul.bf16.gmra.mxu0 %v1612
        %v2572 = vpop.f32.mrf.mxu0
        %v2573 = vadd.f32 0.0, %v2572
        %v2574 = vpop.f32.mrf.mxu0
        %v2575 = vadd.f32 0.0, %v2574
        %2576 = vmatmul.bf16.gmra.mxu0 %v1615
        %v2577 = vpop.f32.mrf.mxu0
        %v2578 = vadd.f32 0.0, %v2577
        %v2579 = vpop.f32.mrf.mxu0
        %v2580 = vadd.f32 0.0, %v2579
        %2581 = vmatmul.bf16.gmra.mxu0 %v1618
        %v2582 = vpop.f32.mrf.mxu0
        %v2583 = vadd.f32 0.0, %v2582
        %v2584 = vpop.f32.mrf.mxu0
        %v2585 = vadd.f32 0.0, %v2584
        %2586 = vmatmul.bf16.gmra.mxu0 %v1621
        %v2587 = vpop.f32.mrf.mxu0
        %v2588 = vadd.f32 0.0, %v2587
        %v2589 = vpop.f32.mrf.mxu0
        %v2590 = vadd.f32 0.0, %v2589
        %2591 = vmatmul.bf16.gmra.mxu0 %v1624
        %v2592 = vpop.f32.mrf.mxu0
        %v2593 = vadd.f32 0.0, %v2592
        %v2594 = vpop.f32.mrf.mxu0
        %v2595 = vadd.f32 0.0, %v2594
        %2596 = vmatmul.bf16.gmra.mxu0 %v1627
        %v2597 = vpop.f32.mrf.mxu0
        %v2598 = vadd.f32 0.0, %v2597
        %v2599 = vpop.f32.mrf.mxu0
        %v2600 = vadd.f32 0.0, %v2599
        %2601 = vmatmul.bf16.gmra.mxu0 %v1630
        %v2602 = vpop.f32.mrf.mxu0
        %v2603 = vadd.f32 0.0, %v2602
        %v2604 = vpop.f32.mrf.mxu0
        %v2605 = vadd.f32 0.0, %v2604
        %2606 = vmatmul.bf16.gmra.mxu0 %v1633
        %v2607 = vpop.f32.mrf.mxu0
        %v2608 = vadd.f32 0.0, %v2607
        %v2609 = vpop.f32.mrf.mxu0
        %v2610 = vadd.f32 0.0, %v2609
        %2611 = vmatmul.bf16.gmra.mxu0 %v1636
        %v2612 = vpop.f32.mrf.mxu0
        %v2613 = vadd.f32 0.0, %v2612
        %v2614 = vpop.f32.mrf.mxu0
        %v2615 = vadd.f32 0.0, %v2614
        %2616 = vmatmul.bf16.gmra.mxu0 %v1639
        %v2617 = vpop.f32.mrf.mxu0
        %v2618 = vadd.f32 0.0, %v2617
        %v2619 = vpop.f32.mrf.mxu0
        %v2620 = vadd.f32 0.0, %v2619
        %2621 = vmatmul.bf16.gmra.mxu0 %v1642
        %v2622 = vpop.f32.mrf.mxu0
        %v2623 = vadd.f32 0.0, %v2622
        %v2624 = vpop.f32.mrf.mxu0
        %v2625 = vadd.f32 0.0, %v2624
        %2626 = vmatmul.bf16.gmra.mxu0 %v1645
        %v2627 = vpop.f32.mrf.mxu0
        %v2628 = vadd.f32 0.0, %v2627
        %v2629 = vpop.f32.mrf.mxu0
        %v2630 = vadd.f32 0.0, %v2629
        %2631 = vmatmul.bf16.gmra.mxu0 %v2453
        %v2632 = vpop.f32.mrf.mxu0
        %v2633 = vadd.f32 0.0, %v2632
        %v2634 = vpop.f32.mrf.mxu0
        %v2635 = vadd.f32 0.0, %v2634
        %2636 = vdwg.mxu0
        %v2637 = vadd.f32 %v2371, %v2469
        %v2638 = vadd.f32 %v2372, %v2558
        %v2639 = vadd.f32 %v2373, %v2471
        %v2640 = vadd.f32 %v2374, %v2560
        %v2641 = vadd.f32 %v2375, %v2474
        %v2642 = vadd.f32 %v2376, %v2563
        %v2643 = vadd.f32 %v2377, %v2476
        %v2644 = vadd.f32 %v2378, %v2565
        %v2645 = vadd.f32 %v2379, %v2479
        %v2646 = vadd.f32 %v2380, %v2568
        %v2647 = vadd.f32 %v2381, %v2481
        %v2648 = vadd.f32 %v2382, %v2570
        %v2649 = vadd.f32 %v2383, %v2484
        %v2650 = vadd.f32 %v2384, %v2573
        %v2651 = vadd.f32 %v2385, %v2486
        %v2652 = vadd.f32 %v2386, %v2575
        %v2653 = vadd.f32 %v2387, %v2489
        %v2654 = vadd.f32 %v2388, %v2578
        %v2655 = vadd.f32 %v2389, %v2491
        %v2656 = vadd.f32 %v2390, %v2580
        %v2657 = vadd.f32 %v2391, %v2494
        %v2658 = vadd.f32 %v2392, %v2583
        %v2659 = vadd.f32 %v2393, %v2496
        %v2660 = vadd.f32 %v2394, %v2585
        %v2661 = vadd.f32 %v2395, %v2499
        %v2662 = vadd.f32 %v2396, %v2588
        %v2663 = vadd.f32 %v2397, %v2501
        %v2664 = vadd.f32 %v2398, %v2590
        %v2665 = vadd.f32 %v2399, %v2504
        %v2666 = vadd.f32 %v2400, %v2593
        %v2667 = vadd.f32 %v2401, %v2506
        %v2668 = vadd.f32 %v2402, %v2595
        %v2669 = vadd.f32 %v2403, %v2509
        %v2670 = vadd.f32 %v2404, %v2598
        %v2671 = vadd.f32 %v2405, %v2511
        %v2672 = vadd.f32 %v2406, %v2600
        %v2673 = vadd.f32 %v2407, %v2514
        %v2674 = vadd.f32 %v2408, %v2603
        %v2675 = vadd.f32 %v2409, %v2516
        %v2676 = vadd.f32 %v2410, %v2605
        %v2677 = vadd.f32 %v2411, %v2519
        %v2678 = vadd.f32 %v2412, %v2608
        %v2679 = vadd.f32 %v2413, %v2521
        %v2680 = vadd.f32 %v2414, %v2610
        %v2681 = vadd.f32 %v2415, %v2524
        %v2682 = vadd.f32 %v2416, %v2613
        %v2683 = vadd.f32 %v2417, %v2526
        %v2684 = vadd.f32 %v2418, %v2615
        %v2685 = vadd.f32 %v2419, %v2529
        %v2686 = vadd.f32 %v2420, %v2618
        %v2687 = vadd.f32 %v2421, %v2531
        %v2688 = vadd.f32 %v2422, %v2620
        %v2689 = vadd.f32 %v2423, %v2534
        %v2690 = vadd.f32 %v2424, %v2623
        %v2691 = vadd.f32 %v2425, %v2536
        %v2692 = vadd.f32 %v2426, %v2625
        %v2693 = vadd.f32 %v2427, %v2539
        %v2694 = vadd.f32 %v2428, %v2628
        %v2695 = vadd.f32 %v2429, %v2541
        %v2696 = vadd.f32 %v2430, %v2630
        %v2697 = vadd.f32 %v2431, %v2544
        %v2698 = vadd.f32 %v2432, %v2633
        %v2699 = vadd.f32 %v2433, %v2546
        %v2700 = vadd.f32 %v2434, %v2635
        %s2701 = scalar_lea.vmem %s290, 24
        %v2702 = vld [vmem:[%s2701] sm:$0xf]
        %v2705 = vunpack.c.l.b16 %v423
        %v2706 = vunpack.c.l.b16 %v424
        %v2707 = vpack.c.b16 %v2706, %v2705
        %2709 = vst [vmem:[#allocation1] ss:$4 sm:$0xff] %v2702
        %v2710 = vld.sshfl [vmem:[#allocation1] sm:$0xff pattern:$0x73625140]
        %v2711 = vld.sshfl [vmem:[#allocation1 + $0x8] sm:$0xff pattern:$0x73625140]
        %v2713 = vsel %vm868, %v2707, 0
        %v2715 = vsel %vm917, %v2710, 0
        %v2717 = vsel %vm917, %v2711, 0
        %2719 = vmatpush.bf16.msra.mxu0 0
        %2720 = vmatpush.bf16.msra.mxu0 0
        %2721 = vmatpush.bf16.msra.mxu0 0
        %2722 = vmatpush.bf16.msra.mxu0 0
        %2723 = vmatpush.bf16.msra.mxu0 0
        %2724 = vmatpush.bf16.msra.mxu0 0
        %2725 = vmatpush.bf16.msra.mxu0 0
        %2726 = vmatpush.bf16.msra.mxu0 %v2715
        %2727 = vmatmul.bf16.gmra.mxu0 %v1191
        %v2728 = vpop.f32.mrf.mxu0
        %v2729 = vadd.f32 0.0, %v2728
        %v2730 = vpop.f32.mrf.mxu0
        %v2731 = vadd.f32 0.0, %v2730
        %2732 = vmatmul.bf16.gmra.mxu0 %v1194
        %v2733 = vpop.f32.mrf.mxu0
        %v2734 = vadd.f32 0.0, %v2733
        %v2735 = vpop.f32.mrf.mxu0
        %v2736 = vadd.f32 0.0, %v2735
        %2737 = vmatmul.bf16.gmra.mxu0 %v1197
        %v2738 = vpop.f32.mrf.mxu0
        %v2739 = vadd.f32 0.0, %v2738
        %v2740 = vpop.f32.mrf.mxu0
        %v2741 = vadd.f32 0.0, %v2740
        %2742 = vmatmul.bf16.gmra.mxu0 %v1200
        %v2743 = vpop.f32.mrf.mxu0
        %v2744 = vadd.f32 0.0, %v2743
        %v2745 = vpop.f32.mrf.mxu0
        %v2746 = vadd.f32 0.0, %v2745
        %2747 = vmatmul.bf16.gmra.mxu0 %v1203
        %v2748 = vpop.f32.mrf.mxu0
        %v2749 = vadd.f32 0.0, %v2748
        %v2750 = vpop.f32.mrf.mxu0
        %v2751 = vadd.f32 0.0, %v2750
        %2752 = vmatmul.bf16.gmra.mxu0 %v1206
        %v2753 = vpop.f32.mrf.mxu0
        %v2754 = vadd.f32 0.0, %v2753
        %v2755 = vpop.f32.mrf.mxu0
        %v2756 = vadd.f32 0.0, %v2755
        %2757 = vmatmul.bf16.gmra.mxu0 %v1209
        %v2758 = vpop.f32.mrf.mxu0
        %v2759 = vadd.f32 0.0, %v2758
        %v2760 = vpop.f32.mrf.mxu0
        %v2761 = vadd.f32 0.0, %v2760
        %2762 = vmatmul.bf16.gmra.mxu0 %v1212
        %v2763 = vpop.f32.mrf.mxu0
        %v2764 = vadd.f32 0.0, %v2763
        %v2765 = vpop.f32.mrf.mxu0
        %v2766 = vadd.f32 0.0, %v2765
        %2767 = vmatmul.bf16.gmra.mxu0 %v1215
        %v2768 = vpop.f32.mrf.mxu0
        %v2769 = vadd.f32 0.0, %v2768
        %v2770 = vpop.f32.mrf.mxu0
        %v2771 = vadd.f32 0.0, %v2770
        %2772 = vmatmul.bf16.gmra.mxu0 %v1218
        %v2773 = vpop.f32.mrf.mxu0
        %v2774 = vadd.f32 0.0, %v2773
        %v2775 = vpop.f32.mrf.mxu0
        %v2776 = vadd.f32 0.0, %v2775
        %2777 = vmatmul.bf16.gmra.mxu0 %v1221
        %v2778 = vpop.f32.mrf.mxu0
        %v2779 = vadd.f32 0.0, %v2778
        %v2780 = vpop.f32.mrf.mxu0
        %v2781 = vadd.f32 0.0, %v2780
        %2782 = vmatmul.bf16.gmra.mxu0 %v1224
        %v2783 = vpop.f32.mrf.mxu0
        %v2784 = vadd.f32 0.0, %v2783
        %v2785 = vpop.f32.mrf.mxu0
        %v2786 = vadd.f32 0.0, %v2785
        %2787 = vmatmul.bf16.gmra.mxu0 %v1227
        %v2788 = vpop.f32.mrf.mxu0
        %v2789 = vadd.f32 0.0, %v2788
        %v2790 = vpop.f32.mrf.mxu0
        %v2791 = vadd.f32 0.0, %v2790
        %2792 = vmatmul.bf16.gmra.mxu0 %v1230
        %v2793 = vpop.f32.mrf.mxu0
        %v2794 = vadd.f32 0.0, %v2793
        %v2795 = vpop.f32.mrf.mxu0
        %v2796 = vadd.f32 0.0, %v2795
        %2797 = vmatmul.bf16.gmra.mxu0 %v1905
        %v2798 = vpop.f32.mrf.mxu0
        %v2799 = vadd.f32 0.0, %v2798
        %v2800 = vpop.f32.mrf.mxu0
        %v2801 = vadd.f32 0.0, %v2800
        %2802 = vmatmul.bf16.gmra.mxu0 %v2713
        %v2803 = vpop.f32.mrf.mxu0
        %v2804 = vadd.f32 0.0, %v2803
        %v2805 = vpop.f32.mrf.mxu0
        %v2806 = vadd.f32 0.0, %v2805
        %2807 = vdwg.mxu0
        %2808 = vmatpush.bf16.msra.mxu0 0
        %2809 = vmatpush.bf16.msra.mxu0 0
        %2810 = vmatpush.bf16.msra.mxu0 0
        %2811 = vmatpush.bf16.msra.mxu0 0
        %2812 = vmatpush.bf16.msra.mxu0 0
        %2813 = vmatpush.bf16.msra.mxu0 0
        %2814 = vmatpush.bf16.msra.mxu0 0
        %2815 = vmatpush.bf16.msra.mxu0 %v2717
        %2816 = vmatmul.bf16.gmra.mxu0 %v1191
        %v2817 = vpop.f32.mrf.mxu0
        %v2818 = vadd.f32 0.0, %v2817
        %v2819 = vpop.f32.mrf.mxu0
        %v2820 = vadd.f32 0.0, %v2819
        %2821 = vmatmul.bf16.gmra.mxu0 %v1194
        %v2822 = vpop.f32.mrf.mxu0
        %v2823 = vadd.f32 0.0, %v2822
        %v2824 = vpop.f32.mrf.mxu0
        %v2825 = vadd.f32 0.0, %v2824
        %2826 = vmatmul.bf16.gmra.mxu0 %v1197
        %v2827 = vpop.f32.mrf.mxu0
        %v2828 = vadd.f32 0.0, %v2827
        %v2829 = vpop.f32.mrf.mxu0
        %v2830 = vadd.f32 0.0, %v2829
        %2831 = vmatmul.bf16.gmra.mxu0 %v1200
        %v2832 = vpop.f32.mrf.mxu0
        %v2833 = vadd.f32 0.0, %v2832
        %v2834 = vpop.f32.mrf.mxu0
        %v2835 = vadd.f32 0.0, %v2834
        %2836 = vmatmul.bf16.gmra.mxu0 %v1203
        %v2837 = vpop.f32.mrf.mxu0
        %v2838 = vadd.f32 0.0, %v2837
        %v2839 = vpop.f32.mrf.mxu0
        %v2840 = vadd.f32 0.0, %v2839
        %2841 = vmatmul.bf16.gmra.mxu0 %v1206
        %v2842 = vpop.f32.mrf.mxu0
        %v2843 = vadd.f32 0.0, %v2842
        %v2844 = vpop.f32.mrf.mxu0
        %v2845 = vadd.f32 0.0, %v2844
        %2846 = vmatmul.bf16.gmra.mxu0 %v1209
        %v2847 = vpop.f32.mrf.mxu0
        %v2848 = vadd.f32 0.0, %v2847
        %v2849 = vpop.f32.mrf.mxu0
        %v2850 = vadd.f32 0.0, %v2849
        %2851 = vmatmul.bf16.gmra.mxu0 %v1212
        %v2852 = vpop.f32.mrf.mxu0
        %v2853 = vadd.f32 0.0, %v2852
        %v2854 = vpop.f32.mrf.mxu0
        %v2855 = vadd.f32 0.0, %v2854
        %2856 = vmatmul.bf16.gmra.mxu0 %v1215
        %v2857 = vpop.f32.mrf.mxu0
        %v2858 = vadd.f32 0.0, %v2857
        %v2859 = vpop.f32.mrf.mxu0
        %v2860 = vadd.f32 0.0, %v2859
        %2861 = vmatmul.bf16.gmra.mxu0 %v1218
        %v2862 = vpop.f32.mrf.mxu0
        %v2863 = vadd.f32 0.0, %v2862
        %v2864 = vpop.f32.mrf.mxu0
        %v2865 = vadd.f32 0.0, %v2864
        %2866 = vmatmul.bf16.gmra.mxu0 %v1221
        %v2867 = vpop.f32.mrf.mxu0
        %v2868 = vadd.f32 0.0, %v2867
        %v2869 = vpop.f32.mrf.mxu0
        %v2870 = vadd.f32 0.0, %v2869
        %2871 = vmatmul.bf16.gmra.mxu0 %v1224
        %v2872 = vpop.f32.mrf.mxu0
        %v2873 = vadd.f32 0.0, %v2872
        %v2874 = vpop.f32.mrf.mxu0
        %v2875 = vadd.f32 0.0, %v2874
        %2876 = vmatmul.bf16.gmra.mxu0 %v1227
        %v2877 = vpop.f32.mrf.mxu0
        %v2878 = vadd.f32 0.0, %v2877
        %v2879 = vpop.f32.mrf.mxu0
        %v2880 = vadd.f32 0.0, %v2879
        %2881 = vmatmul.bf16.gmra.mxu0 %v1230
        %v2882 = vpop.f32.mrf.mxu0
        %v2883 = vadd.f32 0.0, %v2882
        %v2884 = vpop.f32.mrf.mxu0
        %v2885 = vadd.f32 0.0, %v2884
        %2886 = vmatmul.bf16.gmra.mxu0 %v1905
        %v2887 = vpop.f32.mrf.mxu0
        %v2888 = vadd.f32 0.0, %v2887
        %v2889 = vpop.f32.mrf.mxu0
        %v2890 = vadd.f32 0.0, %v2889
        %2891 = vmatmul.bf16.gmra.mxu0 %v2713
        %v2892 = vpop.f32.mrf.mxu0
        %v2893 = vadd.f32 0.0, %v2892
        %v2894 = vpop.f32.mrf.mxu0
        %v2895 = vadd.f32 0.0, %v2894
        %2896 = vdwg.mxu0
        %v2897 = vadd.f32 %v2637, %v2729
        %v2898 = vadd.f32 %v2638, %v2818
        %v2899 = vadd.f32 %v2639, %v2731
        %v2900 = vadd.f32 %v2640, %v2820
        %v2901 = vadd.f32 %v2641, %v2734
        %v2902 = vadd.f32 %v2642, %v2823
        %v2903 = vadd.f32 %v2643, %v2736
        %v2904 = vadd.f32 %v2644, %v2825
        %v2905 = vadd.f32 %v2645, %v2739
        %v2906 = vadd.f32 %v2646, %v2828
        %v2907 = vadd.f32 %v2647, %v2741
        %v2908 = vadd.f32 %v2648, %v2830
        %v2909 = vadd.f32 %v2649, %v2744
        %v2910 = vadd.f32 %v2650, %v2833
        %v2911 = vadd.f32 %v2651, %v2746
        %v2912 = vadd.f32 %v2652, %v2835
        %v2913 = vadd.f32 %v2653, %v2749
        %v2914 = vadd.f32 %v2654, %v2838
        %v2915 = vadd.f32 %v2655, %v2751
        %v2916 = vadd.f32 %v2656, %v2840
        %v2917 = vadd.f32 %v2657, %v2754
        %v2918 = vadd.f32 %v2658, %v2843
        %v2919 = vadd.f32 %v2659, %v2756
        %v2920 = vadd.f32 %v2660, %v2845
        %v2921 = vadd.f32 %v2661, %v2759
        %v2922 = vadd.f32 %v2662, %v2848
        %v2923 = vadd.f32 %v2663, %v2761
        %v2924 = vadd.f32 %v2664, %v2850
        %v2925 = vadd.f32 %v2665, %v2764
        %v2926 = vadd.f32 %v2666, %v2853
        %v2927 = vadd.f32 %v2667, %v2766
        %v2928 = vadd.f32 %v2668, %v2855
        %v2929 = vadd.f32 %v2669, %v2769
        %v2930 = vadd.f32 %v2670, %v2858
        %v2931 = vadd.f32 %v2671, %v2771
        %v2932 = vadd.f32 %v2672, %v2860
        %v2933 = vadd.f32 %v2673, %v2774
        %v2934 = vadd.f32 %v2674, %v2863
        %v2935 = vadd.f32 %v2675, %v2776
        %v2936 = vadd.f32 %v2676, %v2865
        %v2937 = vadd.f32 %v2677, %v2779
        %v2938 = vadd.f32 %v2678, %v2868
        %v2939 = vadd.f32 %v2679, %v2781
        %v2940 = vadd.f32 %v2680, %v2870
        %v2941 = vadd.f32 %v2681, %v2784
        %v2942 = vadd.f32 %v2682, %v2873
        %v2943 = vadd.f32 %v2683, %v2786
        %v2944 = vadd.f32 %v2684, %v2875
        %v2945 = vadd.f32 %v2685, %v2789
        %v2946 = vadd.f32 %v2686, %v2878
        %v2947 = vadd.f32 %v2687, %v2791
        %v2948 = vadd.f32 %v2688, %v2880
        %v2949 = vadd.f32 %v2689, %v2794
        %v2950 = vadd.f32 %v2690, %v2883
        %v2951 = vadd.f32 %v2691, %v2796
        %v2952 = vadd.f32 %v2692, %v2885
        %v2953 = vadd.f32 %v2693, %v2799
        %v2954 = vadd.f32 %v2694, %v2888
        %v2955 = vadd.f32 %v2695, %v2801
        %v2956 = vadd.f32 %v2696, %v2890
        %v2957 = vadd.f32 %v2697, %v2804
        %v2958 = vadd.f32 %v2698, %v2893
        %v2959 = vadd.f32 %v2699, %v2806
        %v2960 = vadd.f32 %v2700, %v2895
        %v2962 = vshrl.u32 %v423, 16
        %v2964 = vrot.slane %v2962, 4
        %v2965 = vshll.u32 %v423, 16
        %v2967 = vrot.slane %v2965, 5
        %v2968 = vor.u32 %v2964, %v2967
        %v2969 = vrot.slane %v2968, 4
        %v2971 = vshll.u32 %v424, 16
        %v2973 = vrot.slane %v2971, 5
        %v2974 = vsel %vm429, %v2969, %v2973
        %v2975 = vshrl.u32 %v424, 16
        %v2977 = vrot.slane %v2975, 4
        %v2978 = vor.u32 %v2977, %v2973
        %v2979 = vrot.slane %v2978, 4
        %v2981 = vshll.u32 %v425, 16
        %v2983 = vrot.slane %v2981, 5
        %v2984 = vsel %vm429, %v2979, %v2983
        %s2985 = scalar_lea.vmem %s290, 28
        %v2986 = vld [vmem:[%s2985] sm:$0xf]
        %v2987 = vunpack.c.l.b16 %v2974
        %v2988 = vunpack.c.l.b16 %v2984
        %v2989 = vpack.c.b16 %v2988, %v2987
        %2991 = vst [vmem:[#allocation1] ss:$4 sm:$0xff] %v2986
        %v2992 = vld.sshfl [vmem:[#allocation1] sm:$0xff pattern:$0x73625140]
        %v2993 = vld.sshfl [vmem:[#allocation1 + $0x8] sm:$0xff pattern:$0x73625140]
        %v2995 = vsel %vm868, %v2989, 0
        %v2997 = vsel %vm917, %v2992, 0
        %v2999 = vsel %vm917, %v2993, 0
        %3001 = vmatpush.bf16.msra.mxu0 0
        %3002 = vmatpush.bf16.msra.mxu0 0
        %3003 = vmatpush.bf16.msra.mxu0 0
        %3004 = vmatpush.bf16.msra.mxu0 0
        %3005 = vmatpush.bf16.msra.mxu0 0
        %3006 = vmatpush.bf16.msra.mxu0 0
        %3007 = vmatpush.bf16.msra.mxu0 0
        %3008 = vmatpush.bf16.msra.mxu0 %v2997
        %3009 = vmatmul.bf16.gmra.mxu0 %v876
        %v3010 = vpop.f32.mrf.mxu0
        %v3011 = vadd.f32 0.0, %v3010
        %v3012 = vpop.f32.mrf.mxu0
        %v3013 = vadd.f32 0.0, %v3012
        %3014 = vmatmul.bf16.gmra.mxu0 %v879
        %v3015 = vpop.f32.mrf.mxu0
        %v3016 = vadd.f32 0.0, %v3015
        %v3017 = vpop.f32.mrf.mxu0
        %v3018 = vadd.f32 0.0, %v3017
        %3019 = vmatmul.bf16.gmra.mxu0 %v882
        %v3020 = vpop.f32.mrf.mxu0
        %v3021 = vadd.f32 0.0, %v3020
        %v3022 = vpop.f32.mrf.mxu0
        %v3023 = vadd.f32 0.0, %v3022
        %3024 = vmatmul.bf16.gmra.mxu0 %v885
        %v3025 = vpop.f32.mrf.mxu0
        %v3026 = vadd.f32 0.0, %v3025
        %v3027 = vpop.f32.mrf.mxu0
        %v3028 = vadd.f32 0.0, %v3027
        %3029 = vmatmul.bf16.gmra.mxu0 %v888
        %v3030 = vpop.f32.mrf.mxu0
        %v3031 = vadd.f32 0.0, %v3030
        %v3032 = vpop.f32.mrf.mxu0
        %v3033 = vadd.f32 0.0, %v3032
        %3034 = vmatmul.bf16.gmra.mxu0 %v891
        %v3035 = vpop.f32.mrf.mxu0
        %v3036 = vadd.f32 0.0, %v3035
        %v3037 = vpop.f32.mrf.mxu0
        %v3038 = vadd.f32 0.0, %v3037
        %3039 = vmatmul.bf16.gmra.mxu0 %v894
        %v3040 = vpop.f32.mrf.mxu0
        %v3041 = vadd.f32 0.0, %v3040
        %v3042 = vpop.f32.mrf.mxu0
        %v3043 = vadd.f32 0.0, %v3042
        %3044 = vmatmul.bf16.gmra.mxu0 %v897
        %v3045 = vpop.f32.mrf.mxu0
        %v3046 = vadd.f32 0.0, %v3045
        %v3047 = vpop.f32.mrf.mxu0
        %v3048 = vadd.f32 0.0, %v3047
        %3049 = vmatmul.bf16.gmra.mxu0 %v900
        %v3050 = vpop.f32.mrf.mxu0
        %v3051 = vadd.f32 0.0, %v3050
        %v3052 = vpop.f32.mrf.mxu0
        %v3053 = vadd.f32 0.0, %v3052
        %3054 = vmatmul.bf16.gmra.mxu0 %v903
        %v3055 = vpop.f32.mrf.mxu0
        %v3056 = vadd.f32 0.0, %v3055
        %v3057 = vpop.f32.mrf.mxu0
        %v3058 = vadd.f32 0.0, %v3057
        %3059 = vmatmul.bf16.gmra.mxu0 %v906
        %v3060 = vpop.f32.mrf.mxu0
        %v3061 = vadd.f32 0.0, %v3060
        %v3062 = vpop.f32.mrf.mxu0
        %v3063 = vadd.f32 0.0, %v3062
        %3064 = vmatmul.bf16.gmra.mxu0 %v909
        %v3065 = vpop.f32.mrf.mxu0
        %v3066 = vadd.f32 0.0, %v3065
        %v3067 = vpop.f32.mrf.mxu0
        %v3068 = vadd.f32 0.0, %v3067
        %3069 = vmatmul.bf16.gmra.mxu0 %v912
        %v3070 = vpop.f32.mrf.mxu0
        %v3071 = vadd.f32 0.0, %v3070
        %v3072 = vpop.f32.mrf.mxu0
        %v3073 = vadd.f32 0.0, %v3072
        %3074 = vmatmul.bf16.gmra.mxu0 %v915
        %v3075 = vpop.f32.mrf.mxu0
        %v3076 = vadd.f32 0.0, %v3075
        %v3077 = vpop.f32.mrf.mxu0
        %v3078 = vadd.f32 0.0, %v3077
        %3079 = vmatmul.bf16.gmra.mxu0 %v2187
        %v3080 = vpop.f32.mrf.mxu0
        %v3081 = vadd.f32 0.0, %v3080
        %v3082 = vpop.f32.mrf.mxu0
        %v3083 = vadd.f32 0.0, %v3082
        %3084 = vmatmul.bf16.gmra.mxu0 %v2995
        %v3085 = vpop.f32.mrf.mxu0
        %v3086 = vadd.f32 0.0, %v3085
        %v3087 = vpop.f32.mrf.mxu0
        %v3088 = vadd.f32 0.0, %v3087
        %3089 = vdwg.mxu0
        %3090 = vmatpush.bf16.msra.mxu0 0
        %3091 = vmatpush.bf16.msra.mxu0 0
        %3092 = vmatpush.bf16.msra.mxu0 0
        %3093 = vmatpush.bf16.msra.mxu0 0
        %3094 = vmatpush.bf16.msra.mxu0 0
        %3095 = vmatpush.bf16.msra.mxu0 0
        %3096 = vmatpush.bf16.msra.mxu0 0
        %3097 = vmatpush.bf16.msra.mxu0 %v2999
        %3098 = vmatmul.bf16.gmra.mxu0 %v876
        %v3099 = vpop.f32.mrf.mxu0
        %v3100 = vadd.f32 0.0, %v3099
        %v3101 = vpop.f32.mrf.mxu0
        %v3102 = vadd.f32 0.0, %v3101
        %3103 = vmatmul.bf16.gmra.mxu0 %v879
        %v3104 = vpop.f32.mrf.mxu0
        %v3105 = vadd.f32 0.0, %v3104
        %v3106 = vpop.f32.mrf.mxu0
        %v3107 = vadd.f32 0.0, %v3106
        %3108 = vmatmul.bf16.gmra.mxu0 %v882
        %v3109 = vpop.f32.mrf.mxu0
        %v3110 = vadd.f32 0.0, %v3109
        %v3111 = vpop.f32.mrf.mxu0
        %v3112 = vadd.f32 0.0, %v3111
        %3113 = vmatmul.bf16.gmra.mxu0 %v885
        %v3114 = vpop.f32.mrf.mxu0
        %v3115 = vadd.f32 0.0, %v3114
        %v3116 = vpop.f32.mrf.mxu0
        %v3117 = vadd.f32 0.0, %v3116
        %3118 = vmatmul.bf16.gmra.mxu0 %v888
        %v3119 = vpop.f32.mrf.mxu0
        %v3120 = vadd.f32 0.0, %v3119
        %v3121 = vpop.f32.mrf.mxu0
        %v3122 = vadd.f32 0.0, %v3121
        %3123 = vmatmul.bf16.gmra.mxu0 %v891
        %v3124 = vpop.f32.mrf.mxu0
        %v3125 = vadd.f32 0.0, %v3124
        %v3126 = vpop.f32.mrf.mxu0
        %v3127 = vadd.f32 0.0, %v3126
        %3128 = vmatmul.bf16.gmra.mxu0 %v894
        %v3129 = vpop.f32.mrf.mxu0
        %v3130 = vadd.f32 0.0, %v3129
        %v3131 = vpop.f32.mrf.mxu0
        %v3132 = vadd.f32 0.0, %v3131
        %3133 = vmatmul.bf16.gmra.mxu0 %v897
        %v3134 = vpop.f32.mrf.mxu0
        %v3135 = vadd.f32 0.0, %v3134
        %v3136 = vpop.f32.mrf.mxu0
        %v3137 = vadd.f32 0.0, %v3136
        %3138 = vmatmul.bf16.gmra.mxu0 %v900
        %v3139 = vpop.f32.mrf.mxu0
        %v3140 = vadd.f32 0.0, %v3139
        %v3141 = vpop.f32.mrf.mxu0
        %v3142 = vadd.f32 0.0, %v3141
        %3143 = vmatmul.bf16.gmra.mxu0 %v903
        %v3144 = vpop.f32.mrf.mxu0
        %v3145 = vadd.f32 0.0, %v3144
        %v3146 = vpop.f32.mrf.mxu0
        %v3147 = vadd.f32 0.0, %v3146
        %3148 = vmatmul.bf16.gmra.mxu0 %v906
        %v3149 = vpop.f32.mrf.mxu0
        %v3150 = vadd.f32 0.0, %v3149
        %v3151 = vpop.f32.mrf.mxu0
        %v3152 = vadd.f32 0.0, %v3151
        %3153 = vmatmul.bf16.gmra.mxu0 %v909
        %v3154 = vpop.f32.mrf.mxu0
        %v3155 = vadd.f32 0.0, %v3154
        %v3156 = vpop.f32.mrf.mxu0
        %v3157 = vadd.f32 0.0, %v3156
        %3158 = vmatmul.bf16.gmra.mxu0 %v912
        %v3159 = vpop.f32.mrf.mxu0
        %v3160 = vadd.f32 0.0, %v3159
        %v3161 = vpop.f32.mrf.mxu0
        %v3162 = vadd.f32 0.0, %v3161
        %3163 = vmatmul.bf16.gmra.mxu0 %v915
        %v3164 = vpop.f32.mrf.mxu0
        %v3165 = vadd.f32 0.0, %v3164
        %v3166 = vpop.f32.mrf.mxu0
        %v3167 = vadd.f32 0.0, %v3166
        %3168 = vmatmul.bf16.gmra.mxu0 %v2187
        %v3169 = vpop.f32.mrf.mxu0
        %v3170 = vadd.f32 0.0, %v3169
        %v3171 = vpop.f32.mrf.mxu0
        %v3172 = vadd.f32 0.0, %v3171
        %3173 = vmatmul.bf16.gmra.mxu0 %v2995
        %v3174 = vpop.f32.mrf.mxu0
        %v3175 = vadd.f32 0.0, %v3174
        %v3176 = vpop.f32.mrf.mxu0
        %v3177 = vadd.f32 0.0, %v3176
        %3178 = vdwg.mxu0
        %v3179 = vadd.f32 %v2897, %v3011
        %v3180 = vadd.f32 %v2898, %v3100
        %v3181 = vadd.f32 %v2899, %v3013
        %v3182 = vadd.f32 %v2900, %v3102
        %v3183 = vadd.f32 %v2901, %v3016
        %v3184 = vadd.f32 %v2902, %v3105
        %v3185 = vadd.f32 %v2903, %v3018
        %v3186 = vadd.f32 %v2904, %v3107
        %v3187 = vadd.f32 %v2905, %v3021
        %v3188 = vadd.f32 %v2906, %v3110
        %v3189 = vadd.f32 %v2907, %v3023
        %v3190 = vadd.f32 %v2908, %v3112
        %v3191 = vadd.f32 %v2909, %v3026
        %v3192 = vadd.f32 %v2910, %v3115
        %v3193 = vadd.f32 %v2911, %v3028
        %v3194 = vadd.f32 %v2912, %v3117
        %v3195 = vadd.f32 %v2913, %v3031
        %v3196 = vadd.f32 %v2914, %v3120
        %v3197 = vadd.f32 %v2915, %v3033
        %v3198 = vadd.f32 %v2916, %v3122
        %v3199 = vadd.f32 %v2917, %v3036
        %v3200 = vadd.f32 %v2918, %v3125
        %v3201 = vadd.f32 %v2919, %v3038
        %v3202 = vadd.f32 %v2920, %v3127
        %v3203 = vadd.f32 %v2921, %v3041
        %v3204 = vadd.f32 %v2922, %v3130
        %v3205 = vadd.f32 %v2923, %v3043
        %v3206 = vadd.f32 %v2924, %v3132
        %v3207 = vadd.f32 %v2925, %v3046
        %v3208 = vadd.f32 %v2926, %v3135
        %v3209 = vadd.f32 %v2927, %v3048
        %v3210 = vadd.f32 %v2928, %v3137
        %v3211 = vadd.f32 %v2929, %v3051
        %v3212 = vadd.f32 %v2930, %v3140
        %v3213 = vadd.f32 %v2931, %v3053
        %v3214 = vadd.f32 %v2932, %v3142
        %v3215 = vadd.f32 %v2933, %v3056
        %v3216 = vadd.f32 %v2934, %v3145
        %v3217 = vadd.f32 %v2935, %v3058
        %v3218 = vadd.f32 %v2936, %v3147
        %v3219 = vadd.f32 %v2937, %v3061
        %v3220 = vadd.f32 %v2938, %v3150
        %v3221 = vadd.f32 %v2939, %v3063
        %v3222 = vadd.f32 %v2940, %v3152
        %v3223 = vadd.f32 %v2941, %v3066
        %v3224 = vadd.f32 %v2942, %v3155
        %v3225 = vadd.f32 %v2943, %v3068
        %v3226 = vadd.f32 %v2944, %v3157
        %v3227 = vadd.f32 %v2945, %v3071
        %v3228 = vadd.f32 %v2946, %v3160
        %v3229 = vadd.f32 %v2947, %v3073
        %v3230 = vadd.f32 %v2948, %v3162
        %v3231 = vadd.f32 %v2949, %v3076
        %v3232 = vadd.f32 %v2950, %v3165
        %v3233 = vadd.f32 %v2951, %v3078
        %v3234 = vadd.f32 %v2952, %v3167
        %v3235 = vadd.f32 %v2953, %v3081
        %v3236 = vadd.f32 %v2954, %v3170
        %v3237 = vadd.f32 %v2955, %v3083
        %v3238 = vadd.f32 %v2956, %v3172
        %v3239 = vadd.f32 %v2957, %v3086
        %v3240 = vadd.f32 %v2958, %v3175
        %v3241 = vadd.f32 %v2959, %v3088
        %v3242 = vadd.f32 %v2960, %v3177
        %v3244 = vrot.slane %v423, 5
        %v3245 = vrot.slane %v3244, 4
        %v3246 = vrot.slane %v424, 5
        %v3247 = vsel %vm1432, %v3245, %v3246
        %v3248 = vrot.slane %v3246, 4
        %v3249 = vrot.slane %v425, 5
        %v3250 = vsel %vm1432, %v3248, %v3249
        %s3251 = scalar_lea.vmem %s290, 32
        %v3252 = vld [vmem:[%s3251] sm:$0xf]
        %v3253 = vunpack.c.l.b16 %v3247
        %v3254 = vunpack.c.l.b16 %v3250
        %v3255 = vpack.c.b16 %v3254, %v3253
        %3257 = vst [vmem:[#allocation1] ss:$4 sm:$0xff] %v3252
        %v3258 = vld.sshfl [vmem:[#allocation1] sm:$0xff pattern:$0x73625140]
        %v3259 = vld.sshfl [vmem:[#allocation1 + $0x8] sm:$0xff pattern:$0x73625140]
        %v3261 = vsel %vm868, %v3255, 0
        %v3263 = vsel %vm917, %v3258, 0
        %v3265 = vsel %vm917, %v3259, 0
        %3267 = vmatpush.bf16.msra.mxu0 0
        %3268 = vmatpush.bf16.msra.mxu0 0
        %3269 = vmatpush.bf16.msra.mxu0 0
        %3270 = vmatpush.bf16.msra.mxu0 0
        %3271 = vmatpush.bf16.msra.mxu0 0
        %3272 = vmatpush.bf16.msra.mxu0 0
        %3273 = vmatpush.bf16.msra.mxu0 0
        %3274 = vmatpush.bf16.msra.mxu0 %v3263
        %3275 = vmatmul.bf16.gmra.mxu0 %v1606
        %v3276 = vpop.f32.mrf.mxu0
        %v3277 = vadd.f32 0.0, %v3276
        %v3278 = vpop.f32.mrf.mxu0
        %v3279 = vadd.f32 0.0, %v3278
        %3280 = vmatmul.bf16.gmra.mxu0 %v1609
        %v3281 = vpop.f32.mrf.mxu0
        %v3282 = vadd.f32 0.0, %v3281
        %v3283 = vpop.f32.mrf.mxu0
        %v3284 = vadd.f32 0.0, %v3283
        %3285 = vmatmul.bf16.gmra.mxu0 %v1612
        %v3286 = vpop.f32.mrf.mxu0
        %v3287 = vadd.f32 0.0, %v3286
        %v3288 = vpop.f32.mrf.mxu0
        %v3289 = vadd.f32 0.0, %v3288
        %3290 = vmatmul.bf16.gmra.mxu0 %v1615
        %v3291 = vpop.f32.mrf.mxu0
        %v3292 = vadd.f32 0.0, %v3291
        %v3293 = vpop.f32.mrf.mxu0
        %v3294 = vadd.f32 0.0, %v3293
        %3295 = vmatmul.bf16.gmra.mxu0 %v1618
        %v3296 = vpop.f32.mrf.mxu0
        %v3297 = vadd.f32 0.0, %v3296
        %v3298 = vpop.f32.mrf.mxu0
        %v3299 = vadd.f32 0.0, %v3298
        %3300 = vmatmul.bf16.gmra.mxu0 %v1621
        %v3301 = vpop.f32.mrf.mxu0
        %v3302 = vadd.f32 0.0, %v3301
        %v3303 = vpop.f32.mrf.mxu0
        %v3304 = vadd.f32 0.0, %v3303
        %3305 = vmatmul.bf16.gmra.mxu0 %v1624
        %v3306 = vpop.f32.mrf.mxu0
        %v3307 = vadd.f32 0.0, %v3306
        %v3308 = vpop.f32.mrf.mxu0
        %v3309 = vadd.f32 0.0, %v3308
        %3310 = vmatmul.bf16.gmra.mxu0 %v1627
        %v3311 = vpop.f32.mrf.mxu0
        %v3312 = vadd.f32 0.0, %v3311
        %v3313 = vpop.f32.mrf.mxu0
        %v3314 = vadd.f32 0.0, %v3313
        %3315 = vmatmul.bf16.gmra.mxu0 %v1630
        %v3316 = vpop.f32.mrf.mxu0
        %v3317 = vadd.f32 0.0, %v3316
        %v3318 = vpop.f32.mrf.mxu0
        %v3319 = vadd.f32 0.0, %v3318
        %3320 = vmatmul.bf16.gmra.mxu0 %v1633
        %v3321 = vpop.f32.mrf.mxu0
        %v3322 = vadd.f32 0.0, %v3321
        %v3323 = vpop.f32.mrf.mxu0
        %v3324 = vadd.f32 0.0, %v3323
        %3325 = vmatmul.bf16.gmra.mxu0 %v1636
        %v3326 = vpop.f32.mrf.mxu0
        %v3327 = vadd.f32 0.0, %v3326
        %v3328 = vpop.f32.mrf.mxu0
        %v3329 = vadd.f32 0.0, %v3328
        %3330 = vmatmul.bf16.gmra.mxu0 %v1639
        %v3331 = vpop.f32.mrf.mxu0
        %v3332 = vadd.f32 0.0, %v3331
        %v3333 = vpop.f32.mrf.mxu0
        %v3334 = vadd.f32 0.0, %v3333
        %3335 = vmatmul.bf16.gmra.mxu0 %v1642
        %v3336 = vpop.f32.mrf.mxu0
        %v3337 = vadd.f32 0.0, %v3336
        %v3338 = vpop.f32.mrf.mxu0
        %v3339 = vadd.f32 0.0, %v3338
        %3340 = vmatmul.bf16.gmra.mxu0 %v1645
        %v3341 = vpop.f32.mrf.mxu0
        %v3342 = vadd.f32 0.0, %v3341
        %v3343 = vpop.f32.mrf.mxu0
        %v3344 = vadd.f32 0.0, %v3343
        %3345 = vmatmul.bf16.gmra.mxu0 %v2453
        %v3346 = vpop.f32.mrf.mxu0
        %v3347 = vadd.f32 0.0, %v3346
        %v3348 = vpop.f32.mrf.mxu0
        %v3349 = vadd.f32 0.0, %v3348
        %3350 = vmatmul.bf16.gmra.mxu0 %v3261
        %v3351 = vpop.f32.mrf.mxu0
        %v3352 = vadd.f32 0.0, %v3351
        %v3353 = vpop.f32.mrf.mxu0
        %v3354 = vadd.f32 0.0, %v3353
        %3355 = vdwg.mxu0
        %3356 = vmatpush.bf16.msra.mxu0 0
        %3357 = vmatpush.bf16.msra.mxu0 0
        %3358 = vmatpush.bf16.msra.mxu0 0
        %3359 = vmatpush.bf16.msra.mxu0 0
        %3360 = vmatpush.bf16.msra.mxu0 0
        %3361 = vmatpush.bf16.msra.mxu0 0
        %3362 = vmatpush.bf16.msra.mxu0 0
        %3363 = vmatpush.bf16.msra.mxu0 %v3265
        %3364 = vmatmul.bf16.gmra.mxu0 %v1606
        %v3365 = vpop.f32.mrf.mxu0
        %v3366 = vadd.f32 0.0, %v3365
        %v3367 = vpop.f32.mrf.mxu0
        %v3368 = vadd.f32 0.0, %v3367
        %3369 = vmatmul.bf16.gmra.mxu0 %v1609
        %v3370 = vpop.f32.mrf.mxu0
        %v3371 = vadd.f32 0.0, %v3370
        %v3372 = vpop.f32.mrf.mxu0
        %v3373 = vadd.f32 0.0, %v3372
        %3374 = vmatmul.bf16.gmra.mxu0 %v1612
        %v3375 = vpop.f32.mrf.mxu0
        %v3376 = vadd.f32 0.0, %v3375
        %v3377 = vpop.f32.mrf.mxu0
        %v3378 = vadd.f32 0.0, %v3377
        %3379 = vmatmul.bf16.gmra.mxu0 %v1615
        %v3380 = vpop.f32.mrf.mxu0
        %v3381 = vadd.f32 0.0, %v3380
        %v3382 = vpop.f32.mrf.mxu0
        %v3383 = vadd.f32 0.0, %v3382
        %3384 = vmatmul.bf16.gmra.mxu0 %v1618
        %v3385 = vpop.f32.mrf.mxu0
        %v3386 = vadd.f32 0.0, %v3385
        %v3387 = vpop.f32.mrf.mxu0
        %v3388 = vadd.f32 0.0, %v3387
        %3389 = vmatmul.bf16.gmra.mxu0 %v1621
        %v3390 = vpop.f32.mrf.mxu0
        %v3391 = vadd.f32 0.0, %v3390
        %v3392 = vpop.f32.mrf.mxu0
        %v3393 = vadd.f32 0.0, %v3392
        %3394 = vmatmul.bf16.gmra.mxu0 %v1624
        %v3395 = vpop.f32.mrf.mxu0
        %v3396 = vadd.f32 0.0, %v3395
        %v3397 = vpop.f32.mrf.mxu0
        %v3398 = vadd.f32 0.0, %v3397
        %3399 = vmatmul.bf16.gmra.mxu0 %v1627
        %v3400 = vpop.f32.mrf.mxu0
        %v3401 = vadd.f32 0.0, %v3400
        %v3402 = vpop.f32.mrf.mxu0
        %v3403 = vadd.f32 0.0, %v3402
        %3404 = vmatmul.bf16.gmra.mxu0 %v1630
        %v3405 = vpop.f32.mrf.mxu0
        %v3406 = vadd.f32 0.0, %v3405
        %v3407 = vpop.f32.mrf.mxu0
        %v3408 = vadd.f32 0.0, %v3407
        %3409 = vmatmul.bf16.gmra.mxu0 %v1633
        %v3410 = vpop.f32.mrf.mxu0
        %v3411 = vadd.f32 0.0, %v3410
        %v3412 = vpop.f32.mrf.mxu0
        %v3413 = vadd.f32 0.0, %v3412
        %3414 = vmatmul.bf16.gmra.mxu0 %v1636
        %v3415 = vpop.f32.mrf.mxu0
        %v3416 = vadd.f32 0.0, %v3415
        %v3417 = vpop.f32.mrf.mxu0
        %v3418 = vadd.f32 0.0, %v3417
        %3419 = vmatmul.bf16.gmra.mxu0 %v1639
        %v3420 = vpop.f32.mrf.mxu0
        %v3421 = vadd.f32 0.0, %v3420
        %v3422 = vpop.f32.mrf.mxu0
        %v3423 = vadd.f32 0.0, %v3422
        %3424 = vmatmul.bf16.gmra.mxu0 %v1642
        %v3425 = vpop.f32.mrf.mxu0
        %v3426 = vadd.f32 0.0, %v3425
        %v3427 = vpop.f32.mrf.mxu0
        %v3428 = vadd.f32 0.0, %v3427
        %3429 = vmatmul.bf16.gmra.mxu0 %v1645
        %v3430 = vpop.f32.mrf.mxu0
        %v3431 = vadd.f32 0.0, %v3430
        %v3432 = vpop.f32.mrf.mxu0
        %v3433 = vadd.f32 0.0, %v3432
        %3434 = vmatmul.bf16.gmra.mxu0 %v2453
        %v3435 = vpop.f32.mrf.mxu0
        %v3436 = vadd.f32 0.0, %v3435
        %v3437 = vpop.f32.mrf.mxu0
        %v3438 = vadd.f32 0.0, %v3437
        %3439 = vmatmul.bf16.gmra.mxu0 %v3261
        %v3440 = vpop.f32.mrf.mxu0
        %v3441 = vadd.f32 0.0, %v3440
        %v3442 = vpop.f32.mrf.mxu0
        %v3443 = vadd.f32 0.0, %v3442
        %3444 = vdwg.mxu0
        %v3445 = vadd.f32 %v3179, %v3277
        %v3446 = vadd.f32 %v3180, %v3366
        %v3447 = vadd.f32 %v3181, %v3279
        %v3448 = vadd.f32 %v3182, %v3368
        %v3449 = vadd.f32 %v3183, %v3282
        %v3450 = vadd.f32 %v3184, %v3371
        %v3451 = vadd.f32 %v3185, %v3284
        %v3452 = vadd.f32 %v3186, %v3373
        %v3453 = vadd.f32 %v3187, %v3287
        %v3454 = vadd.f32 %v3188, %v3376
        %v3455 = vadd.f32 %v3189, %v3289
        %v3456 = vadd.f32 %v3190, %v3378
        %v3457 = vadd.f32 %v3191, %v3292
        %v3458 = vadd.f32 %v3192, %v3381
        %v3459 = vadd.f32 %v3193, %v3294
        %v3460 = vadd.f32 %v3194, %v3383
        %v3461 = vadd.f32 %v3195, %v3297
        %v3462 = vadd.f32 %v3196, %v3386
        %v3463 = vadd.f32 %v3197, %v3299
        %v3464 = vadd.f32 %v3198, %v3388
        %v3465 = vadd.f32 %v3199, %v3302
        %v3466 = vadd.f32 %v3200, %v3391
        %v3467 = vadd.f32 %v3201, %v3304
        %v3468 = vadd.f32 %v3202, %v3393
        %v3469 = vadd.f32 %v3203, %v3307
        %v3470 = vadd.f32 %v3204, %v3396
        %v3471 = vadd.f32 %v3205, %v3309
        %v3472 = vadd.f32 %v3206, %v3398
        %v3473 = vadd.f32 %v3207, %v3312
        %v3474 = vadd.f32 %v3208, %v3401
        %v3475 = vadd.f32 %v3209, %v3314
        %v3476 = vadd.f32 %v3210, %v3403
        %v3477 = vadd.f32 %v3211, %v3317
        %v3478 = vadd.f32 %v3212, %v3406
        %v3479 = vadd.f32 %v3213, %v3319
        %v3480 = vadd.f32 %v3214, %v3408
        %v3481 = vadd.f32 %v3215, %v3322
        %v3482 = vadd.f32 %v3216, %v3411
        %v3483 = vadd.f32 %v3217, %v3324
        %v3484 = vadd.f32 %v3218, %v3413
        %v3485 = vadd.f32 %v3219, %v3327
        %v3486 = vadd.f32 %v3220, %v3416
        %v3487 = vadd.f32 %v3221, %v3329
        %v3488 = vadd.f32 %v3222, %v3418
        %v3489 = vadd.f32 %v3223, %v3332
        %v3490 = vadd.f32 %v3224, %v3421
        %v3491 = vadd.f32 %v3225, %v3334
        %v3492 = vadd.f32 %v3226, %v3423
        %v3493 = vadd.f32 %v3227, %v3337
        %v3494 = vadd.f32 %v3228, %v3426
        %v3495 = vadd.f32 %v3229, %v3339
        %v3496 = vadd.f32 %v3230, %v3428
        %v3497 = vadd.f32 %v3231, %v3342
        %v3498 = vadd.f32 %v3232, %v3431
        %v3499 = vadd.f32 %v3233, %v3344
        %v3500 = vadd.f32 %v3234, %v3433
        %v3501 = vadd.f32 %v3235, %v3347
        %v3502 = vadd.f32 %v3236, %v3436
        %v3503 = vadd.f32 %v3237, %v3349
        %v3504 = vadd.f32 %v3238, %v3438
        %v3505 = vadd.f32 %v3239, %v3352
        %v3506 = vadd.f32 %v3240, %v3441
        %v3507 = vadd.f32 %v3241, %v3354
        %v3508 = vadd.f32 %v3242, %v3443
        %v3509 = vld [vmem:[#allocation2] sm:$0xff]
        %v3510 = vld [vmem:[#allocation2 + $0x8] sm:$0xff]
        %v3511 = vld [vmem:[#allocation2 + $0x10] sm:$0xff]
        %v3512 = vld [vmem:[#allocation2 + $0x18] sm:$0xff]
        %v3513 = vld [vmem:[#allocation2 + $0x20] sm:$0xff]
        %v3514 = vld [vmem:[#allocation2 + $0x28] sm:$0xff]
        %v3515 = vld [vmem:[#allocation2 + $0x30] sm:$0xff]
        %v3516 = vld [vmem:[#allocation2 + $0x38] sm:$0xff]
        %v3517 = vld [vmem:[#allocation2 + $0x40] sm:$0xff]
        %v3518 = vld [vmem:[#allocation2 + $0x48] sm:$0xff]
        %v3519 = vld [vmem:[#allocation2 + $0x50] sm:$0xff]
        %v3520 = vld [vmem:[#allocation2 + $0x58] sm:$0xff]
        %v3521 = vld [vmem:[#allocation2 + $0x60] sm:$0xff]
        %v3522 = vld [vmem:[#allocation2 + $0x68] sm:$0xff]
        %v3523 = vld [vmem:[#allocation2 + $0x70] sm:$0xff]
        %v3524 = vld [vmem:[#allocation2 + $0x78] sm:$0xff]
        %v3525 = vld [vmem:[#allocation2 + $0x80] sm:$0xff]
        %v3526 = vld [vmem:[#allocation2 + $0x88] sm:$0xff]
        %v3527 = vld [vmem:[#allocation2 + $0x90] sm:$0xff]
        %v3528 = vld [vmem:[#allocation2 + $0x98] sm:$0xff]
        %v3529 = vld [vmem:[#allocation2 + $0xa0] sm:$0xff]
        %v3530 = vld [vmem:[#allocation2 + $0xa8] sm:$0xff]
        %v3531 = vld [vmem:[#allocation2 + $0xb0] sm:$0xff]
        %v3532 = vld [vmem:[#allocation2 + $0xb8] sm:$0xff]
        %v3533 = vld [vmem:[#allocation2 + $0xc0] sm:$0xff]
        %v3534 = vld [vmem:[#allocation2 + $0xc8] sm:$0xff]
        %v3535 = vld [vmem:[#allocation2 + $0xd0] sm:$0xff]
        %v3536 = vld [vmem:[#allocation2 + $0xd8] sm:$0xff]
        %v3537 = vld [vmem:[#allocation2 + $0xe0] sm:$0xff]
        %v3538 = vld [vmem:[#allocation2 + $0xe8] sm:$0xff]
        %v3539 = vld [vmem:[#allocation2 + $0xf0] sm:$0xff]
        %v3540 = vld [vmem:[#allocation2 + $0xf8] sm:$0xff]
        %v3541 = vld [vmem:[#allocation2 + $0x100] sm:$0xff]
        %v3542 = vld [vmem:[#allocation2 + $0x108] sm:$0xff]
        %v3543 = vld [vmem:[#allocation2 + $0x110] sm:$0xff]
        %v3544 = vld [vmem:[#allocation2 + $0x118] sm:$0xff]
        %v3545 = vld [vmem:[#allocation2 + $0x120] sm:$0xff]
        %v3546 = vld [vmem:[#allocation2 + $0x128] sm:$0xff]
        %v3547 = vld [vmem:[#allocation2 + $0x130] sm:$0xff]
        %v3548 = vld [vmem:[#allocation2 + $0x138] sm:$0xff]
        %v3549 = vld [vmem:[#allocation2 + $0x140] sm:$0xff]
        %v3550 = vld [vmem:[#allocation2 + $0x148] sm:$0xff]
        %v3551 = vld [vmem:[#allocation2 + $0x150] sm:$0xff]
        %v3552 = vld [vmem:[#allocation2 + $0x158] sm:$0xff]
        %v3553 = vld [vmem:[#allocation2 + $0x160] sm:$0xff]
        %v3554 = vld [vmem:[#allocation2 + $0x168] sm:$0xff]
        %v3555 = vld [vmem:[#allocation2 + $0x170] sm:$0xff]
        %v3556 = vld [vmem:[#allocation2 + $0x178] sm:$0xff]
        %v3557 = vld [vmem:[#allocation2 + $0x180] sm:$0xff]
        %v3558 = vld [vmem:[#allocation2 + $0x188] sm:$0xff]
        %v3559 = vld [vmem:[#allocation2 + $0x190] sm:$0xff]
        %v3560 = vld [vmem:[#allocation2 + $0x198] sm:$0xff]
        %v3561 = vld [vmem:[#allocation2 + $0x1a0] sm:$0xff]
        %v3562 = vld [vmem:[#allocation2 + $0x1a8] sm:$0xff]
        %v3563 = vld [vmem:[#allocation2 + $0x1b0] sm:$0xff]
        %v3564 = vld [vmem:[#allocation2 + $0x1b8] sm:$0xff]
        %v3565 = vld [vmem:[#allocation2 + $0x1c0] sm:$0xff]
        %v3566 = vld [vmem:[#allocation2 + $0x1c8] sm:$0xff]
        %v3567 = vld [vmem:[#allocation2 + $0x1d0] sm:$0xff]
        %v3568 = vld [vmem:[#allocation2 + $0x1d8] sm:$0xff]
        %v3569 = vld [vmem:[#allocation2 + $0x1e0] sm:$0xff]
        %v3570 = vld [vmem:[#allocation2 + $0x1e8] sm:$0xff]
        %v3571 = vld [vmem:[#allocation2 + $0x1f0] sm:$0xff]
        %v3572 = vld [vmem:[#allocation2 + $0x1f8] sm:$0xff]
        %v3573 = vadd.f32 %v3509, %v3445
        %v3574 = vadd.f32 %v3510, %v3446
        %v3575 = vadd.f32 %v3511, %v3447
        %v3576 = vadd.f32 %v3512, %v3448
        %v3577 = vadd.f32 %v3513, %v3449
        %v3578 = vadd.f32 %v3514, %v3450
        %v3579 = vadd.f32 %v3515, %v3451
        %v3580 = vadd.f32 %v3516, %v3452
        %v3581 = vadd.f32 %v3517, %v3453
        %v3582 = vadd.f32 %v3518, %v3454
        %v3583 = vadd.f32 %v3519, %v3455
        %v3584 = vadd.f32 %v3520, %v3456
        %v3585 = vadd.f32 %v3521, %v3457
        %v3586 = vadd.f32 %v3522, %v3458
        %v3587 = vadd.f32 %v3523, %v3459
        %v3588 = vadd.f32 %v3524, %v3460
        %v3589 = vadd.f32 %v3525, %v3461
        %v3590 = vadd.f32 %v3526, %v3462
        %v3591 = vadd.f32 %v3527, %v3463
        %v3592 = vadd.f32 %v3528, %v3464
        %v3593 = vadd.f32 %v3529, %v3465
        %v3594 = vadd.f32 %v3530, %v3466
        %v3595 = vadd.f32 %v3531, %v3467
        %v3596 = vadd.f32 %v3532, %v3468
        %v3597 = vadd.f32 %v3533, %v3469
        %v3598 = vadd.f32 %v3534, %v3470
        %v3599 = vadd.f32 %v3535, %v3471
        %v3600 = vadd.f32 %v3536, %v3472
        %v3601 = vadd.f32 %v3537, %v3473
        %v3602 = vadd.f32 %v3538, %v3474
        %v3603 = vadd.f32 %v3539, %v3475
        %v3604 = vadd.f32 %v3540, %v3476
        %v3605 = vadd.f32 %v3541, %v3477
        %v3606 = vadd.f32 %v3542, %v3478
        %v3607 = vadd.f32 %v3543, %v3479
        %v3608 = vadd.f32 %v3544, %v3480
        %v3609 = vadd.f32 %v3545, %v3481
        %v3610 = vadd.f32 %v3546, %v3482
        %v3611 = vadd.f32 %v3547, %v3483
        %v3612 = vadd.f32 %v3548, %v3484
        %v3613 = vadd.f32 %v3549, %v3485
        %v3614 = vadd.f32 %v3550, %v3486
        %v3615 = vadd.f32 %v3551, %v3487
        %v3616 = vadd.f32 %v3552, %v3488
        %v3617 = vadd.f32 %v3553, %v3489
        %v3618 = vadd.f32 %v3554, %v3490
        %v3619 = vadd.f32 %v3555, %v3491
        %v3620 = vadd.f32 %v3556, %v3492
        %v3621 = vadd.f32 %v3557, %v3493
        %v3622 = vadd.f32 %v3558, %v3494
        %v3623 = vadd.f32 %v3559, %v3495
        %v3624 = vadd.f32 %v3560, %v3496
        %v3625 = vadd.f32 %v3561, %v3497
        %v3626 = vadd.f32 %v3562, %v3498
        %v3627 = vadd.f32 %v3563, %v3499
        %v3628 = vadd.f32 %v3564, %v3500
        %v3629 = vadd.f32 %v3565, %v3501
        %v3630 = vadd.f32 %v3566, %v3502
        %v3631 = vadd.f32 %v3567, %v3503
        %v3632 = vadd.f32 %v3568, %v3504
        %v3633 = vadd.f32 %v3569, %v3505
        %v3634 = vadd.f32 %v3570, %v3506
        %v3635 = vadd.f32 %v3571, %v3507
        %v3636 = vadd.f32 %v3572, %v3508
        %3637 = vst [vmem:[#allocation2] sm:$0xff] %v3573
        %3638 = vst [vmem:[#allocation2 + $0x8] sm:$0xff] %v3574
        %3639 = vst [vmem:[#allocation2 + $0x10] sm:$0xff] %v3575
        %3640 = vst [vmem:[#allocation2 + $0x18] sm:$0xff] %v3576
        %3641 = vst [vmem:[#allocation2 + $0x20] sm:$0xff] %v3577
        %3642 = vst [vmem:[#allocation2 + $0x28] sm:$0xff] %v3578
        %3643 = vst [vmem:[#allocation2 + $0x30] sm:$0xff] %v3579
        %3644 = vst [vmem:[#allocation2 + $0x38] sm:$0xff] %v3580
        %3645 = vst [vmem:[#allocation2 + $0x40] sm:$0xff] %v3581
        %3646 = vst [vmem:[#allocation2 + $0x48] sm:$0xff] %v3582
        %3647 = vst [vmem:[#allocation2 + $0x50] sm:$0xff] %v3583
        %3648 = vst [vmem:[#allocation2 + $0x58] sm:$0xff] %v3584
        %3649 = vst [vmem:[#allocation2 + $0x60] sm:$0xff] %v3585
        %3650 = vst [vmem:[#allocation2 + $0x68] sm:$0xff] %v3586
        %3651 = vst [vmem:[#allocation2 + $0x70] sm:$0xff] %v3587
        %3652 = vst [vmem:[#allocation2 + $0x78] sm:$0xff] %v3588
        %3653 = vst [vmem:[#allocation2 + $0x80] sm:$0xff] %v3589
        %3654 = vst [vmem:[#allocation2 + $0x88] sm:$0xff] %v3590
        %3655 = vst [vmem:[#allocation2 + $0x90] sm:$0xff] %v3591
        %3656 = vst [vmem:[#allocation2 + $0x98] sm:$0xff] %v3592
        %3657 = vst [vmem:[#allocation2 + $0xa0] sm:$0xff] %v3593
        %3658 = vst [vmem:[#allocation2 + $0xa8] sm:$0xff] %v3594
        %3659 = vst [vmem:[#allocation2 + $0xb0] sm:$0xff] %v3595
        %3660 = vst [vmem:[#allocation2 + $0xb8] sm:$0xff] %v3596
        %3661 = vst [vmem:[#allocation2 + $0xc0] sm:$0xff] %v3597
        %3662 = vst [vmem:[#allocation2 + $0xc8] sm:$0xff] %v3598
        %3663 = vst [vmem:[#allocation2 + $0xd0] sm:$0xff] %v3599
        %3664 = vst [vmem:[#allocation2 + $0xd8] sm:$0xff] %v3600
        %3665 = vst [vmem:[#allocation2 + $0xe0] sm:$0xff] %v3601
        %3666 = vst [vmem:[#allocation2 + $0xe8] sm:$0xff] %v3602
        %3667 = vst [vmem:[#allocation2 + $0xf0] sm:$0xff] %v3603
        %3668 = vst [vmem:[#allocation2 + $0xf8] sm:$0xff] %v3604
        %3669 = vst [vmem:[#allocation2 + $0x100] sm:$0xff] %v3605
        %3670 = vst [vmem:[#allocation2 + $0x108] sm:$0xff] %v3606
        %3671 = vst [vmem:[#allocation2 + $0x110] sm:$0xff] %v3607
        %3672 = vst [vmem:[#allocation2 + $0x118] sm:$0xff] %v3608
        %3673 = vst [vmem:[#allocation2 + $0x120] sm:$0xff] %v3609
        %3674 = vst [vmem:[#allocation2 + $0x128] sm:$0xff] %v3610
        %3675 = vst [vmem:[#allocation2 + $0x130] sm:$0xff] %v3611
        %3676 = vst [vmem:[#allocation2 + $0x138] sm:$0xff] %v3612
        %3677 = vst [vmem:[#allocation2 + $0x140] sm:$0xff] %v3613
        %3678 = vst [vmem:[#allocation2 + $0x148] sm:$0xff] %v3614
        %3679 = vst [vmem:[#allocation2 + $0x150] sm:$0xff] %v3615
        %3680 = vst [vmem:[#allocation2 + $0x158] sm:$0xff] %v3616
        %3681 = vst [vmem:[#allocation2 + $0x160] sm:$0xff] %v3617
        %3682 = vst [vmem:[#allocation2 + $0x168] sm:$0xff] %v3618
        %3683 = vst [vmem:[#allocation2 + $0x170] sm:$0xff] %v3619
        %3684 = vst [vmem:[#allocation2 + $0x178] sm:$0xff] %v3620
        %3685 = vst [vmem:[#allocation2 + $0x180] sm:$0xff] %v3621
        %3686 = vst [vmem:[#allocation2 + $0x188] sm:$0xff] %v3622
        %3687 = vst [vmem:[#allocation2 + $0x190] sm:$0xff] %v3623
        %3688 = vst [vmem:[#allocation2 + $0x198] sm:$0xff] %v3624
        %3689 = vst [vmem:[#allocation2 + $0x1a0] sm:$0xff] %v3625
        %3690 = vst [vmem:[#allocation2 + $0x1a8] sm:$0xff] %v3626
        %3691 = vst [vmem:[#allocation2 + $0x1b0] sm:$0xff] %v3627
        %3692 = vst [vmem:[#allocation2 + $0x1b8] sm:$0xff] %v3628
        %3693 = vst [vmem:[#allocation2 + $0x1c0] sm:$0xff] %v3629
        %3694 = vst [vmem:[#allocation2 + $0x1c8] sm:$0xff] %v3630
        %3695 = vst [vmem:[#allocation2 + $0x1d0] sm:$0xff] %v3631
        %3696 = vst [vmem:[#allocation2 + $0x1d8] sm:$0xff] %v3632
        %3697 = vst [vmem:[#allocation2 + $0x1e0] sm:$0xff] %v3633
        %3698 = vst [vmem:[#allocation2 + $0x1e8] sm:$0xff] %v3634
        %3699 = vst [vmem:[#allocation2 + $0x1f0] sm:$0xff] %v3635
        %3700 = vst [vmem:[#allocation2 + $0x1f8] sm:$0xff] %v3636
        // Predicated region
        $region41: #{tpu_custom_call.1} parent=35 // pred_check
          %p3701 = pneg %p304
        $region42: #{tpu_custom_call.1} parent=35 // pred_check_branch
          %3703 = sbr.rel (%p3701) target = $region44
        $region43: #{tpu_custom_call.1} parent=35 // pred_region
          %v3704 = vld [vmem:[#allocation2] sm:$0xff]
          %v3705 = vld [vmem:[#allocation2 + $0x8] sm:$0xff]
          %v3706 = vld [vmem:[#allocation2 + $0x10] sm:$0xff]
          %v3707 = vld [vmem:[#allocation2 + $0x18] sm:$0xff]
          %v3708 = vld [vmem:[#allocation2 + $0x20] sm:$0xff]
          %v3709 = vld [vmem:[#allocation2 + $0x28] sm:$0xff]
          %v3710 = vld [vmem:[#allocation2 + $0x30] sm:$0xff]
          %v3711 = vld [vmem:[#allocation2 + $0x38] sm:$0xff]
          %v3712 = vld [vmem:[#allocation2 + $0x40] sm:$0xff]
          %v3713 = vld [vmem:[#allocation2 + $0x48] sm:$0xff]
          %v3714 = vld [vmem:[#allocation2 + $0x50] sm:$0xff]
          %v3715 = vld [vmem:[#allocation2 + $0x58] sm:$0xff]
          %v3716 = vld [vmem:[#allocation2 + $0x60] sm:$0xff]
          %v3717 = vld [vmem:[#allocation2 + $0x68] sm:$0xff]
          %v3718 = vld [vmem:[#allocation2 + $0x70] sm:$0xff]
          %v3719 = vld [vmem:[#allocation2 + $0x78] sm:$0xff]
          %v3720 = vld [vmem:[#allocation2 + $0x80] sm:$0xff]
          %v3721 = vld [vmem:[#allocation2 + $0x88] sm:$0xff]
          %v3722 = vld [vmem:[#allocation2 + $0x90] sm:$0xff]
          %v3723 = vld [vmem:[#allocation2 + $0x98] sm:$0xff]
          %v3724 = vld [vmem:[#allocation2 + $0xa0] sm:$0xff]
          %v3725 = vld [vmem:[#allocation2 + $0xa8] sm:$0xff]
          %v3726 = vld [vmem:[#allocation2 + $0xb0] sm:$0xff]
          %v3727 = vld [vmem:[#allocation2 + $0xb8] sm:$0xff]
          %v3728 = vld [vmem:[#allocation2 + $0xc0] sm:$0xff]
          %v3729 = vld [vmem:[#allocation2 + $0xc8] sm:$0xff]
          %v3730 = vld [vmem:[#allocation2 + $0xd0] sm:$0xff]
          %v3731 = vld [vmem:[#allocation2 + $0xd8] sm:$0xff]
          %v3732 = vld [vmem:[#allocation2 + $0xe0] sm:$0xff]
          %v3733 = vld [vmem:[#allocation2 + $0xe8] sm:$0xff]
          %v3734 = vld [vmem:[#allocation2 + $0xf0] sm:$0xff]
          %v3735 = vld [vmem:[#allocation2 + $0xf8] sm:$0xff]
          %v3736 = vld [vmem:[#allocation2 + $0x100] sm:$0xff]
          %v3737 = vld [vmem:[#allocation2 + $0x108] sm:$0xff]
          %v3738 = vld [vmem:[#allocation2 + $0x110] sm:$0xff]
          %v3739 = vld [vmem:[#allocation2 + $0x118] sm:$0xff]
          %v3740 = vld [vmem:[#allocation2 + $0x120] sm:$0xff]
          %v3741 = vld [vmem:[#allocation2 + $0x128] sm:$0xff]
          %v3742 = vld [vmem:[#allocation2 + $0x130] sm:$0xff]
          %v3743 = vld [vmem:[#allocation2 + $0x138] sm:$0xff]
          %v3744 = vld [vmem:[#allocation2 + $0x140] sm:$0xff]
          %v3745 = vld [vmem:[#allocation2 + $0x148] sm:$0xff]
          %v3746 = vld [vmem:[#allocation2 + $0x150] sm:$0xff]
          %v3747 = vld [vmem:[#allocation2 + $0x158] sm:$0xff]
          %v3748 = vld [vmem:[#allocation2 + $0x160] sm:$0xff]
          %v3749 = vld [vmem:[#allocation2 + $0x168] sm:$0xff]
          %v3750 = vld [vmem:[#allocation2 + $0x170] sm:$0xff]
          %v3751 = vld [vmem:[#allocation2 + $0x178] sm:$0xff]
          %v3752 = vld [vmem:[#allocation2 + $0x180] sm:$0xff]
          %v3753 = vld [vmem:[#allocation2 + $0x188] sm:$0xff]
          %v3754 = vld [vmem:[#allocation2 + $0x190] sm:$0xff]
          %v3755 = vld [vmem:[#allocation2 + $0x198] sm:$0xff]
          %v3756 = vld [vmem:[#allocation2 + $0x1a0] sm:$0xff]
          %v3757 = vld [vmem:[#allocation2 + $0x1a8] sm:$0xff]
          %v3758 = vld [vmem:[#allocation2 + $0x1b0] sm:$0xff]
          %v3759 = vld [vmem:[#allocation2 + $0x1b8] sm:$0xff]
          %v3760 = vld [vmem:[#allocation2 + $0x1c0] sm:$0xff]
          %v3761 = vld [vmem:[#allocation2 + $0x1c8] sm:$0xff]
          %v3762 = vld [vmem:[#allocation2 + $0x1d0] sm:$0xff]
          %v3763 = vld [vmem:[#allocation2 + $0x1d8] sm:$0xff]
          %v3764 = vld [vmem:[#allocation2 + $0x1e0] sm:$0xff]
          %v3765 = vld [vmem:[#allocation2 + $0x1e8] sm:$0xff]
          %v3766 = vld [vmem:[#allocation2 + $0x1f0] sm:$0xff]
          %v3767 = vld [vmem:[#allocation2 + $0x1f8] sm:$0xff]
          %v3768 = vld [vmem:[%s295] sm:$0x3]
          %v3770 = vperm.slane %v3768, 0
          %v3771 = vperm.slane %v3768, 1
          %v3774 = vmul.f32 %v3704, %v3770
          %v3775 = vmul.f32 %v3705, %v3771
          %v3776 = vmul.f32 %v3706, %v3770
          %v3777 = vmul.f32 %v3707, %v3771
          %v3778 = vmul.f32 %v3708, %v3770
          %v3779 = vmul.f32 %v3709, %v3771
          %v3780 = vmul.f32 %v3710, %v3770
          %v3781 = vmul.f32 %v3711, %v3771
          %v3782 = vmul.f32 %v3712, %v3770
          %v3783 = vmul.f32 %v3713, %v3771
          %v3784 = vmul.f32 %v3714, %v3770
          %v3785 = vmul.f32 %v3715, %v3771
          %v3786 = vmul.f32 %v3716, %v3770
          %v3787 = vmul.f32 %v3717, %v3771
          %v3788 = vmul.f32 %v3718, %v3770
          %v3789 = vmul.f32 %v3719, %v3771
          %v3790 = vmul.f32 %v3720, %v3770
          %v3791 = vmul.f32 %v3721, %v3771
          %v3792 = vmul.f32 %v3722, %v3770
          %v3793 = vmul.f32 %v3723, %v3771
          %v3794 = vmul.f32 %v3724, %v3770
          %v3795 = vmul.f32 %v3725, %v3771
          %v3796 = vmul.f32 %v3726, %v3770
          %v3797 = vmul.f32 %v3727, %v3771
          %v3798 = vmul.f32 %v3728, %v3770
          %v3799 = vmul.f32 %v3729, %v3771
          %v3800 = vmul.f32 %v3730, %v3770
          %v3801 = vmul.f32 %v3731, %v3771
          %v3802 = vmul.f32 %v3732, %v3770
          %v3803 = vmul.f32 %v3733, %v3771
          %v3804 = vmul.f32 %v3734, %v3770
          %v3805 = vmul.f32 %v3735, %v3771
          %v3806 = vmul.f32 %v3736, %v3770
          %v3807 = vmul.f32 %v3737, %v3771
          %v3808 = vmul.f32 %v3738, %v3770
          %v3809 = vmul.f32 %v3739, %v3771
          %v3810 = vmul.f32 %v3740, %v3770
          %v3811 = vmul.f32 %v3741, %v3771
          %v3812 = vmul.f32 %v3742, %v3770
          %v3813 = vmul.f32 %v3743, %v3771
          %v3814 = vmul.f32 %v3744, %v3770
          %v3815 = vmul.f32 %v3745, %v3771
          %v3816 = vmul.f32 %v3746, %v3770
          %v3817 = vmul.f32 %v3747, %v3771
          %v3818 = vmul.f32 %v3748, %v3770
          %v3819 = vmul.f32 %v3749, %v3771
          %v3820 = vmul.f32 %v3750, %v3770
          %v3821 = vmul.f32 %v3751, %v3771
          %v3822 = vmul.f32 %v3752, %v3770
          %v3823 = vmul.f32 %v3753, %v3771
          %v3824 = vmul.f32 %v3754, %v3770
          %v3825 = vmul.f32 %v3755, %v3771
          %v3826 = vmul.f32 %v3756, %v3770
          %v3827 = vmul.f32 %v3757, %v3771
          %v3828 = vmul.f32 %v3758, %v3770
          %v3829 = vmul.f32 %v3759, %v3771
          %v3830 = vmul.f32 %v3760, %v3770
          %v3831 = vmul.f32 %v3761, %v3771
          %v3832 = vmul.f32 %v3762, %v3770
          %v3833 = vmul.f32 %v3763, %v3771
          %v3834 = vmul.f32 %v3764, %v3770
          %v3835 = vmul.f32 %v3765, %v3771
          %v3836 = vmul.f32 %v3766, %v3770
          %v3837 = vmul.f32 %v3767, %v3771
          %v3838 = vld [vmem:[%s300] sm:$0x3]
          %v3840 = vperm.slane %v3838, 0
          %v3841 = vperm.slane %v3838, 1
          %v3844 = vadd.f32 %v3774, %v3840
          %v3845 = vadd.f32 %v3775, %v3841
          %v3846 = vadd.f32 %v3776, %v3840
          %v3847 = vadd.f32 %v3777, %v3841
          %v3848 = vadd.f32 %v3778, %v3840
          %v3849 = vadd.f32 %v3779, %v3841
          %v3850 = vadd.f32 %v3780, %v3840
          %v3851 = vadd.f32 %v3781, %v3841
          %v3852 = vadd.f32 %v3782, %v3840
          %v3853 = vadd.f32 %v3783, %v3841
          %v3854 = vadd.f32 %v3784, %v3840
          %v3855 = vadd.f32 %v3785, %v3841
          %v3856 = vadd.f32 %v3786, %v3840
          %v3857 = vadd.f32 %v3787, %v3841
          %v3858 = vadd.f32 %v3788, %v3840
          %v3859 = vadd.f32 %v3789, %v3841
          %v3860 = vadd.f32 %v3790, %v3840
          %v3861 = vadd.f32 %v3791, %v3841
          %v3862 = vadd.f32 %v3792, %v3840
          %v3863 = vadd.f32 %v3793, %v3841
          %v3864 = vadd.f32 %v3794, %v3840
          %v3865 = vadd.f32 %v3795, %v3841
          %v3866 = vadd.f32 %v3796, %v3840
          %v3867 = vadd.f32 %v3797, %v3841
          %v3868 = vadd.f32 %v3798, %v3840
          %v3869 = vadd.f32 %v3799, %v3841
          %v3870 = vadd.f32 %v3800, %v3840
          %v3871 = vadd.f32 %v3801, %v3841
          %v3872 = vadd.f32 %v3802, %v3840
          %v3873 = vadd.f32 %v3803, %v3841
          %v3874 = vadd.f32 %v3804, %v3840
          %v3875 = vadd.f32 %v3805, %v3841
          %v3876 = vadd.f32 %v3806, %v3840
          %v3877 = vadd.f32 %v3807, %v3841
          %v3878 = vadd.f32 %v3808, %v3840
          %v3879 = vadd.f32 %v3809, %v3841
          %v3880 = vadd.f32 %v3810, %v3840
          %v3881 = vadd.f32 %v3811, %v3841
          %v3882 = vadd.f32 %v3812, %v3840
          %v3883 = vadd.f32 %v3813, %v3841
          %v3884 = vadd.f32 %v3814, %v3840
          %v3885 = vadd.f32 %v3815, %v3841
          %v3886 = vadd.f32 %v3816, %v3840
          %v3887 = vadd.f32 %v3817, %v3841
          %v3888 = vadd.f32 %v3818, %v3840
          %v3889 = vadd.f32 %v3819, %v3841
          %v3890 = vadd.f32 %v3820, %v3840
          %v3891 = vadd.f32 %v3821, %v3841
          %v3892 = vadd.f32 %v3822, %v3840
          %v3893 = vadd.f32 %v3823, %v3841
          %v3894 = vadd.f32 %v3824, %v3840
          %v3895 = vadd.f32 %v3825, %v3841
          %v3896 = vadd.f32 %v3826, %v3840
          %v3897 = vadd.f32 %v3827, %v3841
          %v3898 = vadd.f32 %v3828, %v3840
          %v3899 = vadd.f32 %v3829, %v3841
          %v3900 = vadd.f32 %v3830, %v3840
          %v3901 = vadd.f32 %v3831, %v3841
          %v3902 = vadd.f32 %v3832, %v3840
          %v3903 = vadd.f32 %v3833, %v3841
          %v3904 = vadd.f32 %v3834, %v3840
          %v3905 = vadd.f32 %v3835, %v3841
          %v3906 = vadd.f32 %v3836, %v3840
          %v3907 = vadd.f32 %v3837, %v3841
          %v3908 = vmax.f32 %v3844, 0.0
          %v3909 = vmax.f32 %v3845, 0.0
          %v3910 = vmax.f32 %v3846, 0.0
          %v3911 = vmax.f32 %v3847, 0.0
          %v3912 = vmax.f32 %v3848, 0.0
          %v3913 = vmax.f32 %v3849, 0.0
          %v3914 = vmax.f32 %v3850, 0.0
          %v3915 = vmax.f32 %v3851, 0.0
          %v3916 = vmax.f32 %v3852, 0.0
          %v3917 = vmax.f32 %v3853, 0.0
          %v3918 = vmax.f32 %v3854, 0.0
          %v3919 = vmax.f32 %v3855, 0.0
          %v3920 = vmax.f32 %v3856, 0.0
          %v3921 = vmax.f32 %v3857, 0.0
          %v3922 = vmax.f32 %v3858, 0.0
          %v3923 = vmax.f32 %v3859, 0.0
          %v3924 = vmax.f32 %v3860, 0.0
          %v3925 = vmax.f32 %v3861, 0.0
          %v3926 = vmax.f32 %v3862, 0.0
          %v3927 = vmax.f32 %v3863, 0.0
          %v3928 = vmax.f32 %v3864, 0.0
          %v3929 = vmax.f32 %v3865, 0.0
          %v3930 = vmax.f32 %v3866, 0.0
          %v3931 = vmax.f32 %v3867, 0.0
          %v3932 = vmax.f32 %v3868, 0.0
          %v3933 = vmax.f32 %v3869, 0.0
          %v3934 = vmax.f32 %v3870, 0.0
          %v3935 = vmax.f32 %v3871, 0.0
          %v3936 = vmax.f32 %v3872, 0.0
          %v3937 = vmax.f32 %v3873, 0.0
          %v3938 = vmax.f32 %v3874, 0.0
          %v3939 = vmax.f32 %v3875, 0.0
          %v3940 = vmax.f32 %v3876, 0.0
          %v3941 = vmax.f32 %v3877, 0.0
          %v3942 = vmax.f32 %v3878, 0.0
          %v3943 = vmax.f32 %v3879, 0.0
          %v3944 = vmax.f32 %v3880, 0.0
          %v3945 = vmax.f32 %v3881, 0.0
          %v3946 = vmax.f32 %v3882, 0.0
          %v3947 = vmax.f32 %v3883, 0.0
          %v3948 = vmax.f32 %v3884, 0.0
          %v3949 = vmax.f32 %v3885, 0.0
          %v3950 = vmax.f32 %v3886, 0.0
          %v3951 = vmax.f32 %v3887, 0.0
          %v3952 = vmax.f32 %v3888, 0.0
          %v3953 = vmax.f32 %v3889, 0.0
          %v3954 = vmax.f32 %v3890, 0.0
          %v3955 = vmax.f32 %v3891, 0.0
          %v3956 = vmax.f32 %v3892, 0.0
          %v3957 = vmax.f32 %v3893, 0.0
          %v3958 = vmax.f32 %v3894, 0.0
          %v3959 = vmax.f32 %v3895, 0.0
          %v3960 = vmax.f32 %v3896, 0.0
          %v3961 = vmax.f32 %v3897, 0.0
          %v3962 = vmax.f32 %v3898, 0.0
          %v3963 = vmax.f32 %v3899, 0.0
          %v3964 = vmax.f32 %v3900, 0.0
          %v3965 = vmax.f32 %v3901, 0.0
          %v3966 = vmax.f32 %v3902, 0.0
          %v3967 = vmax.f32 %v3903, 0.0
          %v3968 = vmax.f32 %v3904, 0.0
          %v3969 = vmax.f32 %v3905, 0.0
          %v3970 = vmax.f32 %v3906, 0.0
          %v3971 = vmax.f32 %v3907, 0.0
          %v3972 = vpack.c.bf16 %v3909, %v3908
          %v3973 = vpack.c.bf16 %v3911, %v3910
          %v3974 = vpack.c.bf16 %v3913, %v3912
          %v3975 = vpack.c.bf16 %v3915, %v3914
          %v3976 = vpack.c.bf16 %v3917, %v3916
          %v3977 = vpack.c.bf16 %v3919, %v3918
          %v3978 = vpack.c.bf16 %v3921, %v3920
          %v3979 = vpack.c.bf16 %v3923, %v3922
          %v3980 = vpack.c.bf16 %v3925, %v3924
          %v3981 = vpack.c.bf16 %v3927, %v3926
          %v3982 = vpack.c.bf16 %v3929, %v3928
          %v3983 = vpack.c.bf16 %v3931, %v3930
          %v3984 = vpack.c.bf16 %v3933, %v3932
          %v3985 = vpack.c.bf16 %v3935, %v3934
          %v3986 = vpack.c.bf16 %v3937, %v3936
          %v3987 = vpack.c.bf16 %v3939, %v3938
          %v3988 = vpack.c.bf16 %v3941, %v3940
          %v3989 = vpack.c.bf16 %v3943, %v3942
          %v3990 = vpack.c.bf16 %v3945, %v3944
          %v3991 = vpack.c.bf16 %v3947, %v3946
          %v3992 = vpack.c.bf16 %v3949, %v3948
          %v3993 = vpack.c.bf16 %v3951, %v3950
          %v3994 = vpack.c.bf16 %v3953, %v3952
          %v3995 = vpack.c.bf16 %v3955, %v3954
          %v3996 = vpack.c.bf16 %v3957, %v3956
          %v3997 = vpack.c.bf16 %v3959, %v3958
          %v3998 = vpack.c.bf16 %v3961, %v3960
          %v3999 = vpack.c.bf16 %v3963, %v3962
          %v4000 = vpack.c.bf16 %v3965, %v3964
          %v4001 = vpack.c.bf16 %v3967, %v3966
          %v4002 = vpack.c.bf16 %v3969, %v3968
          %v4003 = vpack.c.bf16 %v3971, %v3970
          %4004 = vst [vmem:[%s273] sm:$0xff] %v3972
          %4005 = vst [vmem:[%s273 + $0x8] sm:$0xff] %v3973
          %4006 = vst [vmem:[%s273 + $0x10] sm:$0xff] %v3974
          %4007 = vst [vmem:[%s273 + $0x18] sm:$0xff] %v3975
          %4008 = vst [vmem:[%s273 + $0x20] sm:$0xff] %v3976
          %4009 = vst [vmem:[%s273 + $0x28] sm:$0xff] %v3977
          %4010 = vst [vmem:[%s273 + $0x30] sm:$0xff] %v3978
          %4011 = vst [vmem:[%s273 + $0x38] sm:$0xff] %v3979
          %4012 = vst [vmem:[%s273 + $0x40] sm:$0xff] %v3980
          %4013 = vst [vmem:[%s273 + $0x48] sm:$0xff] %v3981
          %4014 = vst [vmem:[%s273 + $0x50] sm:$0xff] %v3982
          %4015 = vst [vmem:[%s273 + $0x58] sm:$0xff] %v3983
          %4016 = vst [vmem:[%s273 + $0x60] sm:$0xff] %v3984
          %4017 = vst [vmem:[%s273 + $0x68] sm:$0xff] %v3985
          %4018 = vst [vmem:[%s273 + $0x70] sm:$0xff] %v3986
          %4019 = vst [vmem:[%s273 + $0x78] sm:$0xff] %v3987
          %4020 = vst [vmem:[%s273 + $0x80] sm:$0xff] %v3988
          %4021 = vst [vmem:[%s273 + $0x88] sm:$0xff] %v3989
          %4022 = vst [vmem:[%s273 + $0x90] sm:$0xff] %v3990
          %4023 = vst [vmem:[%s273 + $0x98] sm:$0xff] %v3991
          %4024 = vst [vmem:[%s273 + $0xa0] sm:$0xff] %v3992
          %4025 = vst [vmem:[%s273 + $0xa8] sm:$0xff] %v3993
          %4026 = vst [vmem:[%s273 + $0xb0] sm:$0xff] %v3994
          %4027 = vst [vmem:[%s273 + $0xb8] sm:$0xff] %v3995
          %4028 = vst [vmem:[%s273 + $0xc0] sm:$0xff] %v3996
          %4029 = vst [vmem:[%s273 + $0xc8] sm:$0xff] %v3997
          %4030 = vst [vmem:[%s273 + $0xd0] sm:$0xff] %v3998
          %4031 = vst [vmem:[%s273 + $0xd8] sm:$0xff] %v3999
          %4032 = vst [vmem:[%s273 + $0xe0] sm:$0xff] %v4000
          %4033 = vst [vmem:[%s273 + $0xe8] sm:$0xff] %v4001
          %4034 = vst [vmem:[%s273 + $0xf0] sm:$0xff] %v4002
          %4035 = vst [vmem:[%s273 + $0xf8] sm:$0xff] %v4003
        $region44: #{tpu_custom_call.1} parent=35 // pred_fallthru
          _
        %s4036 = sand.u32 %s155, 1
        %s4037 = scalar_lea.sflag [#allocation4], %s4036
        %s4038 = sand.u32 %s155, 1
        %s4039 = smul.addr %s4038, 256
        %s4040 = scalar_lea.vmem [#allocation3], %s4039
        // Predicated region
        $region45: #{tpu_custom_call.1} parent=35 // pred_check
          %p4041 = pneg %p165
        $region46: #{tpu_custom_call.1} parent=35 // pred_check_branch
          %4043 = sbr.rel (%p4041) target = $region48
        $region47: #{tpu_custom_call.1} parent=35 // pred_region
          %s4044 = smul.u32 2, %s24
          %4046 = vsyncadd %s4037, 0
          %s4047 = smul.addr %s23, 64
          %s4048 = sadd.s32 %s4044, %s4047
          %s4049 = smul.addr %s4048, 4
          %s4050 = scalar_lea.hbm %s4, %s4049
          %s4051 = sshll.u32 %s4040, 4
          %s4052 = int_to_ptr.vmem [resolvable:$true] %s4051
          %s4053 = sshll.u32 %s4050, 4
          %s4054 = int_to_ptr.hbm [resolvable:$true] %s4053
          %4059 = dma.vmem_to_hbm [thread:$0]  %s4052, 4096, %s4054, %s4037, 128, 128, 8
        $region48: #{tpu_custom_call.1} parent=35 // pred_fallthru
          _
      $region36: #{tpu_custom_call.1} parent=5 // pred_fallthru
        _
      %p4060 = scmp.le.s32.totalorder 2, %s13
      // Predicated region
      $region49: #{tpu_custom_call.1} parent=5 // pred_check
        %p4061 = pneg %p4060
      $region50: #{tpu_custom_call.1} parent=5 // pred_check_branch
        %4063 = sbr.rel (%p4061) target = $region52
      $region51: #{tpu_custom_call.1} parent=5 // pred_region
        %s4064 = ssub.s32 %s13, 2
        // Predicated region
        $region53: #{tpu_custom_call.1} parent=51 // pred_check
          %p4065 = pneg %p171
        $region54: #{tpu_custom_call.1} parent=51 // pred_check_branch
          %4067 = sbr.rel (%p4065) target = $region56
        $region55: #{tpu_custom_call.1} parent=51 // pred_region
          %s4068 = sand.u32 %s156, 1
          %s4069 = scalar_lea.sflag [#allocation4], %s4068
          %s4070 = sand.u32 %s156, 1
          %s4071 = smul.addr %s4070, 256
          %s4072 = scalar_lea.vmem [#allocation3], %s4071
          %4074 = dma.done %s4069, 4096
        $region56: #{tpu_custom_call.1} parent=51 // pred_fallthru
          _
      $region52: #{tpu_custom_call.1} parent=5 // pred_fallthru
        _
    $region6: #{tpu_custom_call.1} parent=1 // loop_footer
      %s17 = sadd.s32 1, %s13
    $region7: #{tpu_custom_call.1} parent=1 // loop_footer_branch
      %12 = sbr.rel target = $region3
    $region8: #{tpu_custom_call.1} parent=1 // loop_exit
      _
    %4075 = vsyncpa [#allocation4], 1
    %s4076 = scalar_lea.sflag [#allocation4], 1
    %4077 = vsyncpa %s4076, 1

</llo_original>
